<compile_context>
chip_gen: v7x
topology: tpu7x:2x2x1
jax: 0.10.0
libtpu: 0.0.40
codegen_flags: <defaults>
</compile_context>

<pallas_src>
import functools

import numpy as np
import jax
import jax.numpy as jnp
from jax.experimental import pallas as pl
from jax.experimental.pallas import tpu as pltpu


def _vmem_limit_bytes():
    """Generation-aware scoped-VMEM budget (v5e/v6e: 128 MiB physical, v7x: 64 MiB)."""
    try:
        cap = int(pltpu.get_tpu_info().vmem_capacity_bytes)
    except Exception:  # pragma: no cover - conservative fallback
        cap = 64 * 1024 * 1024
    return int(min(max(cap // 2, 32 * 1024 * 1024), 96 * 1024 * 1024))


VMEM_LIMIT = _vmem_limit_bytes()


# ------------------------------ tile planning --------------------------------
# Tiles always DIVIDE the dimension exactly (no wrapper pad/slice) and are either
# a multiple of the layout unit (8 sublanes / 128 lanes) or the full extent.

def _pick_tile(dim, max_tile, unit):
    cands = [d for d in range(unit, min(dim, max_tile) + 1, unit) if dim % d == 0]
    return max(cands) if cands else dim


def _plan_matmul(M, N, K, max_tile=512):
    tm = _pick_tile(M, max_tile, 8)
    tn = _pick_tile(N, max_tile, 128)
    tk = _pick_tile(K, max_tile, 128)
    # Guarantee >=2 parallel grid steps where possible so both v7x TensorCores
    # get work (free on v5e/v6e).  Split whichever axis keeps the larger tile.
    if (M // tm) * (N // tn) < 2:
        tn_half = _pick_tile(N, max(N // 2, 128), 128)
        tm_half = _pick_tile(M, max(M // 2, 8), 8)
        if N // tn_half >= 2 and tn_half >= tm_half:
            tn = tn_half
        elif M // tm_half >= 2:
            tm = tm_half
    return tm, tn, tk


def _plan_rows(M, max_tile=512):
    tm = _pick_tile(M, max_tile, 8)
    if M // tm < 2:
        tm_half = _pick_tile(M, max(M // 2, 8), 8)
        if M // tm_half >= 2:
            tm = tm_half
    return tm


# --------------------------- kernel 1: tiled matmul --------------------------
# (M,K)@(K,N) + bias, f32 VMEM accumulator, epilogue cast to out dtype (bf16 for
# intermediate activations, f32 for the final decoder output).

def _mm_rowbias_kernel(x_ref, w_ref, b_ref, o_ref, acc_ref):
    @pl.when(pl.program_id(2) == 0)
    def _init():
        acc_ref[...] = jnp.zeros_like(acc_ref)

    # Cast the LHS block in-kernel (no-op when already bf16; avoids a separate
    # XLA convert pass + extra HBM round-trip for the f32 image input).
    acc_ref[...] += jnp.dot(x_ref[...].astype(jnp.bfloat16), w_ref[...],
                            preferred_element_type=jnp.float32)

    @pl.when(pl.program_id(2) == pl.num_programs(2) - 1)
    def _done():
        o_ref[...] = (acc_ref[...] + b_ref[...]).astype(o_ref.dtype)


def _mm_colbias_kernel(x_ref, w_ref, b_ref, o_ref, acc_ref):
    @pl.when(pl.program_id(2) == 0)
    def _init():
        acc_ref[...] = jnp.zeros_like(acc_ref)

    acc_ref[...] += jnp.dot(x_ref[...].astype(jnp.bfloat16), w_ref[...],
                            preferred_element_type=jnp.float32)

    @pl.when(pl.program_id(2) == pl.num_programs(2) - 1)
    def _done():
        o_ref[...] = (acc_ref[...] + b_ref[...]).astype(o_ref.dtype)


def matmul_bias(x, w, b, *, bias_axis="row", out_dtype=jnp.bfloat16, max_tile=512):
    """x:(M,K) @ w:(K,N) + bias -> (M,N) in out_dtype.

    bias_axis="row": b has shape (1,N)   (per-output-channel bias)
    bias_axis="col": b has shape (M,1)   (per-row bias, e.g. per-token)
    Weights are expected pre-cast to bf16; x is cast in-kernel.
    """
    M, K = x.shape
    K2, N = w.shape
    assert K == K2
    tm, tn, tk = _plan_matmul(M, N, K, max_tile)
    grid = (M // tm, N // tn, K // tk)
    if bias_axis == "row":
        assert b.shape == (1, N)
        kern = _mm_rowbias_kernel
        b_spec = pl.BlockSpec((1, tn), lambda i, j, k: (0, j))
    else:
        assert b.shape == (M, 1)
        kern = _mm_colbias_kernel
        b_spec = pl.BlockSpec((tm, 1), lambda i, j, k: (i, 0))
    flops = 2 * M * N * K
    bytes_acc = (M * K * x.dtype.itemsize + K * N * 2
                 + M * N * jnp.dtype(out_dtype).itemsize + b.size * 4)
    return pl.pallas_call(
        kern,
        out_shape=jax.ShapeDtypeStruct((M, N), out_dtype),
        grid_spec=pltpu.PrefetchScalarGridSpec(
            num_scalar_prefetch=0,
            grid=grid,
            in_specs=[pl.BlockSpec((tm, tk), lambda i, j, k: (i, k)),
                      pl.BlockSpec((tk, tn), lambda i, j, k: (k, j)),
                      b_spec],
            out_specs=pl.BlockSpec((tm, tn), lambda i, j, k: (i, j)),
            scratch_shapes=[pltpu.VMEM((tm, tn), jnp.float32)]),
        compiler_params=pltpu.CompilerParams(
            dimension_semantics=("parallel", "parallel", "arbitrary"),
            vmem_limit_bytes=VMEM_LIMIT),
        cost_estimate=pl.CostEstimate(flops=flops, transcendentals=0,
                                      bytes_accessed=bytes_acc),
    )(x, w, b)


# ------ kernel 2: fused quant_conv -> LatentQuantize -> post_quant_conv ------
# All intermediates are (tm, 128): lane-dense VPU/EUP work and full MXU tiles.

def _quant_chain_kernel(h_ref, wq_ref, bq_ref, cst_ref, wp_ref, bp_ref,
                        pq_ref, idx_ref):
    h = h_ref[...].astype(jnp.bfloat16)                                # (tm, z_ch)
    # quant_conv: 1x1 conv over channels == (tm, z_ch) @ (z_ch, Dp) + bias
    z = jnp.dot(h, wq_ref[...], preferred_element_type=jnp.float32) + bq_ref[...]

    c = cst_ref[...]                                                   # (8, Dp) f32
    half_l, offset, shift = c[0:1], c[1:2], c[2:3]
    step, inv_step, lmax, basis = c[3:4], c[4:5], c[5:6], c[6:7]

    # LatentQuantize.bound(): tanh squash into the per-dimension level range.
    # (As in the provided reference, the bounded value lives in level-index
    #  space while the per-dim codebooks span ~[-1, 1]; large |zb| saturates
    #  to the extreme code exactly as torch.argmin over |zb - v| would.)
    zb = jnp.tanh(z + shift) * half_l - offset

    # Nearest codebook value: each per-dim codebook is a uniform grid starting
    # at -1 with spacing `step`, so the argmin over levels collapses to a
    # closed-form round + clamp (level index k), done in f32 on the VPU.
    k = jnp.clip(jnp.round((zb + 1.0) * inv_step), 0.0, lmax)          # level index
    q = k * step - 1.0                                                 # quantized code (== STE fwd value)

    # codes_to_indices: scale_and_shift(q).round() equals k exactly, so the
    # codebook index is sum_d k_d * basis_d, accumulated in int32 (exact while
    # prod(levels) <= 2^24).  Padded dims have basis = 0 and contribute nothing.
    # (idx is a 1-lane output block; lane-densifying it only matters at huge M.)
    idx_ref[...] = jnp.sum(k.astype(jnp.int32) * basis.astype(jnp.int32),
                           axis=1, keepdims=True)

    # post_quant_conv: 1x1 conv (tm, Dp) @ (Dp, z_ch) + bias.
    # q values are exact in bf16 for levels [8,5,5,5] (steps 0.25 / 0.5 are
    # powers of two); keep q in f32 here if the level set ever changes.
    pq_ref[...] = (jnp.dot(q.astype(jnp.bfloat16), wp_ref[...],
                           preferred_element_type=jnp.float32)
                   + bp_ref[...]).astype(pq_ref.dtype)


def quant_chain(h_rows, wq, bq, cst, wp, bp, *, out_dtype=jnp.bfloat16):
    """Fused quant_conv -> LatentQuantize -> post_quant_conv over M = T*B rows."""
    M, Cz = h_rows.shape
    Dp = wq.shape[1]
    assert wq.shape == (Cz, Dp) and wp.shape == (Dp, Cz)
    tm = _plan_rows(M)
    grid = (M // tm,)
    flops = 4 * M * Dp * Cz + 10 * M * Dp
    bytes_acc = M * Cz * (2 + 2) + 2 * Dp * Cz * 2 + M * 4 + 8 * Dp * 4
    pq, idx = pl.pallas_call(
        _quant_chain_kernel,
        out_shape=(jax.ShapeDtypeStruct((M, Cz), out_dtype),
                   jax.ShapeDtypeStruct((M, 1), jnp.int32)),
        grid_spec=pltpu.PrefetchScalarGridSpec(
            num_scalar_prefetch=0,
            grid=grid,
            in_specs=[pl.BlockSpec((tm, Cz), lambda i: (i, 0)),
                      pl.BlockSpec((Cz, Dp), lambda i: (0, 0)),
                      pl.BlockSpec((1, Dp), lambda i: (0, 0)),
                      pl.BlockSpec((8, Dp), lambda i: (0, 0)),
                      pl.BlockSpec((Dp, Cz), lambda i: (0, 0)),
                      pl.BlockSpec((1, Cz), lambda i: (0, 0))],
            out_specs=(pl.BlockSpec((tm, Cz), lambda i: (i, 0)),
                       pl.BlockSpec((tm, 1), lambda i: (i, 0)))),
        compiler_params=pltpu.CompilerParams(
            dimension_semantics=("parallel",),
            vmem_limit_bytes=VMEM_LIMIT),
        cost_estimate=pl.CostEstimate(flops=flops, transcendentals=M * Dp,
                                      bytes_accessed=bytes_acc),
    )(h_rows, wq, bq, cst, wp, bp)
    return pq, idx


# --------------------------- parameters / constants --------------------------

def trunc_normal(key, shape, std=0.02):
    return std * jax.random.truncated_normal(key, -2.0, 2.0, shape, jnp.float32)


def init_params(key, *, in_ch, patch, z_ch, n_tok, hw, n_levels, d_pad):
    ks = jax.random.split(key, 6)
    cpp = in_ch * patch * patch
    bf = jnp.bfloat16
    # quant/post-quant 1x1-conv weights: real codebook dim = n_levels, lane-padded
    # once at init to d_pad (zero columns/rows == neutral pad, no runtime pad/slice).
    wq = jnp.pad(trunc_normal(ks[2], (z_ch, n_levels)),
                 ((0, 0), (0, d_pad - n_levels)))
    wp = jnp.pad(trunc_normal(ks[3], (n_levels, z_ch)),
                 ((0, d_pad - n_levels), (0, 0)))
    return {
        # TODO(synk): Encoder / ViTEncoder / ViTDecoder / Decoder definitions were not
        # provided with the module; shape-compatible linear stand-ins are used instead.
        "enc_w": trunc_normal(ks[0], (cpp, z_ch)).astype(bf),
        "enc_b": jnp.zeros((1, z_ch), jnp.float32),
        "tok_w": trunc_normal(ks[1], (n_tok, hw)).astype(bf),    # tokens <- spatial
        "tok_b": jnp.zeros((n_tok, 1), jnp.float32),
        "quant_conv_w": wq.astype(bf),                            # 1x1: z_ch -> len(levels) (padded)
        "quant_conv_b": jnp.zeros((1, d_pad), jnp.float32),
        "post_quant_conv_w": wp.astype(bf),                       # 1x1: len(levels) -> z_ch (padded)
        "post_quant_conv_b": jnp.zeros((1, z_ch), jnp.float32),
        "dtok_w": trunc_normal(ks[4], (hw, n_tok)).astype(bf),    # spatial <- tokens
        "dtok_b": jnp.zeros((hw, 1), jnp.float32),
        "dec_w": trunc_normal(ks[5], (z_ch, cpp)).astype(bf),
        "dec_b": jnp.zeros((1, cpp), jnp.float32),
    }


def make_lq_constants(levels, d_pad):
    """Per-codebook-dim constants for the fused LatentQuantize kernel (static)."""
    lv = np.asarray(levels, np.int64)
    D = len(lv)
    eps = 1e-3
    half_l = (lv - 1) * (1.0 + eps) / 2.0
    offset = np.where(lv % 2 == 0, 0.5, 0.0)
    shift = np.arctanh(offset / half_l)
    # codebook grids: odd L -> linspace(-1,1,L) (spacing 2/(L-1));
    #                 even L -> arange(L)/(L//2)-1 (spacing 1/(L//2)).
    step = np.where(lv % 2 == 1, 2.0 / (lv - 1), 1.0 / (lv // 2))
    basis = np.cumprod(np.concatenate([[1], lv[:-1]])).astype(np.float64)
    cst = np.zeros((8, d_pad), np.float32)
    cst[0, :D] = half_l
    cst[1, :D] = offset
    cst[2, :D] = shift
    cst[3, :D] = step
    cst[4, :D] = 1.0 / step
    cst[5, :D] = lv - 1
    cst[6, :D] = basis
    # padded codebook dims: quantize to a constant; basis=0 and zero conv rows/cols
    # make them contribute nothing to indices or post_quant_conv output.
    cst[0, D:] = 1.0
    cst[3, D:] = 1.0
    cst[4, D:] = 1.0
    return jnp.asarray(cst, jnp.float32)


# ----------------------------------- forward ---------------------------------

def lqvit_forward(params, x, cst, *, patch, z_ch, n_tok):
    B, C, H, W = x.shape
    Hp, Wp = H // patch, W // patch
    HW = Hp * Wp
    Cpp = C * patch * patch

    # ---- Encoder stand-in: patchify + linear ----------------------------------
    # Patchify into (HW, B, C*p*p) so the batch folds into the lane dim downstream
    # (token-mixing matmuls then run as single lane-dense calls, no batched bmm).
    # TODO(synk): this 6-D transpose could be folded into the encoder matmul via a
    # manual-DMA gather; left as an XLA layout op for now.
    xp = x.reshape(B, C, Hp, patch, Wp, patch).transpose(2, 4, 0, 1, 3, 5)
    xp = xp.reshape(HW * B, Cpp)
    s_rows = matmul_bias(xp, params["enc_w"], params["enc_b"])          # (HW*B, z_ch) bf16
    s2 = s_rows.reshape(HW, B * z_ch)                                   # free reshape

    # ---- s2to1encoder stand-in: spatial positions -> latent tokens ------------
    # Single matmul with batch folded into N: (T, HW) @ (HW, B*z_ch) + per-token bias.
    h2 = matmul_bias(params["tok_w"], s2, params["tok_b"], bias_axis="col")  # (T, B*z_ch) bf16

    # ---- fused quant_conv -> LatentQuantize -> post_quant_conv ----------------
    pq_rows, idx = quant_chain(h2.reshape(n_tok * B, z_ch),
                               params["quant_conv_w"], params["quant_conv_b"], cst,
                               params["post_quant_conv_w"], params["post_quant_conv_b"])
    indices = idx.reshape(n_tok, B).T.reshape(B, 1, n_tok)   # (b, 1, T) as in the reference
    codebook_loss = jnp.float32(0.0)                         # eval mode: commitment = quantization = 0
    # TODO(synk): training-only branches (commitment/quantization losses, in-place
    # codebook optimizer, dir_dec path) are not translated.

    # ---- s1to2decoder stand-in: latent tokens -> spatial positions ------------
    rec2 = matmul_bias(params["dtok_w"], pq_rows.reshape(n_tok, B * z_ch),
                       params["dtok_b"], bias_axis="col")                # (HW, B*z_ch) bf16

    # ---- Decoder stand-in: linear + unpatchify (final output f32) -------------
    dec_rows = matmul_bias(rec2.reshape(HW * B, z_ch), params["dec_w"], params["dec_b"],
                           out_dtype=jnp.float32)                        # (HW*B, Cpp) f32
    dec = dec_rows.reshape(Hp, Wp, B, C, patch, patch).transpose(2, 3, 0, 4, 1, 5)
    dec = dec.reshape(B, C, H, W)

    # ---- cosine-similarity feature loss over channel dim (f32 in JAX) ---------
    a = jax.lax.stop_gradient(s2).reshape(HW, B, z_ch).astype(jnp.float32)   # spatial.detach()
    r = rec2.reshape(HW, B, z_ch).astype(jnp.float32)
    num = jnp.sum(a * r, axis=-1)
    den = (jnp.maximum(jnp.sqrt(jnp.sum(a * a, axis=-1)), 1e-8) *
           jnp.maximum(jnp.sqrt(jnp.sum(r * r, axis=-1)), 1e-8))
    fea_rec_loss = jnp.mean(1.0 - num / den)

    # eval-mode forward returns (dec, codebook_loss); extras returned for inspection.
    return dec, codebook_loss, indices, fea_rec_loss


# ------------------------------------ main ------------------------------------

if __name__ == "__main__":
    B, C, H, W = 2, 3, 32, 32            # small NCHW input (PyTorch convention)
    patch = 4                            # stand-in downsample factor
    z_ch = 128                           # scaled-down z_channels (lane-aligned)
    n_tok = 32                           # num_latent_tokens (ModelArgs default)
    levels = [8, 5, 5, 5]                # ModelArgs.levels
    D = len(levels)
    d_pad = 128                          # codebook dim lane-padded to 128 (neutral pad)

    key = jax.random.PRNGKey(0)
    kx, kp = jax.random.split(key)
    x = jax.random.normal(kx, (B, C, H, W), jnp.float32)
    hw = (H // patch) * (W // patch)
    params = init_params(kp, in_ch=C, patch=patch, z_ch=z_ch, n_tok=n_tok,
                         hw=hw, n_levels=D, d_pad=d_pad)
    cst = make_lq_constants(levels, d_pad)

    fwd = jax.jit(functools.partial(lqvit_forward, patch=patch, z_ch=z_ch,
                                    n_tok=n_tok))
    dec, codebook_loss, indices, fea_loss = fwd(params, x, cst)
    jax.block_until_ready((dec, codebook_loss, indices, fea_loss))

    assert dec.shape == (B, C, H, W) and dec.dtype == jnp.float32
    assert indices.shape == (B, 1, n_tok) and indices.dtype == jnp.int32
    assert int(jnp.min(indices)) >= 0
    assert int(jnp.max(indices)) < int(np.prod(levels))
    assert bool(jnp.isfinite(fea_loss))
    assert float(codebook_loss) == 0.0
    print("KERNEL_OK")
</pallas_src>

<mosaic_0001>
module attributes {stable_mosaic.version = 11 : i64} {
  func.func @_mm_rowbias_kernel(%arg0: i32, %arg1: i32, %arg2: i32, %arg3: memref<64x48xf32, #tpu.memory_space<vmem>>, %arg4: memref<48x128xbf16, #tpu.memory_space<vmem>>, %arg5: memref<1x128xf32, #tpu.memory_space<vmem>>, %arg6: memref<64x128xbf16, #tpu.memory_space<vmem>>, %arg7: memref<64x128xf32, #tpu.memory_space<vmem>>) attributes {dimension_semantics = [#tpu.dimension_semantics<parallel>, #tpu.dimension_semantics<parallel>, #tpu.dimension_semantics<arbitrary>], iteration_bounds = array<i64: 2, 1, 1>, scalar_prefetch = 0 : i64, scratch_operands = 1 : i64, tpu.core_type = #tpu.core_type<tc>, window_params = [{transform_indices = @transform_0, window_bounds = array<i64: 64, 48>}, {transform_indices = @transform_1, window_bounds = array<i64: 48, 128>}, {transform_indices = @transform_2, window_bounds = array<i64: 1, 128>}, {transform_indices = @transform_3, window_bounds = array<i64: 64, 128>}]} {
    %c0_i32 = arith.constant 0 : i32
    %0 = arith.cmpi eq, %arg2, %c0_i32 : i32
    %1 = arith.extui %0 : i1 to i32
    %c0_i32_0 = arith.constant 0 : i32
    %2 = arith.cmpi ne, %1, %c0_i32_0 : i32
    scf.if %2 {
      %cst_10 = arith.constant 0.000000e+00 : f32
      %13 = vector.broadcast %cst_10 : f32 to vector<64x128xf32>
      %c0_11 = arith.constant 0 : index
      %c0_12 = arith.constant 0 : index
      %14 = vector.load %arg7[%c0_11, %c0_12] : memref<64x128xf32, #tpu.memory_space<vmem>>, vector<64x128xf32>
      tpu.vector_store %arg7[%c0_11, %c0_12], %13 {strides = array<i32>} : memref<64x128xf32, #tpu.memory_space<vmem>>, vector<64x128xf32>,
    } else {
    }
    %c0 = arith.constant 0 : index
    %c0_1 = arith.constant 0 : index
    %3 = vector.load %arg7[%c0, %c0_1] : memref<64x128xf32, #tpu.memory_space<vmem>>, vector<64x128xf32>
    %c0_2 = arith.constant 0 : index
    %c0_3 = arith.constant 0 : index
    %4 = vector.load %arg3[%c0_2, %c0_3] : memref<64x48xf32, #tpu.memory_space<vmem>>, vector<64x48xf32>
    %5 = arith.truncf %4 : vector<64x48xf32> to vector<64x48xbf16>
    %c0_4 = arith.constant 0 : index
    %c0_5 = arith.constant 0 : index
    %6 = vector.load %arg4[%c0_4, %c0_5] : memref<48x128xbf16, #tpu.memory_space<vmem>>, vector<48x128xbf16>
    %cst = arith.constant dense<0.000000e+00> : vector<64x128xf32>
    %7 = tpu.matmul %5, %6, %cst {dimension_numbers = #tpu.dot_dimension_numbers<[1], [0], [0], [1], [0, 0, 1, 1], [], []>} : vector<64x48xbf16>, vector<48x128xbf16>, vector<64x128xf32> -> vector<64x128xf32>
    %8 = arith.addf %3, %7 : vector<64x128xf32>
    %c0_6 = arith.constant 0 : index
    %c0_7 = arith.constant 0 : index
    %9 = vector.load %arg7[%c0_6, %c0_7] : memref<64x128xf32, #tpu.memory_space<vmem>>, vector<64x128xf32>
    tpu.vector_store %arg7[%c0_6, %c0_7], %8 {strides = array<i32>} : memref<64x128xf32, #tpu.memory_space<vmem>>, vector<64x128xf32>,
    %c0_i32_8 = arith.constant 0 : i32
    %10 = arith.cmpi eq, %arg2, %c0_i32_8 : i32
    %11 = arith.extui %10 : i1 to i32
    %c0_i32_9 = arith.constant 0 : i32
    %12 = arith.cmpi ne, %11, %c0_i32_9 : i32
    scf.if %12 {
      %c0_10 = arith.constant 0 : index
      %c0_11 = arith.constant 0 : index
      %13 = vector.load %arg7[%c0_10, %c0_11] : memref<64x128xf32, #tpu.memory_space<vmem>>, vector<64x128xf32>
      %c0_12 = arith.constant 0 : index
      %c0_13 = arith.constant 0 : index
      %14 = vector.load %arg5[%c0_12, %c0_13] : memref<1x128xf32, #tpu.memory_space<vmem>>, vector<1x128xf32>
      %15 = vector.broadcast %14 : vector<1x128xf32> to vector<64x128xf32>
      %16 = arith.addf %13, %15 : vector<64x128xf32>
      %17 = arith.truncf %16 : vector<64x128xf32> to vector<64x128xbf16>
      %c0_14 = arith.constant 0 : index
      %c0_15 = arith.constant 0 : index
      %18 = vector.load %arg6[%c0_14, %c0_15] : memref<64x128xbf16, #tpu.memory_space<vmem>>, vector<64x128xbf16>
      tpu.vector_store %arg6[%c0_14, %c0_15], %17 {strides = array<i32>} : memref<64x128xbf16, #tpu.memory_space<vmem>>, vector<64x128xbf16>,
    } else {
    }
    return
  }
  func.func @transform_0(%arg0: i32, %arg1: i32, %arg2: i32) -> (i32, i32) {
    %c0_i32 = arith.constant 0 : i32
    return %arg0, %arg2 : i32, i32
  }
  func.func @transform_1(%arg0: i32, %arg1: i32, %arg2: i32) -> (i32, i32) {
    %c0_i32 = arith.constant 0 : i32
    return %arg2, %arg1 : i32, i32
  }
  func.func @transform_2(%arg0: i32, %arg1: i32, %arg2: i32) -> (i32, i32) {
    %c0_i32 = arith.constant 0 : i32
    %c0_i32_0 = arith.constant 0 : i32
    return %c0_i32, %arg1 : i32, i32
  }
  func.func @transform_3(%arg0: i32, %arg1: i32, %arg2: i32) -> (i32, i32) {
    %c0_i32 = arith.constant 0 : i32
    return %arg0, %arg1 : i32, i32
  }
}

module attributes {stable_mosaic.version = 11 : i64} {
  func.func @_mm_colbias_kernel(%arg0: i32, %arg1: i32, %arg2: i32, %arg3: memref<32x64xbf16, #tpu.memory_space<vmem>>, %arg4: memref<64x128xbf16, #tpu.memory_space<vmem>>, %arg5: memref<32x1xf32, #tpu.memory_space<vmem>>, %arg6: memref<32x128xbf16, #tpu.memory_space<vmem>>, %arg7: memref<32x128xf32, #tpu.memory_space<vmem>>) attributes {dimension_semantics = [#tpu.dimension_semantics<parallel>, #tpu.dimension_semantics<parallel>, #tpu.dimension_semantics<arbitrary>], iteration_bounds = array<i64: 1, 2, 1>, scalar_prefetch = 0 : i64, scratch_operands = 1 : i64, tpu.core_type = #tpu.core_type<tc>, window_params = [{transform_indices = @transform_0, window_bounds = array<i64: 32, 64>}, {transform_indices = @transform_1, window_bounds = array<i64: 64, 128>}, {transform_indices = @transform_2, window_bounds = array<i64: 32, 1>}, {transform_indices = @transform_3, window_bounds = array<i64: 32, 128>}]} {
    %c0_i32 = arith.constant 0 : i32
    %0 = arith.cmpi eq, %arg2, %c0_i32 : i32
    %1 = arith.extui %0 : i1 to i32
    %c0_i32_0 = arith.constant 0 : i32
    %2 = arith.cmpi ne, %1, %c0_i32_0 : i32
    scf.if %2 {
      %cst_10 = arith.constant 0.000000e+00 : f32
      %12 = vector.broadcast %cst_10 : f32 to vector<32x128xf32>
      %c0_11 = arith.constant 0 : index
      %c0_12 = arith.constant 0 : index
      %13 = vector.load %arg7[%c0_11, %c0_12] : memref<32x128xf32, #tpu.memory_space<vmem>>, vector<32x128xf32>
      tpu.vector_store %arg7[%c0_11, %c0_12], %12 {strides = array<i32>} : memref<32x128xf32, #tpu.memory_space<vmem>>, vector<32x128xf32>,
    } else {
    }
    %c0 = arith.constant 0 : index
    %c0_1 = arith.constant 0 : index
    %3 = vector.load %arg7[%c0, %c0_1] : memref<32x128xf32, #tpu.memory_space<vmem>>, vector<32x128xf32>
    %c0_2 = arith.constant 0 : index
    %c0_3 = arith.constant 0 : index
    %4 = vector.load %arg3[%c0_2, %c0_3] : memref<32x64xbf16, #tpu.memory_space<vmem>>, vector<32x64xbf16>
    %c0_4 = arith.constant 0 : index
    %c0_5 = arith.constant 0 : index
    %5 = vector.load %arg4[%c0_4, %c0_5] : memref<64x128xbf16, #tpu.memory_space<vmem>>, vector<64x128xbf16>
    %cst = arith.constant dense<0.000000e+00> : vector<32x128xf32>
    %6 = tpu.matmul %4, %5, %cst {dimension_numbers = #tpu.dot_dimension_numbers<[1], [0], [0], [1], [0, 0, 1, 1], [], []>} : vector<32x64xbf16>, vector<64x128xbf16>, vector<32x128xf32> -> vector<32x128xf32>
    %7 = arith.addf %3, %6 : vector<32x128xf32>
    %c0_6 = arith.constant 0 : index
    %c0_7 = arith.constant 0 : index
    %8 = vector.load %arg7[%c0_6, %c0_7] : memref<32x128xf32, #tpu.memory_space<vmem>>, vector<32x128xf32>
    tpu.vector_store %arg7[%c0_6, %c0_7], %7 {strides = array<i32>} : memref<32x128xf32, #tpu.memory_space<vmem>>, vector<32x128xf32>,
    %c0_i32_8 = arith.constant 0 : i32
    %9 = arith.cmpi eq, %arg2, %c0_i32_8 : i32
    %10 = arith.extui %9 : i1 to i32
    %c0_i32_9 = arith.constant 0 : i32
    %11 = arith.cmpi ne, %10, %c0_i32_9 : i32
    scf.if %11 {
      %c0_10 = arith.constant 0 : index
      %c0_11 = arith.constant 0 : index
      %12 = vector.load %arg7[%c0_10, %c0_11] : memref<32x128xf32, #tpu.memory_space<vmem>>, vector<32x128xf32>
      %c0_12 = arith.constant 0 : index
      %c0_13 = arith.constant 0 : index
      %13 = vector.load %arg5[%c0_12, %c0_13] : memref<32x1xf32, #tpu.memory_space<vmem>>, vector<32x1xf32>
      %14 = vector.broadcast %13 : vector<32x1xf32> to vector<32x128xf32>
      %15 = arith.addf %12, %14 : vector<32x128xf32>
      %16 = arith.truncf %15 : vector<32x128xf32> to vector<32x128xbf16>
      %c0_14 = arith.constant 0 : index
      %c0_15 = arith.constant 0 : index
      %17 = vector.load %arg6[%c0_14, %c0_15] : memref<32x128xbf16, #tpu.memory_space<vmem>>, vector<32x128xbf16>
      tpu.vector_store %arg6[%c0_14, %c0_15], %16 {strides = array<i32>} : memref<32x128xbf16, #tpu.memory_space<vmem>>, vector<32x128xbf16>,
    } else {
    }
    return
  }
  func.func @transform_0(%arg0: i32, %arg1: i32, %arg2: i32) -> (i32, i32) {
    %c0_i32 = arith.constant 0 : i32
    return %arg0, %arg2 : i32, i32
  }
  func.func @transform_1(%arg0: i32, %arg1: i32, %arg2: i32) -> (i32, i32) {
    %c0_i32 = arith.constant 0 : i32
    return %arg2, %arg1 : i32, i32
  }
  func.func @transform_2(%arg0: i32, %arg1: i32, %arg2: i32) -> (i32, i32) {
    %c0_i32 = arith.constant 0 : i32
    %c0_i32_0 = arith.constant 0 : i32
    return %arg0, %c0_i32 : i32, i32
  }
  func.func @transform_3(%arg0: i32, %arg1: i32, %arg2: i32) -> (i32, i32) {
    %c0_i32 = arith.constant 0 : i32
    return %arg0, %arg1 : i32, i32
  }
}

module attributes {stable_mosaic.version = 11 : i64} {
  func.func @_quant_chain_kernel(%arg0: i32, %arg1: memref<32x128xbf16, #tpu.memory_space<vmem>>, %arg2: memref<128x128xbf16, #tpu.memory_space<vmem>>, %arg3: memref<1x128xf32, #tpu.memory_space<vmem>>, %arg4: memref<8x128xf32, #tpu.memory_space<vmem>>, %arg5: memref<128x128xbf16, #tpu.memory_space<vmem>>, %arg6: memref<1x128xf32, #tpu.memory_space<vmem>>, %arg7: memref<32x128xbf16, #tpu.memory_space<vmem>>, %arg8: memref<32x1xi32, #tpu.memory_space<vmem>>) attributes {dimension_semantics = [#tpu.dimension_semantics<parallel>], iteration_bounds = array<i64: 2>, scalar_prefetch = 0 : i64, scratch_operands = 0 : i64, tpu.core_type = #tpu.core_type<tc>, window_params = [{transform_indices = @transform_0, window_bounds = array<i64: 32, 128>}, {pipeline_mode = #tpu.pipeline_mode<synchronous>, transform_indices = @transform_1, window_bounds = array<i64: 128, 128>}, {pipeline_mode = #tpu.pipeline_mode<synchronous>, transform_indices = @transform_2, window_bounds = array<i64: 1, 128>}, {pipeline_mode = #tpu.pipeline_mode<synchronous>, transform_indices = @transform_3, window_bounds = array<i64: 8, 128>}, {pipeline_mode = #tpu.pipeline_mode<synchronous>, transform_indices = @transform_4, window_bounds = array<i64: 128, 128>}, {pipeline_mode = #tpu.pipeline_mode<synchronous>, transform_indices = @transform_5, window_bounds = array<i64: 1, 128>}, {transform_indices = @transform_6, window_bounds = array<i64: 32, 128>}, {transform_indices = @transform_7, window_bounds = array<i64: 32, 1>}]} {
    %c0 = arith.constant 0 : index
    %c0_0 = arith.constant 0 : index
    %0 = vector.load %arg1[%c0, %c0_0] : memref<32x128xbf16, #tpu.memory_space<vmem>>, vector<32x128xbf16>
    %c0_1 = arith.constant 0 : index
    %c0_2 = arith.constant 0 : index
    %1 = vector.load %arg2[%c0_1, %c0_2] : memref<128x128xbf16, #tpu.memory_space<vmem>>, vector<128x128xbf16>
    %cst = arith.constant dense<0.000000e+00> : vector<32x128xf32>
    %2 = tpu.matmul %0, %1, %cst {dimension_numbers = #tpu.dot_dimension_numbers<[1], [0], [0], [1], [0, 0, 1, 1], [], []>} : vector<32x128xbf16>, vector<128x128xbf16>, vector<32x128xf32> -> vector<32x128xf32>
    %c0_3 = arith.constant 0 : index
    %c0_4 = arith.constant 0 : index
    %3 = vector.load %arg3[%c0_3, %c0_4] : memref<1x128xf32, #tpu.memory_space<vmem>>, vector<1x128xf32>
    %4 = vector.broadcast %3 : vector<1x128xf32> to vector<32x128xf32>
    %5 = arith.addf %2, %4 : vector<32x128xf32>
    %c0_5 = arith.constant 0 : index
    %c0_6 = arith.constant 0 : index
    %6 = vector.load %arg4[%c0_5, %c0_6] : memref<8x128xf32, #tpu.memory_space<vmem>>, vector<8x128xf32>
    %7 = vector.extract_strided_slice %6 {offsets = [0, 0], sizes = [1, 128], strides = [1, 1]} : vector<8x128xf32> to vector<1x128xf32>
    %8 = vector.extract_strided_slice %6 {offsets = [1, 0], sizes = [1, 128], strides = [1, 1]} : vector<8x128xf32> to vector<1x128xf32>
    %9 = vector.extract_strided_slice %6 {offsets = [2, 0], sizes = [1, 128], strides = [1, 1]} : vector<8x128xf32> to vector<1x128xf32>
    %10 = vector.extract_strided_slice %6 {offsets = [3, 0], sizes = [1, 128], strides = [1, 1]} : vector<8x128xf32> to vector<1x128xf32>
    %11 = vector.extract_strided_slice %6 {offsets = [4, 0], sizes = [1, 128], strides = [1, 1]} : vector<8x128xf32> to vector<1x128xf32>
    %12 = vector.extract_strided_slice %6 {offsets = [5, 0], sizes = [1, 128], strides = [1, 1]} : vector<8x128xf32> to vector<1x128xf32>
    %13 = vector.extract_strided_slice %6 {offsets = [6, 0], sizes = [1, 128], strides = [1, 1]} : vector<8x128xf32> to vector<1x128xf32>
    %14 = vector.broadcast %9 : vector<1x128xf32> to vector<32x128xf32>
    %15 = arith.addf %5, %14 : vector<32x128xf32>
    %16 = math.tanh %15 : vector<32x128xf32>
    %17 = vector.broadcast %7 : vector<1x128xf32> to vector<32x128xf32>
    %18 = arith.mulf %16, %17 : vector<32x128xf32>
    %19 = vector.broadcast %8 : vector<1x128xf32> to vector<32x128xf32>
    %20 = arith.subf %18, %19 : vector<32x128xf32>
    %cst_7 = arith.constant 1.000000e+00 : f32
    %21 = vector.broadcast %cst_7 : f32 to vector<32x128xf32>
    %22 = arith.addf %20, %21 : vector<32x128xf32>
    %23 = vector.broadcast %11 : vector<1x128xf32> to vector<32x128xf32>
    %24 = arith.mulf %22, %23 : vector<32x128xf32>
    %25 = math.roundeven %24 : vector<32x128xf32>
    %cst_8 = arith.constant 0.000000e+00 : f32
    %26 = vector.broadcast %cst_8 : f32 to vector<32x128xf32>
    %27 = arith.maximumf %26, %25 : vector<32x128xf32>
    %28 = vector.broadcast %12 : vector<1x128xf32> to vector<32x128xf32>
    %29 = arith.minimumf %28, %27 : vector<32x128xf32>
    %30 = vector.broadcast %10 : vector<1x128xf32> to vector<32x128xf32>
    %31 = arith.mulf %29, %30 : vector<32x128xf32>
    %cst_9 = arith.constant 1.000000e+00 : f32
    %32 = vector.broadcast %cst_9 : f32 to vector<32x128xf32>
    %33 = arith.subf %31, %32 : vector<32x128xf32>
    %34 = arith.fptosi %29 : vector<32x128xf32> to vector<32x128xi32>
    %35 = arith.fptosi %13 : vector<1x128xf32> to vector<1x128xi32>
    %36 = vector.broadcast %35 : vector<1x128xi32> to vector<32x128xi32>
    %37 = arith.muli %34, %36 : vector<32x128xi32>
    %cst_10 = arith.constant dense<0> : vector<32xi32>
    %38 = vector.multi_reduction <add>, %37, %cst_10 [1] : vector<32x128xi32> to vector<32xi32>
    %39 = vector.shape_cast %38 : vector<32xi32> to vector<32x1xi32>
    %c0_11 = arith.constant 0 : index
    %c0_12 = arith.constant 0 : index
    %40 = vector.load %arg8[%c0_11, %c0_12] : memref<32x1xi32, #tpu.memory_space<vmem>>, vector<32x1xi32>
    tpu.vector_store %arg8[%c0_11, %c0_12], %39 {strides = array<i32>} : memref<32x1xi32, #tpu.memory_space<vmem>>, vector<32x1xi32>,
    %41 = arith.truncf %33 : vector<32x128xf32> to vector<32x128xbf16>
    %c0_13 = arith.constant 0 : index
    %c0_14 = arith.constant 0 : index
    %42 = vector.load %arg5[%c0_13, %c0_14] : memref<128x128xbf16, #tpu.memory_space<vmem>>, vector<128x128xbf16>
    %cst_15 = arith.constant dense<0.000000e+00> : vector<32x128xf32>
    %43 = tpu.matmul %41, %42, %cst_15 {dimension_numbers = #tpu.dot_dimension_numbers<[1], [0], [0], [1], [0, 0, 1, 1], [], []>} : vector<32x128xbf16>, vector<128x128xbf16>, vector<32x128xf32> -> vector<32x128xf32>
    %c0_16 = arith.constant 0 : index
    %c0_17 = arith.constant 0 : index
    %44 = vector.load %arg6[%c0_16, %c0_17] : memref<1x128xf32, #tpu.memory_space<vmem>>, vector<1x128xf32>
    %45 = vector.broadcast %44 : vector<1x128xf32> to vector<32x128xf32>
    %46 = arith.addf %43, %45 : vector<32x128xf32>
    %47 = arith.truncf %46 : vector<32x128xf32> to vector<32x128xbf16>
    %c0_18 = arith.constant 0 : index
    %c0_19 = arith.constant 0 : index
    %48 = vector.load %arg7[%c0_18, %c0_19] : memref<32x128xbf16, #tpu.memory_space<vmem>>, vector<32x128xbf16>
    tpu.vector_store %arg7[%c0_18, %c0_19], %47 {strides = array<i32>} : memref<32x128xbf16, #tpu.memory_space<vmem>>, vector<32x128xbf16>,
    return
  }
  func.func @transform_0(%arg0: i32) -> (i32, i32) {
    %c0_i32 = arith.constant 0 : i32
    %c0_i32_0 = arith.constant 0 : i32
    return %arg0, %c0_i32 : i32, i32
  }
  func.func @transform_1(%arg0: i32) -> (i32, i32) {
    %c0_i32 = arith.constant 0 : i32
    %c0_i32_0 = arith.constant 0 : i32
    %c0_i32_1 = arith.constant 0 : i32
    return %c0_i32, %c0_i32_0 : i32, i32
  }
  func.func @transform_2(%arg0: i32) -> (i32, i32) {
    %c0_i32 = arith.constant 0 : i32
    %c0_i32_0 = arith.constant 0 : i32
    %c0_i32_1 = arith.constant 0 : i32
    return %c0_i32, %c0_i32_0 : i32, i32
  }
  func.func @transform_3(%arg0: i32) -> (i32, i32) {
    %c0_i32 = arith.constant 0 : i32
    %c0_i32_0 = arith.constant 0 : i32
    %c0_i32_1 = arith.constant 0 : i32
    return %c0_i32, %c0_i32_0 : i32, i32
  }
  func.func @transform_4(%arg0: i32) -> (i32, i32) {
    %c0_i32 = arith.constant 0 : i32
    %c0_i32_0 = arith.constant 0 : i32
    %c0_i32_1 = arith.constant 0 : i32
    return %c0_i32, %c0_i32_0 : i32, i32
  }
  func.func @transform_5(%arg0: i32) -> (i32, i32) {
    %c0_i32 = arith.constant 0 : i32
    %c0_i32_0 = arith.constant 0 : i32
    %c0_i32_1 = arith.constant 0 : i32
    return %c0_i32, %c0_i32_0 : i32, i32
  }
  func.func @transform_6(%arg0: i32) -> (i32, i32) {
    %c0_i32 = arith.constant 0 : i32
    %c0_i32_0 = arith.constant 0 : i32
    return %arg0, %c0_i32 : i32, i32
  }
  func.func @transform_7(%arg0: i32) -> (i32, i32) {
    %c0_i32 = arith.constant 0 : i32
    %c0_i32_0 = arith.constant 0 : i32
    return %arg0, %c0_i32 : i32, i32
  }
}

module attributes {stable_mosaic.version = 11 : i64} {
  func.func @_mm_colbias_kernel(%arg0: i32, %arg1: i32, %arg2: i32, %arg3: memref<64x32xbf16, #tpu.memory_space<vmem>>, %arg4: memref<32x128xbf16, #tpu.memory_space<vmem>>, %arg5: memref<64x1xf32, #tpu.memory_space<vmem>>, %arg6: memref<64x128xbf16, #tpu.memory_space<vmem>>, %arg7: memref<64x128xf32, #tpu.memory_space<vmem>>) attributes {dimension_semantics = [#tpu.dimension_semantics<parallel>, #tpu.dimension_semantics<parallel>, #tpu.dimension_semantics<arbitrary>], iteration_bounds = array<i64: 1, 2, 1>, scalar_prefetch = 0 : i64, scratch_operands = 1 : i64, tpu.core_type = #tpu.core_type<tc>, window_params = [{transform_indices = @transform_0, window_bounds = array<i64: 64, 32>}, {transform_indices = @transform_1, window_bounds = array<i64: 32, 128>}, {transform_indices = @transform_2, window_bounds = array<i64: 64, 1>}, {transform_indices = @transform_3, window_bounds = array<i64: 64, 128>}]} {
    %c0_i32 = arith.constant 0 : i32
    %0 = arith.cmpi eq, %arg2, %c0_i32 : i32
    %1 = arith.extui %0 : i1 to i32
    %c0_i32_0 = arith.constant 0 : i32
    %2 = arith.cmpi ne, %1, %c0_i32_0 : i32
    scf.if %2 {
      %cst_10 = arith.constant 0.000000e+00 : f32
      %12 = vector.broadcast %cst_10 : f32 to vector<64x128xf32>
      %c0_11 = arith.constant 0 : index
      %c0_12 = arith.constant 0 : index
      %13 = vector.load %arg7[%c0_11, %c0_12] : memref<64x128xf32, #tpu.memory_space<vmem>>, vector<64x128xf32>
      tpu.vector_store %arg7[%c0_11, %c0_12], %12 {strides = array<i32>} : memref<64x128xf32, #tpu.memory_space<vmem>>, vector<64x128xf32>,
    } else {
    }
    %c0 = arith.constant 0 : index
    %c0_1 = arith.constant 0 : index
    %3 = vector.load %arg7[%c0, %c0_1] : memref<64x128xf32, #tpu.memory_space<vmem>>, vector<64x128xf32>
    %c0_2 = arith.constant 0 : index
    %c0_3 = arith.constant 0 : index
    %4 = vector.load %arg3[%c0_2, %c0_3] : memref<64x32xbf16, #tpu.memory_space<vmem>>, vector<64x32xbf16>
    %c0_4 = arith.constant 0 : index
    %c0_5 = arith.constant 0 : index
    %5 = vector.load %arg4[%c0_4, %c0_5] : memref<32x128xbf16, #tpu.memory_space<vmem>>, vector<32x128xbf16>
    %cst = arith.constant dense<0.000000e+00> : vector<64x128xf32>
    %6 = tpu.matmul %4, %5, %cst {dimension_numbers = #tpu.dot_dimension_numbers<[1], [0], [0], [1], [0, 0, 1, 1], [], []>} : vector<64x32xbf16>, vector<32x128xbf16>, vector<64x128xf32> -> vector<64x128xf32>
    %7 = arith.addf %3, %6 : vector<64x128xf32>
    %c0_6 = arith.constant 0 : index
    %c0_7 = arith.constant 0 : index
    %8 = vector.load %arg7[%c0_6, %c0_7] : memref<64x128xf32, #tpu.memory_space<vmem>>, vector<64x128xf32>
    tpu.vector_store %arg7[%c0_6, %c0_7], %7 {strides = array<i32>} : memref<64x128xf32, #tpu.memory_space<vmem>>, vector<64x128xf32>,
    %c0_i32_8 = arith.constant 0 : i32
    %9 = arith.cmpi eq, %arg2, %c0_i32_8 : i32
    %10 = arith.extui %9 : i1 to i32
    %c0_i32_9 = arith.constant 0 : i32
    %11 = arith.cmpi ne, %10, %c0_i32_9 : i32
    scf.if %11 {
      %c0_10 = arith.constant 0 : index
      %c0_11 = arith.constant 0 : index
      %12 = vector.load %arg7[%c0_10, %c0_11] : memref<64x128xf32, #tpu.memory_space<vmem>>, vector<64x128xf32>
      %c0_12 = arith.constant 0 : index
      %c0_13 = arith.constant 0 : index
      %13 = vector.load %arg5[%c0_12, %c0_13] : memref<64x1xf32, #tpu.memory_space<vmem>>, vector<64x1xf32>
      %14 = vector.broadcast %13 : vector<64x1xf32> to vector<64x128xf32>
      %15 = arith.addf %12, %14 : vector<64x128xf32>
      %16 = arith.truncf %15 : vector<64x128xf32> to vector<64x128xbf16>
      %c0_14 = arith.constant 0 : index
      %c0_15 = arith.constant 0 : index
      %17 = vector.load %arg6[%c0_14, %c0_15] : memref<64x128xbf16, #tpu.memory_space<vmem>>, vector<64x128xbf16>
      tpu.vector_store %arg6[%c0_14, %c0_15], %16 {strides = array<i32>} : memref<64x128xbf16, #tpu.memory_space<vmem>>, vector<64x128xbf16>,
    } else {
    }
    return
  }
  func.func @transform_0(%arg0: i32, %arg1: i32, %arg2: i32) -> (i32, i32) {
    %c0_i32 = arith.constant 0 : i32
    return %arg0, %arg2 : i32, i32
  }
  func.func @transform_1(%arg0: i32, %arg1: i32, %arg2: i32) -> (i32, i32) {
    %c0_i32 = arith.constant 0 : i32
    return %arg2, %arg1 : i32, i32
  }
  func.func @transform_2(%arg0: i32, %arg1: i32, %arg2: i32) -> (i32, i32) {
    %c0_i32 = arith.constant 0 : i32
    %c0_i32_0 = arith.constant 0 : i32
    return %arg0, %c0_i32 : i32, i32
  }
  func.func @transform_3(%arg0: i32, %arg1: i32, %arg2: i32) -> (i32, i32) {
    %c0_i32 = arith.constant 0 : i32
    return %arg0, %arg1 : i32, i32
  }
}

module attributes {stable_mosaic.version = 11 : i64} {
  func.func @_mm_rowbias_kernel(%arg0: i32, %arg1: i32, %arg2: i32, %arg3: memref<64x128xbf16, #tpu.memory_space<vmem>>, %arg4: memref<128x48xbf16, #tpu.memory_space<vmem>>, %arg5: memref<1x48xf32, #tpu.memory_space<vmem>>, %arg6: memref<64x48xf32, #tpu.memory_space<vmem>>, %arg7: memref<64x48xf32, #tpu.memory_space<vmem>>) attributes {dimension_semantics = [#tpu.dimension_semantics<parallel>, #tpu.dimension_semantics<parallel>, #tpu.dimension_semantics<arbitrary>], iteration_bounds = array<i64: 2, 1, 1>, scalar_prefetch = 0 : i64, scratch_operands = 1 : i64, tpu.core_type = #tpu.core_type<tc>, window_params = [{transform_indices = @transform_0, window_bounds = array<i64: 64, 128>}, {transform_indices = @transform_1, window_bounds = array<i64: 128, 48>}, {transform_indices = @transform_2, window_bounds = array<i64: 1, 48>}, {transform_indices = @transform_3, window_bounds = array<i64: 64, 48>}]} {
    %c0_i32 = arith.constant 0 : i32
    %0 = arith.cmpi eq, %arg2, %c0_i32 : i32
    %1 = arith.extui %0 : i1 to i32
    %c0_i32_0 = arith.constant 0 : i32
    %2 = arith.cmpi ne, %1, %c0_i32_0 : i32
    scf.if %2 {
      %cst_10 = arith.constant 0.000000e+00 : f32
      %12 = vector.broadcast %cst_10 : f32 to vector<64x48xf32>
      %c0_11 = arith.constant 0 : index
      %c0_12 = arith.constant 0 : index
      %13 = vector.load %arg7[%c0_11, %c0_12] : memref<64x48xf32, #tpu.memory_space<vmem>>, vector<64x48xf32>
      tpu.vector_store %arg7[%c0_11, %c0_12], %12 {strides = array<i32>} : memref<64x48xf32, #tpu.memory_space<vmem>>, vector<64x48xf32>,
    } else {
    }
    %c0 = arith.constant 0 : index
    %c0_1 = arith.constant 0 : index
    %3 = vector.load %arg7[%c0, %c0_1] : memref<64x48xf32, #tpu.memory_space<vmem>>, vector<64x48xf32>
    %c0_2 = arith.constant 0 : index
    %c0_3 = arith.constant 0 : index
    %4 = vector.load %arg3[%c0_2, %c0_3] : memref<64x128xbf16, #tpu.memory_space<vmem>>, vector<64x128xbf16>
    %c0_4 = arith.constant 0 : index
    %c0_5 = arith.constant 0 : index
    %5 = vector.load %arg4[%c0_4, %c0_5] : memref<128x48xbf16, #tpu.memory_space<vmem>>, vector<128x48xbf16>
    %cst = arith.constant dense<0.000000e+00> : vector<64x48xf32>
    %6 = tpu.matmul %4, %5, %cst {dimension_numbers = #tpu.dot_dimension_numbers<[1], [0], [0], [1], [0, 0, 1, 1], [], []>} : vector<64x128xbf16>, vector<128x48xbf16>, vector<64x48xf32> -> vector<64x48xf32>
    %7 = arith.addf %3, %6 : vector<64x48xf32>
    %c0_6 = arith.constant 0 : index
    %c0_7 = arith.constant 0 : index
    %8 = vector.load %arg7[%c0_6, %c0_7] : memref<64x48xf32, #tpu.memory_space<vmem>>, vector<64x48xf32>
    tpu.vector_store %arg7[%c0_6, %c0_7], %7 {strides = array<i32>} : memref<64x48xf32, #tpu.memory_space<vmem>>, vector<64x48xf32>,
    %c0_i32_8 = arith.constant 0 : i32
    %9 = arith.cmpi eq, %arg2, %c0_i32_8 : i32
    %10 = arith.extui %9 : i1 to i32
    %c0_i32_9 = arith.constant 0 : i32
    %11 = arith.cmpi ne, %10, %c0_i32_9 : i32
    scf.if %11 {
      %c0_10 = arith.constant 0 : index
      %c0_11 = arith.constant 0 : index
      %12 = vector.load %arg7[%c0_10, %c0_11] : memref<64x48xf32, #tpu.memory_space<vmem>>, vector<64x48xf32>
      %c0_12 = arith.constant 0 : index
      %c0_13 = arith.constant 0 : index
      %13 = vector.load %arg5[%c0_12, %c0_13] : memref<1x48xf32, #tpu.memory_space<vmem>>, vector<1x48xf32>
      %14 = vector.broadcast %13 : vector<1x48xf32> to vector<64x48xf32>
      %15 = arith.addf %12, %14 : vector<64x48xf32>
      %c0_14 = arith.constant 0 : index
      %c0_15 = arith.constant 0 : index
      %16 = vector.load %arg6[%c0_14, %c0_15] : memref<64x48xf32, #tpu.memory_space<vmem>>, vector<64x48xf32>
      tpu.vector_store %arg6[%c0_14, %c0_15], %15 {strides = array<i32>} : memref<64x48xf32, #tpu.memory_space<vmem>>, vector<64x48xf32>,
    } else {
    }
    return
  }
  func.func @transform_0(%arg0: i32, %arg1: i32, %arg2: i32) -> (i32, i32) {
    %c0_i32 = arith.constant 0 : i32
    return %arg0, %arg2 : i32, i32
  }
  func.func @transform_1(%arg0: i32, %arg1: i32, %arg2: i32) -> (i32, i32) {
    %c0_i32 = arith.constant 0 : i32
    return %arg2, %arg1 : i32, i32
  }
  func.func @transform_2(%arg0: i32, %arg1: i32, %arg2: i32) -> (i32, i32) {
    %c0_i32 = arith.constant 0 : i32
    %c0_i32_0 = arith.constant 0 : i32
    return %c0_i32, %arg1 : i32, i32
  }
  func.func @transform_3(%arg0: i32, %arg1: i32, %arg2: i32) -> (i32, i32) {
    %c0_i32 = arith.constant 0 : i32
    return %arg0, %arg1 : i32, i32
  }
}

</mosaic_0001>

<llo_original>
// kernel: lqvit_forward.5
$region0: #{lqvit_forward.5}
  #allocation0 [shape = 'u32[]', space=smem, size = 0x4, offset = 0x4, fixed_abs, tag = 'smem constant byte address 0x4 - core index']
  #allocation1 [shape = 'u32[144,128]{1,0:T(1,128)}', space=vmem, size = 0x12000, scoped, tag = 'internal scratch']
  #allocation2 [shape = 'f32[64,128]{1,0:T(8,128)}', space=vmem, size = 0x8000, scoped, tag = 'scratch operand']
  %s0 = inlined_call_operand.vmem [shape: f32[128,48], index: 0, kind: input, shape index: {}]
  %s1 = inlined_call_operand.vmem [shape: bf16[48,128], index: 1, kind: input, shape index: {}]
  %s2 = inlined_call_operand.vmem [shape: f32[1,128], index: 2, kind: input, shape index: {}]
  %s3 = inlined_call_operand.vmem [shape: bf16[128,128], index: 3, kind: output, shape index: {}]
  %s4 = sld [smem:[#allocation0]]
  $region53: #{lqvit_forward.5} parent=0
    _
  %s6 = ssub.s32 1, %s4
  %s7 = scalar_select 0, %s6, %s4
  loop: start=0, step=1, limit=4
  $region2: #{lqvit_forward.5} parent=0 // loop_pre_header
    _
  $region3: #{lqvit_forward.5} parent=0 // loop_header
    %s9 = sphi 0, %s13
    %p10 = scmp.ge.s32.totalorder %s9, 4
    %s16 = sphi 0, %s35
    %s17 = sphi 0, %s31
    %s18 = sphi 0, %s27
    %s19 = sphi 0, %s16
    %s20 = sphi 0, %s17
    %s21 = sphi 0, %s18
    %s22 = sphi 0, %s19
    %s23 = sphi 0, %s20
    %s24 = sphi 0, %s21
    %s40 = sphi 0, %s42
    %s43 = sphi 0, %s40
    %s44 = sphi 0, %s43
    %s60 = sphi 0, %s44
    %s68 = sphi 0, %s70
    %s71 = sphi 0, %s68
    %s72 = sphi 0, %s71
    %s88 = sphi 0, %s72
    %s94 = sphi 0, %s96
    %s97 = sphi 0, %s94
    %s98 = sphi 0, %s97
    %s114 = sphi 0, %s98
    %s122 = sphi 0, %s124
    %s125 = sphi 0, %s122
    %s126 = sphi 0, %s125
    %s142 = sphi 0, %s126
  $region4: #{lqvit_forward.5} parent=0 // loop_header_branch
    %12 = sbr.rel (%p10) target = $region8
  $region5: #{lqvit_forward.5} parent=0 // loop_body
    %s14 = ssub.s32 %s9, 1
    %s15 = ssub.s32 %s9, 2
    %s25 = sadd.s32 1, %s18
    %p26 = scmp.ge.s32.totalorder %s25, 1
    %s27 = scalar_select %p26, 0, %s25
    %s28 = sadd.s32 1, %s17
    %s29 = scalar_select %p26, %s28, %s17
    %p30 = scmp.ge.s32.totalorder %s29, 1
    %s31 = scalar_select %p30, 0, %s29
    %s32 = sadd.s32 1, %s16
    %s33 = scalar_select %p30, %s32, %s16
    %p34 = scmp.ge.s32.totalorder %s33, 2
    %s35 = scalar_select %p34, 0, %s33
    %s36 = ssub.s32 %s16, %s35
    %s37 = ssub.s32 %s18, %s27
    %s38 = sor.u32 %s36, %s37
    %p39 = scmp.eq.s32.totalorder %s38, 0
    %s41 = sadd.s32 %s40, 1
    %s42 = scalar_select %p39, %s40, %s41
    %p45 = pneg %p39
    %p46 = scmp.eq.s32.totalorder %s9, 1
    %p47 = por %p45, %p46
    %p48 = scmp.ne.s32.totalorder %s40, %s43
    %p49 = scmp.eq.s32.totalorder %s9, 0
    %p50 = por %p48, %p49
    %p51 = scmp.ne.s32.totalorder %s40, %s43
    %p52 = scmp.eq.s32.totalorder %s14, 1
    %p53 = por %p51, %p52
    %p54 = scmp.ne.s32.totalorder %s43, %s44
    %p55 = scmp.eq.s32.totalorder %s14, 0
    %p56 = por %p54, %p55
    %p57 = scmp.ne.s32.totalorder %s43, %s44
    %p58 = scmp.eq.s32.totalorder %s15, 1
    %p59 = por %p57, %p58
    %p61 = scmp.ne.s32.totalorder %s44, %s60
    %p62 = scmp.eq.s32.totalorder %s15, 0
    %p63 = por %p61, %p62
    %s64 = ssub.s32 %s18, %s27
    %s65 = ssub.s32 %s17, %s31
    %s66 = sor.u32 %s64, %s65
    %p67 = scmp.eq.s32.totalorder %s66, 0
    %s69 = sadd.s32 %s68, 1
    %s70 = scalar_select %p67, %s68, %s69
    %p73 = pneg %p67
    %p74 = scmp.eq.s32.totalorder %s9, 1
    %p75 = por %p73, %p74
    %p76 = scmp.ne.s32.totalorder %s68, %s71
    %p77 = scmp.eq.s32.totalorder %s9, 0
    %p78 = por %p76, %p77
    %p79 = scmp.ne.s32.totalorder %s68, %s71
    %p80 = scmp.eq.s32.totalorder %s14, 1
    %p81 = por %p79, %p80
    %p82 = scmp.ne.s32.totalorder %s71, %s72
    %p83 = scmp.eq.s32.totalorder %s14, 0
    %p84 = por %p82, %p83
    %p85 = scmp.ne.s32.totalorder %s71, %s72
    %p86 = scmp.eq.s32.totalorder %s15, 1
    %p87 = por %p85, %p86
    %p89 = scmp.ne.s32.totalorder %s72, %s88
    %p90 = scmp.eq.s32.totalorder %s15, 0
    %p91 = por %p89, %p90
    %s92 = ssub.s32 %s17, %s31
    %p93 = scmp.eq.s32.totalorder %s92, 0
    %s95 = sadd.s32 %s94, 1
    %s96 = scalar_select %p93, %s94, %s95
    %p99 = pneg %p93
    %p100 = scmp.eq.s32.totalorder %s9, 1
    %p101 = por %p99, %p100
    %p102 = scmp.ne.s32.totalorder %s94, %s97
    %p103 = scmp.eq.s32.totalorder %s9, 0
    %p104 = por %p102, %p103
    %p105 = scmp.ne.s32.totalorder %s94, %s97
    %p106 = scmp.eq.s32.totalorder %s14, 1
    %p107 = por %p105, %p106
    %p108 = scmp.ne.s32.totalorder %s97, %s98
    %p109 = scmp.eq.s32.totalorder %s14, 0
    %p110 = por %p108, %p109
    %p111 = scmp.ne.s32.totalorder %s97, %s98
    %p112 = scmp.eq.s32.totalorder %s15, 1
    %p113 = por %p111, %p112
    %p115 = scmp.ne.s32.totalorder %s98, %s114
    %p116 = scmp.eq.s32.totalorder %s15, 0
    %p117 = por %p115, %p116
    %s118 = ssub.s32 %s16, %s35
    %s119 = ssub.s32 %s17, %s31
    %s120 = sor.u32 %s118, %s119
    %p121 = scmp.eq.s32.totalorder %s120, 0
    %s123 = sadd.s32 %s122, 1
    %s124 = scalar_select %p121, %s122, %s123
    %p127 = pneg %p121
    %p128 = scmp.eq.s32.totalorder %s9, 1
    %p129 = por %p127, %p128
    %p130 = scmp.ne.s32.totalorder %s122, %s125
    %p131 = scmp.eq.s32.totalorder %s9, 0
    %p132 = por %p130, %p131
    %p133 = scmp.ne.s32.totalorder %s122, %s125
    %p134 = scmp.eq.s32.totalorder %s14, 1
    %p135 = por %p133, %p134
    %p136 = scmp.ne.s32.totalorder %s125, %s126
    %p137 = scmp.eq.s32.totalorder %s14, 0
    %p138 = por %p136, %p137
    %p139 = scmp.ne.s32.totalorder %s125, %s126
    %p140 = scmp.eq.s32.totalorder %s15, 1
    %p141 = por %p139, %p140
    %p143 = scmp.ne.s32.totalorder %s126, %s142
    %p144 = scmp.eq.s32.totalorder %s15, 0
    %p145 = por %p143, %p144
    %p146 = scmp.le.s32.totalorder 1, %s9
    %p147 = scmp.lt.s32.totalorder %s9, 3
    %p148 = pnand %p146, %p147
    %p149 = pneg %p148
    // Predicated region
    $region9: #{lqvit_forward.5} parent=5 // pred_check
      _
    $region10: #{lqvit_forward.5} parent=5 // pred_check_branch
      %151 = sbr.rel (%p148) target = $region12
    $region11: #{lqvit_forward.5} parent=5 // pred_region
      %s152 = ssub.s32 %s9, 1
      // Predicated region
      $region13: #{lqvit_forward.5} parent=11 // pred_check
        %p153 = pneg %p84
      $region14: #{lqvit_forward.5} parent=11 // pred_check_branch
        %155 = sbr.rel (%p153) target = $region16
      $region15: #{lqvit_forward.5} parent=11 // pred_region
        %s156 = smul.u32 6, %s21
        %p157 = scmp.lt.s32.totalorder %s156, 5
        %s158 = scalar_select %p157, %s156, 5
        %p159 = scmp.lt.s32.totalorder %s20, 0
        %s160 = scalar_select %p159, %s20, 0
        %s161 = sadd.s32 %s160, %s158
        %s162 = smul.addr %s161, 4
        %s163 = scalar_lea.vmem %s1, %s162
        %s164 = smul.u32 6, %s21
      $region16: #{lqvit_forward.5} parent=11 // pred_fallthru
        _
      // Predicated region
      $region17: #{lqvit_forward.5} parent=11 // pred_check
        %p165 = pneg %p110
      $region18: #{lqvit_forward.5} parent=11 // pred_check_branch
        %167 = sbr.rel (%p165) target = $region20
      $region19: #{lqvit_forward.5} parent=11 // pred_region
        %p168 = scmp.lt.s32.totalorder %s20, 0
        %s169 = scalar_select %p168, %s20, 0
        %s170 = scalar_lea.vmem %s2, %s169
      $region20: #{lqvit_forward.5} parent=11 // pred_fallthru
        _
    $region12: #{lqvit_forward.5} parent=5 // pred_fallthru
      _
    %p171 = scmp.lt.s32.totalorder %s9, 2
    // Predicated region
    $region21: #{lqvit_forward.5} parent=5 // pred_check
      %p172 = pneg %p171
    $region22: #{lqvit_forward.5} parent=5 // pred_check_branch
      %174 = sbr.rel (%p172) target = $region24
    $region23: #{lqvit_forward.5} parent=5 // pred_region
      // Predicated region
      $region25: #{lqvit_forward.5} parent=23 // pred_check
        %p175 = pneg %p50
      $region26: #{lqvit_forward.5} parent=23 // pred_check_branch
        %177 = sbr.rel (%p175) target = $region28
      $region27: #{lqvit_forward.5} parent=23 // pred_region
        %s178 = smul.u32 8, %s16
        %p179 = scmp.lt.s32.totalorder %s178, 15
        %s180 = scalar_select %p179, %s178, 15
        %p181 = scmp.lt.s32.totalorder %s18, 0
        %s182 = scalar_select %p181, %s18, 0
        %s183 = sadd.s32 %s182, %s180
        %s184 = smul.addr %s183, 8
        %s185 = scalar_lea.vmem %s0, %s184
        %s186 = smul.u32 8, %s16
      $region28: #{lqvit_forward.5} parent=23 // pred_fallthru
        _
    $region24: #{lqvit_forward.5} parent=5 // pred_fallthru
      _
    %p187 = scmp.le.s32.totalorder 1, %s9
    %p188 = scmp.lt.s32.totalorder %s9, 3
    %p189 = pnand %p187, %p188
    %p190 = pneg %p189
    // Predicated region
    $region29: #{lqvit_forward.5} parent=5 // pred_check
      _
    $region30: #{lqvit_forward.5} parent=5 // pred_check_branch
      %192 = sbr.rel (%p189) target = $region32
    $region31: #{lqvit_forward.5} parent=5 // pred_region
      %s193 = ssub.s32 %s9, 1
      %s194 = smul.u32 8, %s19
      %p195 = scmp.lt.s32.totalorder %s194, 15
      %s196 = scalar_select %p195, %s194, 15
      %p197 = scmp.lt.s32.totalorder %s21, 0
      %s198 = scalar_select %p197, %s21, 0
      %s199 = sadd.s32 %s198, %s196
      %s200 = smul.addr %s199, 8
      %s201 = scalar_lea.vmem %s0, %s200
      %p202 = pneg %p56
      %p203 = pneg %p53
      %s204 = smul.u32 6, %s21
      %p205 = scmp.lt.s32.totalorder %s204, 5
      %s206 = scalar_select %p205, %s204, 5
      %p207 = scmp.lt.s32.totalorder %s20, 0
      %s208 = scalar_select %p207, %s20, 0
      %s209 = sadd.s32 %s208, %s206
      %s210 = smul.addr %s209, 4
      %s211 = scalar_lea.vmem %s1, %s210
      %p212 = pneg %p84
      %p213 = pneg %p81
      %p214 = scmp.lt.s32.totalorder %s20, 0
      %s215 = scalar_select %p214, %s20, 0
      %s216 = scalar_lea.vmem %s2, %s215
      %p217 = pneg %p110
      %p218 = pneg %p107
      %p219 = pneg %p138
      %p220 = pneg %p135
      %s221 = smul.u32 8, %s19
      %p222 = scmp.lt.s32.totalorder %s221, 15
      %s223 = scalar_select %p222, %s221, 15
      %p224 = scmp.lt.s32.totalorder %s20, 0
      %s225 = scalar_select %p224, %s20, 0
      %s226 = sadd.s32 %s225, %s223
      %s227 = smul.addr %s226, 4
      %s228 = scalar_lea.vmem %s3, %s227
      %s229 = smul.u32 8, %s19
      %p230 = scmp.lt.s32.totalorder %s229, 15
      %s231 = scalar_select %p230, %s229, 15
      %p232 = scmp.lt.s32.totalorder %s21, 0
      %s233 = scalar_select %p232, %s21, 0
      %s234 = sadd.s32 %s233, %s231
      %s235 = smul.addr %s234, 8
      %s236 = scalar_lea.vmem %s0, %s235
      %s237 = smul.u32 8, %s19
      %s238 = smul.u32 6, %s21
      %p239 = scmp.lt.s32.totalorder %s238, 5
      %s240 = scalar_select %p239, %s238, 5
      %p241 = scmp.lt.s32.totalorder %s20, 0
      %s242 = scalar_select %p241, %s20, 0
      %s243 = sadd.s32 %s242, %s240
      %s244 = smul.addr %s243, 4
      %s245 = scalar_lea.vmem %s1, %s244
      %s246 = smul.u32 6, %s21
      %p247 = scmp.lt.s32.totalorder %s20, 0
      %s248 = scalar_select %p247, %s20, 0
      %s249 = scalar_lea.vmem %s2, %s248
      %s250 = smul.u32 8, %s19
      %p251 = scmp.lt.s32.totalorder %s250, 15
      %s252 = scalar_select %p251, %s250, 15
      %p253 = scmp.lt.s32.totalorder %s20, 0
      %s254 = scalar_select %p253, %s20, 0
      %s255 = sadd.s32 %s254, %s252
      %s256 = smul.addr %s255, 4
      %s257 = scalar_lea.vmem %s3, %s256
      %s258 = smul.u32 8, %s19
      %p260 = scmp.eq.s32.totalorder %s21, 0
      // Predicated region
      $region33: #{lqvit_forward.5} parent=31 // pred_check
        %p261 = pneg %p260
      $region34: #{lqvit_forward.5} parent=31 // pred_check_branch
        %263 = sbr.rel (%p261) target = $region36
      $region35: #{lqvit_forward.5} parent=31 // pred_region
        %264 = vst [vmem:[#allocation2] sm:$0xff] 0.0
        %265 = vst [vmem:[#allocation2 + $0x8] sm:$0xff] 0.0
        %266 = vst [vmem:[#allocation2 + $0x10] sm:$0xff] 0.0
        %267 = vst [vmem:[#allocation2 + $0x18] sm:$0xff] 0.0
        %268 = vst [vmem:[#allocation2 + $0x20] sm:$0xff] 0.0
        %269 = vst [vmem:[#allocation2 + $0x28] sm:$0xff] 0.0
        %270 = vst [vmem:[#allocation2 + $0x30] sm:$0xff] 0.0
        %271 = vst [vmem:[#allocation2 + $0x38] sm:$0xff] 0.0
      $region36: #{lqvit_forward.5} parent=31 // pred_fallthru
        _
      %v272 = vld [vmem:[#allocation2] sm:$0xff]
      %v273 = vld [vmem:[#allocation2 + $0x8] sm:$0xff]
      %v274 = vld [vmem:[#allocation2 + $0x10] sm:$0xff]
      %v275 = vld [vmem:[#allocation2 + $0x18] sm:$0xff]
      %v276 = vld [vmem:[#allocation2 + $0x20] sm:$0xff]
      %v277 = vld [vmem:[#allocation2 + $0x28] sm:$0xff]
      %v278 = vld [vmem:[#allocation2 + $0x30] sm:$0xff]
      %v279 = vld [vmem:[#allocation2 + $0x38] sm:$0xff]
      %v280 = vld [vmem:[%s236] sm:$0xff]
      %v281 = vld [vmem:[%s236 + $0x8] sm:$0xff]
      %v282 = vld [vmem:[%s236 + $0x10] sm:$0xff]
      %v283 = vld [vmem:[%s236 + $0x18] sm:$0xff]
      %v284 = vld [vmem:[%s236 + $0x20] sm:$0xff]
      %v285 = vld [vmem:[%s236 + $0x28] sm:$0xff]
      %v286 = vld [vmem:[%s236 + $0x30] sm:$0xff]
      %v287 = vld [vmem:[%s236 + $0x38] sm:$0xff]
      %v288 = vpack.c.bf16 %v281, %v280
      %v289 = vpack.c.bf16 %v283, %v282
      %v290 = vpack.c.bf16 %v285, %v284
      %v291 = vpack.c.bf16 %v287, %v286
      %v292 = vld [vmem:[%s245] sm:$0xf]
      %v293 = vld [vmem:[%s245 + $0x4] sm:$0xf]
      %v294 = vld [vmem:[%s245 + $0x8] sm:$0xf]
      %v295 = vld [vmem:[%s245 + $0xc] sm:$0xf]
      %v296 = vld [vmem:[%s245 + $0x10] sm:$0xf]
      %v297 = vld [vmem:[%s245 + $0x14] sm:$0xf]
      %v304 = vunpack.c.l.b16 %v292
      %v305 = vunpack.c.l.b16 %v293
      %v306 = vunpack.c.l.b16 %v294
      %v307 = vunpack.c.l.b16 %v295
      %v308 = vunpack.c.l.b16 %v296
      %v309 = vunpack.c.l.b16 %v297
      %v310 = vpack.c.b16 %v305, %v304
      %v311 = vpack.c.b16 %v307, %v306
      %v312 = vpack.c.b16 %v309, %v308
      %vm316 = vcmask 392192
      %v318 = vsel %vm316, %v288, 0
      %v321 = vsel %vm316, %v289, 0
      %v324 = vsel %vm316, %v290, 0
      %v327 = vsel %vm316, %v291, 0
      %329 = vmatprep.subr.bf16.mxu0 0
      %330 = vmatpush1.bf16.msra.mxu0 %v310
      %331 = vmatprep.subr.bf16.mxu0 0
      %332 = vmatpush1.bf16.msra.mxu0 %v311
      %333 = vmatprep.subr.bf16.mxu0 0
      %334 = vmatpush1.bf16.msra.mxu0 %v312
      %335 = vmatprep.subr.bf16.mxu0 0
      %336 = vmatpush1.bf16.msra.mxu0 0
      %337 = vmatprep.subr.bf16.mxu0 0
      %338 = vmatpush1.bf16.msra.mxu0 0
      %339 = vmatprep.subr.bf16.mxu0 0
      %340 = vmatpush1.bf16.msra.mxu0 0
      %341 = vmatprep.subr.bf16.mxu0 0
      %342 = vmatpush1.bf16.msra.mxu0 0
      %343 = vmatprep.subr.bf16.mxu0 0
      %344 = vmatpush1.bf16.msra.mxu0 0
      %345 = vmatprep.subr.bf16.mxu0 0
      %346 = vmatpush1.bf16.msra.mxu0 0
      %347 = vmatprep.subr.bf16.mxu0 0
      %348 = vmatpush1.bf16.msra.mxu0 0
      %349 = vmatprep.subr.bf16.mxu0 0
      %350 = vmatpush1.bf16.msra.mxu0 0
      %351 = vmatprep.subr.bf16.mxu0 0
      %352 = vmatpush1.bf16.msra.mxu0 0
      %353 = vmatprep.subr.bf16.mxu0 0
      %354 = vmatpush1.bf16.msra.mxu0 0
      %355 = vmatprep.subr.bf16.mxu0 0
      %356 = vmatpush1.bf16.msra.mxu0 0
      %357 = vmatprep.subr.bf16.mxu0 0
      %358 = vmatpush1.bf16.msra.mxu0 0
      %359 = vmatprep.subr.bf16.mxu0 0
      %360 = vmatpush1.bf16.msra.mxu0 0
      %361 = vmatprep.mubr.bf16.mxu0 0
      %362 = vmatmul.mubr.bf16.gmra.mrb[0].mxu0 %v318
      %v363 = vpop.f32.mrb[0].mxu0
      %v364 = vadd.f32 0.0, %v363
      %v365 = vpop.f32.mrb[0].mxu0
      %v366 = vpop.f32.mrb[0].mxu0
      %v367 = vadd.f32 0.0, %v366
      %v368 = vpop.f32.mrb[0].mxu0
      %369 = vmatprep.mubr.bf16.mxu0 0
      %370 = vmatmul.mubr.bf16.gmra.mrb[0].mxu0 %v321
      %v371 = vpop.f32.mrb[0].mxu0
      %v372 = vadd.f32 0.0, %v371
      %v373 = vpop.f32.mrb[0].mxu0
      %v374 = vpop.f32.mrb[0].mxu0
      %v375 = vadd.f32 0.0, %v374
      %v376 = vpop.f32.mrb[0].mxu0
      %377 = vmatprep.mubr.bf16.mxu0 0
      %378 = vmatmul.mubr.bf16.gmra.mrb[0].mxu0 %v324
      %v379 = vpop.f32.mrb[0].mxu0
      %v380 = vadd.f32 0.0, %v379
      %v381 = vpop.f32.mrb[0].mxu0
      %v382 = vpop.f32.mrb[0].mxu0
      %v383 = vadd.f32 0.0, %v382
      %v384 = vpop.f32.mrb[0].mxu0
      %385 = vmatprep.mubr.bf16.mxu0 0
      %386 = vmatmul.mubr.bf16.gmra.mrb[0].mxu0 %v327
      %v387 = vpop.f32.mrb[0].mxu0
      %v388 = vadd.f32 0.0, %v387
      %v389 = vpop.f32.mrb[0].mxu0
      %v390 = vpop.f32.mrb[0].mxu0
      %v391 = vadd.f32 0.0, %v390
      %v392 = vpop.f32.mrb[0].mxu0
      %393 = vdwg.mxu0
      %v394 = vadd.f32 %v272, %v364
      %v395 = vadd.f32 %v273, %v367
      %v396 = vadd.f32 %v274, %v372
      %v397 = vadd.f32 %v275, %v375
      %v398 = vadd.f32 %v276, %v380
      %v399 = vadd.f32 %v277, %v383
      %v400 = vadd.f32 %v278, %v388
      %v401 = vadd.f32 %v279, %v391
      %402 = vst [vmem:[#allocation2] sm:$0xff] %v394
      %403 = vst [vmem:[#allocation2 + $0x8] sm:$0xff] %v395
      %404 = vst [vmem:[#allocation2 + $0x10] sm:$0xff] %v396
      %405 = vst [vmem:[#allocation2 + $0x18] sm:$0xff] %v397
      %406 = vst [vmem:[#allocation2 + $0x20] sm:$0xff] %v398
      %407 = vst [vmem:[#allocation2 + $0x28] sm:$0xff] %v399
      %408 = vst [vmem:[#allocation2 + $0x30] sm:$0xff] %v400
      %409 = vst [vmem:[#allocation2 + $0x38] sm:$0xff] %v401
      // Predicated region
      $region37: #{lqvit_forward.5} parent=31 // pred_check
        %p410 = pneg %p260
      $region38: #{lqvit_forward.5} parent=31 // pred_check_branch
        %412 = sbr.rel (%p410) target = $region40
      $region39: #{lqvit_forward.5} parent=31 // pred_region
        %v413 = vld [vmem:[#allocation2] sm:$0xff]
        %v414 = vld [vmem:[#allocation2 + $0x8] sm:$0xff]
        %v415 = vld [vmem:[#allocation2 + $0x10] sm:$0xff]
        %v416 = vld [vmem:[#allocation2 + $0x18] sm:$0xff]
        %v417 = vld [vmem:[#allocation2 + $0x20] sm:$0xff]
        %v418 = vld [vmem:[#allocation2 + $0x28] sm:$0xff]
        %v419 = vld [vmem:[#allocation2 + $0x30] sm:$0xff]
        %v420 = vld [vmem:[#allocation2 + $0x38] sm:$0xff]
        %v421 = vld [vmem:[%s249] sm:$0x1]
        %v423 = vlaneseq
        %v424 = vshrl.u32 %v423, 7
        %v425 = vsub.s32 0, %v424
        %v426 = vrot.slane %v421, %v425
        %v428 = vadd.f32 %v413, %v426
        %v429 = vadd.f32 %v414, %v426
        %v430 = vadd.f32 %v415, %v426
        %v431 = vadd.f32 %v416, %v426
        %v432 = vadd.f32 %v417, %v426
        %v433 = vadd.f32 %v418, %v426
        %v434 = vadd.f32 %v419, %v426
        %v435 = vadd.f32 %v420, %v426
        %v436 = vpack.c.bf16 %v429, %v428
        %v437 = vpack.c.bf16 %v431, %v430
        %v438 = vpack.c.bf16 %v433, %v432
        %v439 = vpack.c.bf16 %v435, %v434
        %v444 = vunpack.c.l.b16 %v436
        %v445 = vunpack.c.h.b16 %v436
        %v446 = vunpack.c.l.b16 %v437
        %v447 = vunpack.c.h.b16 %v437
        %v448 = vunpack.c.l.b16 %v438
        %v449 = vunpack.c.h.b16 %v438
        %v450 = vunpack.c.l.b16 %v439
        %v451 = vunpack.c.h.b16 %v439
        %v452 = vpack.c.b16 %v444, %v444
        %v453 = vpack.c.b16 %v445, %v445
        %v454 = vpack.c.b16 %v446, %v446
        %v455 = vpack.c.b16 %v447, %v447
        %v456 = vpack.c.b16 %v448, %v448
        %v457 = vpack.c.b16 %v449, %v449
        %v458 = vpack.c.b16 %v450, %v450
        %v459 = vpack.c.b16 %v451, %v451
        %468 = vst [vmem:[%s257] sm:$0xf] %v452
        %469 = vst [vmem:[%s257 + $0x4] sm:$0xf] %v453
        %470 = vst [vmem:[%s257 + $0x8] sm:$0xf] %v454
        %471 = vst [vmem:[%s257 + $0xc] sm:$0xf] %v455
        %472 = vst [vmem:[%s257 + $0x10] sm:$0xf] %v456
        %473 = vst [vmem:[%s257 + $0x14] sm:$0xf] %v457
        %474 = vst [vmem:[%s257 + $0x18] sm:$0xf] %v458
        %475 = vst [vmem:[%s257 + $0x1c] sm:$0xf] %v459
      $region40: #{lqvit_forward.5} parent=31 // pred_fallthru
        _
      %s476 = smul.u32 8, %s19
      %p477 = scmp.lt.s32.totalorder %s476, 15
      %s478 = scalar_select %p477, %s476, 15
      %p479 = scmp.lt.s32.totalorder %s20, 0
      %s480 = scalar_select %p479, %s20, 0
      %s481 = sadd.s32 %s480, %s478
      %s482 = smul.addr %s481, 4
      %s483 = scalar_lea.vmem %s3, %s482
      // Predicated region
      $region41: #{lqvit_forward.5} parent=31 // pred_check
        %p484 = pneg %p135
      $region42: #{lqvit_forward.5} parent=31 // pred_check_branch
        %486 = sbr.rel (%p484) target = $region44
      $region43: #{lqvit_forward.5} parent=31 // pred_region
        %s487 = smul.u32 8, %s19
      $region44: #{lqvit_forward.5} parent=31 // pred_fallthru
        _
    $region32: #{lqvit_forward.5} parent=5 // pred_fallthru
      _
    %p488 = scmp.le.s32.totalorder 2, %s9
    // Predicated region
    $region45: #{lqvit_forward.5} parent=5 // pred_check
      %p489 = pneg %p488
    $region46: #{lqvit_forward.5} parent=5 // pred_check_branch
      %491 = sbr.rel (%p489) target = $region48
    $region47: #{lqvit_forward.5} parent=5 // pred_region
      %s492 = ssub.s32 %s9, 2
      // Predicated region
      $region49: #{lqvit_forward.5} parent=47 // pred_check
        %p493 = pneg %p141
      $region50: #{lqvit_forward.5} parent=47 // pred_check_branch
        %495 = sbr.rel (%p493) target = $region52
      $region51: #{lqvit_forward.5} parent=47 // pred_region
        %s496 = smul.u32 8, %s22
        %p497 = scmp.lt.s32.totalorder %s496, 15
        %s498 = scalar_select %p497, %s496, 15
        %p499 = scmp.lt.s32.totalorder %s23, 0
        %s500 = scalar_select %p499, %s23, 0
        %s501 = sadd.s32 %s500, %s498
        %s502 = smul.addr %s501, 4
        %s503 = scalar_lea.vmem %s3, %s502
      $region52: #{lqvit_forward.5} parent=47 // pred_fallthru
        _
    $region48: #{lqvit_forward.5} parent=5 // pred_fallthru
      _
  $region6: #{lqvit_forward.5} parent=0 // loop_footer
    %s13 = sadd.s32 1, %s9
  $region7: #{lqvit_forward.5} parent=0 // loop_footer_branch
    %8 = sbr.rel target = $region3
  $region8: #{lqvit_forward.5} parent=0 // loop_exit
    _

// kernel: lqvit_forward.6
$region0: #{lqvit_forward.6}
  #allocation0 [shape = 'u32[]', space=smem, size = 0x4, offset = 0x4, fixed_abs, tag = 'smem constant byte address 0x4 - core index']
  #allocation1 [shape = 'u32[144,128]{1,0:T(1,128)}', space=vmem, size = 0x12000, scoped, tag = 'internal scratch']
  #allocation2 [shape = 'f32[32,128]{1,0:T(8,128)}', space=vmem, size = 0x4000, scoped, tag = 'scratch operand']
  %s0 = inlined_call_operand.vmem [shape: bf16[32,64], index: 0, kind: input, shape index: {}]
  %s1 = inlined_call_operand.vmem [shape: bf16[64,256], index: 1, kind: input, shape index: {}]
  %s2 = inlined_call_operand.vmem [shape: f32[32,1], index: 2, kind: input, shape index: {}]
  %s3 = inlined_call_operand.vmem [shape: bf16[32,256], index: 3, kind: output, shape index: {}]
  %s4 = sld [smem:[#allocation0]]
  $region131: #{lqvit_forward.6} parent=0
    _
  %s6 = ssub.s32 1, %s4
  %s7 = scalar_select 0, %s6, %s4
  $region1: #{lqvit_forward.6} parent=0
    #allocation3 [shape = 'u8[32768]{0}', space=vmem, size = 0x8000, scoped, tag = 'input window, operand 1']
    #allocation4 [shape = 'u8[16384]{0}', space=vmem, size = 0x4000, scoped, tag = 'output window, operand 0']
    loop: start=0, step=1, limit=4
    $region2: #{lqvit_forward.6} parent=1 // loop_pre_header
      _
    $region3: #{lqvit_forward.6} parent=1 // loop_header
      %s9 = sphi 0, %s13
      %p10 = scmp.ge.s32.totalorder %s9, 4
      %s16 = sphi 0, %s35
      %s17 = sphi 0, %s31
      %s18 = sphi 0, %s27
      %s19 = sphi 0, %s16
      %s20 = sphi 0, %s17
      %s21 = sphi 0, %s18
      %s22 = sphi 0, %s19
      %s23 = sphi 0, %s20
      %s24 = sphi 0, %s21
      %s40 = sphi 0, %s42
      %s43 = sphi 0, %s40
      %s44 = sphi 0, %s43
      %s60 = sphi 0, %s44
      %s68 = sphi 0, %s70
      %s71 = sphi 0, %s68
      %s72 = sphi 0, %s71
      %s88 = sphi 0, %s72
      %s94 = sphi 0, %s96
      %s97 = sphi 0, %s94
      %s98 = sphi 0, %s97
      %s114 = sphi 0, %s98
      %s122 = sphi 0, %s124
      %s125 = sphi 0, %s122
      %s126 = sphi 0, %s125
      %s142 = sphi 0, %s126
    $region4: #{lqvit_forward.6} parent=1 // loop_header_branch
      %12 = sbr.rel (%p10) target = $region8
    $region5: #{lqvit_forward.6} parent=1 // loop_body
      %s14 = ssub.s32 %s9, 1
      %s15 = ssub.s32 %s9, 2
      %s25 = sadd.s32 1, %s18
      %p26 = scmp.ge.s32.totalorder %s25, 1
      %s27 = scalar_select %p26, 0, %s25
      %s28 = sadd.s32 1, %s17
      %s29 = scalar_select %p26, %s28, %s17
      %p30 = scmp.ge.s32.totalorder %s29, 2
      %s31 = scalar_select %p30, 0, %s29
      %s32 = sadd.s32 1, %s16
      %s33 = scalar_select %p30, %s32, %s16
      %p34 = scmp.ge.s32.totalorder %s33, 1
      %s35 = scalar_select %p34, 0, %s33
      %s36 = ssub.s32 %s16, %s35
      %s37 = ssub.s32 %s18, %s27
      %s38 = sor.u32 %s36, %s37
      %p39 = scmp.eq.s32.totalorder %s38, 0
      %s41 = sadd.s32 %s40, 1
      %s42 = scalar_select %p39, %s40, %s41
      %p45 = pneg %p39
      %p46 = scmp.eq.s32.totalorder %s9, 1
      %p47 = por %p45, %p46
      %p48 = scmp.ne.s32.totalorder %s40, %s43
      %p49 = scmp.eq.s32.totalorder %s9, 0
      %p50 = por %p48, %p49
      %p51 = scmp.ne.s32.totalorder %s40, %s43
      %p52 = scmp.eq.s32.totalorder %s14, 1
      %p53 = por %p51, %p52
      %p54 = scmp.ne.s32.totalorder %s43, %s44
      %p55 = scmp.eq.s32.totalorder %s14, 0
      %p56 = por %p54, %p55
      %p57 = scmp.ne.s32.totalorder %s43, %s44
      %p58 = scmp.eq.s32.totalorder %s15, 1
      %p59 = por %p57, %p58
      %p61 = scmp.ne.s32.totalorder %s44, %s60
      %p62 = scmp.eq.s32.totalorder %s15, 0
      %p63 = por %p61, %p62
      %s64 = ssub.s32 %s18, %s27
      %s65 = ssub.s32 %s17, %s31
      %s66 = sor.u32 %s64, %s65
      %p67 = scmp.eq.s32.totalorder %s66, 0
      %s69 = sadd.s32 %s68, 1
      %s70 = scalar_select %p67, %s68, %s69
      %p73 = pneg %p67
      %p74 = scmp.eq.s32.totalorder %s9, 1
      %p75 = por %p73, %p74
      %p76 = scmp.ne.s32.totalorder %s68, %s71
      %p77 = scmp.eq.s32.totalorder %s9, 0
      %p78 = por %p76, %p77
      %p79 = scmp.ne.s32.totalorder %s68, %s71
      %p80 = scmp.eq.s32.totalorder %s14, 1
      %p81 = por %p79, %p80
      %p82 = scmp.ne.s32.totalorder %s71, %s72
      %p83 = scmp.eq.s32.totalorder %s14, 0
      %p84 = por %p82, %p83
      %p85 = scmp.ne.s32.totalorder %s71, %s72
      %p86 = scmp.eq.s32.totalorder %s15, 1
      %p87 = por %p85, %p86
      %p89 = scmp.ne.s32.totalorder %s72, %s88
      %p90 = scmp.eq.s32.totalorder %s15, 0
      %p91 = por %p89, %p90
      %s92 = ssub.s32 %s16, %s35
      %p93 = scmp.eq.s32.totalorder %s92, 0
      %s95 = sadd.s32 %s94, 1
      %s96 = scalar_select %p93, %s94, %s95
      %p99 = pneg %p93
      %p100 = scmp.eq.s32.totalorder %s9, 1
      %p101 = por %p99, %p100
      %p102 = scmp.ne.s32.totalorder %s94, %s97
      %p103 = scmp.eq.s32.totalorder %s9, 0
      %p104 = por %p102, %p103
      %p105 = scmp.ne.s32.totalorder %s94, %s97
      %p106 = scmp.eq.s32.totalorder %s14, 1
      %p107 = por %p105, %p106
      %p108 = scmp.ne.s32.totalorder %s97, %s98
      %p109 = scmp.eq.s32.totalorder %s14, 0
      %p110 = por %p108, %p109
      %p111 = scmp.ne.s32.totalorder %s97, %s98
      %p112 = scmp.eq.s32.totalorder %s15, 1
      %p113 = por %p111, %p112
      %p115 = scmp.ne.s32.totalorder %s98, %s114
      %p116 = scmp.eq.s32.totalorder %s15, 0
      %p117 = por %p115, %p116
      %s118 = ssub.s32 %s16, %s35
      %s119 = ssub.s32 %s17, %s31
      %s120 = sor.u32 %s118, %s119
      %p121 = scmp.eq.s32.totalorder %s120, 0
      %s123 = sadd.s32 %s122, 1
      %s124 = scalar_select %p121, %s122, %s123
      %p127 = pneg %p121
      %p128 = scmp.eq.s32.totalorder %s9, 1
      %p129 = por %p127, %p128
      %p130 = scmp.ne.s32.totalorder %s122, %s125
      %p131 = scmp.eq.s32.totalorder %s9, 0
      %p132 = por %p130, %p131
      %p133 = scmp.ne.s32.totalorder %s122, %s125
      %p134 = scmp.eq.s32.totalorder %s14, 1
      %p135 = por %p133, %p134
      %p136 = scmp.ne.s32.totalorder %s125, %s126
      %p137 = scmp.eq.s32.totalorder %s14, 0
      %p138 = por %p136, %p137
      %p139 = scmp.ne.s32.totalorder %s125, %s126
      %p140 = scmp.eq.s32.totalorder %s15, 1
      %p141 = por %p139, %p140
      %p143 = scmp.ne.s32.totalorder %s126, %s142
      %p144 = scmp.eq.s32.totalorder %s15, 0
      %p145 = por %p143, %p144
      %p146 = scmp.le.s32.totalorder 1, %s9
      %p147 = scmp.lt.s32.totalorder %s9, 3
      %p148 = pnand %p146, %p147
      %p149 = pneg %p148
      // Predicated region
      $region9: #{lqvit_forward.6} parent=5 // pred_check
        _
      $region10: #{lqvit_forward.6} parent=5 // pred_check_branch
        %151 = sbr.rel (%p148) target = $region12
      $region11: #{lqvit_forward.6} parent=5 // pred_region
        %s152 = ssub.s32 %s9, 1
        // Predicated region
        $region13: #{lqvit_forward.6} parent=11 // pred_check
          %p153 = pneg %p56
        $region14: #{lqvit_forward.6} parent=11 // pred_check_branch
          %155 = sbr.rel (%p153) target = $region16
        $region15: #{lqvit_forward.6} parent=11 // pred_region
          %s156 = smul.u32 4, %s19
          %p157 = scmp.lt.s32.totalorder %s156, 3
          %s158 = scalar_select %p157, %s156, 3
          %p159 = scmp.lt.s32.totalorder %s21, 0
          %s160 = scalar_select %p159, %s21, 0
          %s161 = sadd.s32 %s160, %s158
          %s162 = smul.addr %s161, 4
          %s163 = scalar_lea.vmem %s0, %s162
          %s164 = smul.u32 4, %s19
        $region16: #{lqvit_forward.6} parent=11 // pred_fallthru
          _
        // Predicated region
        $region17: #{lqvit_forward.6} parent=11 // pred_check
          %p165 = pneg %p110
        $region18: #{lqvit_forward.6} parent=11 // pred_check_branch
          %167 = sbr.rel (%p165) target = $region20
        $region19: #{lqvit_forward.6} parent=11 // pred_region
          %s168 = smul.u32 4, %s19
          %p169 = scmp.lt.s32.totalorder %s168, 3
          %s170 = scalar_select %p169, %s168, 3
          %s171 = smul.addr %s170, 8
          %s172 = scalar_lea.vmem %s2, %s171
          %s173 = smul.u32 4, %s19
        $region20: #{lqvit_forward.6} parent=11 // pred_fallthru
          _
      $region12: #{lqvit_forward.6} parent=5 // pred_fallthru
        _
      %p174 = scmp.lt.s32.totalorder %s9, 2
      // Predicated region
      $region21: #{lqvit_forward.6} parent=5 // pred_check
        %p175 = pneg %p174
      $region22: #{lqvit_forward.6} parent=5 // pred_check_branch
        %177 = sbr.rel (%p175) target = $region24
      $region23: #{lqvit_forward.6} parent=5 // pred_region
        // Predicated region
        $region25: #{lqvit_forward.6} parent=23 // pred_check
          %p178 = pneg %p78
        $region26: #{lqvit_forward.6} parent=23 // pred_check_branch
          %180 = sbr.rel (%p178) target = $region28
        $region27: #{lqvit_forward.6} parent=23 // pred_region
          %s181 = sand.u32 %s68, 1
          %s182 = sand.u32 %s68, 1
          %s183 = smul.addr %s182, 32
          %s184 = scalar_lea.vmem [#allocation3], %s183
          %s185 = smul.u32 8, %s18
          %s186 = smul.addr %s185, 2
          %s187 = sadd.s32 %s17, %s186
          %s188 = smul.addr %s187, 4
          %s189 = scalar_lea.vmem %s1, %s188
          // Predicated region
          $region29: #{lqvit_forward.6} parent=27 // pred_check
            _
          $region30: #{lqvit_forward.6} parent=27 // pred_check_branch
            %191 = sbr.rel (0) target = $region32
          $region31: #{lqvit_forward.6} parent=27 // pred_region
            // Predicated region
            $region33: #{lqvit_forward.6} parent=31 // pred_check
              _
            $region34: #{lqvit_forward.6} parent=31 // pred_check_branch
              %193 = sbr.rel target = $region36
            $region35: #{lqvit_forward.6} parent=31 // pred_region
              // Predicated region
              $region48: #{lqvit_forward.6} parent=35 // pred_check
                _
              $region49: #{lqvit_forward.6} parent=35 // pred_check_branch
                %222 = sbr.rel (0) target = $region51
              $region50: #{lqvit_forward.6} parent=35 // pred_region
                loop: start=0, step=1, limit=1
                $region52: #{lqvit_forward.6} parent=50 // loop_pre_header
                  _
                $region53: #{lqvit_forward.6} parent=50 // loop_header
                  %s224 = sphi 0, %s228
                  %p225 = scmp.ge.s32.totalorder %s224, 1
                  %s229 = sphi %s189, %s189
                  %s230 = sphi %s184, %s184
                $region54: #{lqvit_forward.6} parent=50 // loop_header_branch
                  %227 = sbr.rel (%p225) target = $region58
                $region55: #{lqvit_forward.6} parent=50 // loop_body
                  _
                $region56: #{lqvit_forward.6} parent=50 // loop_footer
                  %s228 = sadd.s32 1, %s224
                $region57: #{lqvit_forward.6} parent=50 // loop_footer_branch
                  %223 = sbr.rel target = $region53
                $region58: #{lqvit_forward.6} parent=50 // loop_exit
                  _
                loop: start=0, step=1, limit=1
                $region59: #{lqvit_forward.6} parent=50 // loop_pre_header
                  _
                $region60: #{lqvit_forward.6} parent=50 // loop_header
                  %s233 = sphi 0, %s237
                  %p234 = scmp.ge.s32.totalorder %s233, 1
                  %s238 = sphi %s189, %s189
                  %s239 = sphi %s184, %s184
                $region61: #{lqvit_forward.6} parent=50 // loop_header_branch
                  %236 = sbr.rel (%p234) target = $region65
                $region62: #{lqvit_forward.6} parent=50 // loop_body
                  %v240 = vld [vmem:[%s238] sm:$0xf]
                  %241 = vst [vmem:[%s239] sm:$0xf] %v240
                  %v242 = vld [vmem:[%s238 + $0x8] sm:$0xf]
                  %243 = vst [vmem:[%s239 + $0x4] sm:$0xf] %v242
                  %v244 = vld [vmem:[%s238 + $0x10] sm:$0xf]
                  %245 = vst [vmem:[%s239 + $0x8] sm:$0xf] %v244
                  %v246 = vld [vmem:[%s238 + $0x18] sm:$0xf]
                  %247 = vst [vmem:[%s239 + $0xc] sm:$0xf] %v246
                  %v248 = vld [vmem:[%s238 + $0x20] sm:$0xf]
                  %249 = vst [vmem:[%s239 + $0x10] sm:$0xf] %v248
                  %v250 = vld [vmem:[%s238 + $0x28] sm:$0xf]
                  %251 = vst [vmem:[%s239 + $0x14] sm:$0xf] %v250
                  %v252 = vld [vmem:[%s238 + $0x30] sm:$0xf]
                  %253 = vst [vmem:[%s239 + $0x18] sm:$0xf] %v252
                  %v254 = vld [vmem:[%s238 + $0x38] sm:$0xf]
                  %255 = vst [vmem:[%s239 + $0x1c] sm:$0xf] %v254
                $region63: #{lqvit_forward.6} parent=50 // loop_footer
                  %s237 = sadd.s32 1, %s233
                $region64: #{lqvit_forward.6} parent=50 // loop_footer_branch
                  %232 = sbr.rel target = $region60
                $region65: #{lqvit_forward.6} parent=50 // loop_exit
                  _
              $region51: #{lqvit_forward.6} parent=35 // pred_fallthru
                _
            $region36: #{lqvit_forward.6} parent=31 // pred_fallthru
              _
            // Predicated region
            $region37: #{lqvit_forward.6} parent=31 // pred_check
              _
            $region38: #{lqvit_forward.6} parent=31 // pred_check_branch
              %195 = sbr.rel (0) target = $region40
            $region39: #{lqvit_forward.6} parent=31 // pred_region
              loop: start=0, step=1, limit=1
              $region41: #{lqvit_forward.6} parent=39 // loop_pre_header
                _
              $region42: #{lqvit_forward.6} parent=39 // loop_header
                %s198 = sphi 0, %s202
                %p199 = scmp.ge.s32.totalorder %s198, 1
                %s203 = sphi %s189, %s189
                %s204 = sphi %s184, %s184
              $region43: #{lqvit_forward.6} parent=39 // loop_header_branch
                %201 = sbr.rel (%p199) target = $region47
              $region44: #{lqvit_forward.6} parent=39 // loop_body
                %v205 = vld [vmem:[%s203] sm:$0xf]
                %206 = vst [vmem:[%s204] sm:$0xf] %v205
                %v207 = vld [vmem:[%s203 + $0x8] sm:$0xf]
                %208 = vst [vmem:[%s204 + $0x4] sm:$0xf] %v207
                %v209 = vld [vmem:[%s203 + $0x10] sm:$0xf]
                %210 = vst [vmem:[%s204 + $0x8] sm:$0xf] %v209
                %v211 = vld [vmem:[%s203 + $0x18] sm:$0xf]
                %212 = vst [vmem:[%s204 + $0xc] sm:$0xf] %v211
                %v213 = vld [vmem:[%s203 + $0x20] sm:$0xf]
                %214 = vst [vmem:[%s204 + $0x10] sm:$0xf] %v213
                %v215 = vld [vmem:[%s203 + $0x28] sm:$0xf]
                %216 = vst [vmem:[%s204 + $0x14] sm:$0xf] %v215
                %v217 = vld [vmem:[%s203 + $0x30] sm:$0xf]
                %218 = vst [vmem:[%s204 + $0x18] sm:$0xf] %v217
                %v219 = vld [vmem:[%s203 + $0x38] sm:$0xf]
                %220 = vst [vmem:[%s204 + $0x1c] sm:$0xf] %v219
              $region45: #{lqvit_forward.6} parent=39 // loop_footer
                %s202 = sadd.s32 1, %s198
              $region46: #{lqvit_forward.6} parent=39 // loop_footer_branch
                %197 = sbr.rel target = $region42
              $region47: #{lqvit_forward.6} parent=39 // loop_exit
                _
            $region40: #{lqvit_forward.6} parent=31 // pred_fallthru
              _
          $region32: #{lqvit_forward.6} parent=27 // pred_fallthru
            _
          %256 = vnop
        $region28: #{lqvit_forward.6} parent=23 // pred_fallthru
          _
      $region24: #{lqvit_forward.6} parent=5 // pred_fallthru
        _
      %p257 = scmp.le.s32.totalorder 1, %s9
      %p258 = scmp.lt.s32.totalorder %s9, 3
      %p259 = pnand %p257, %p258
      %p260 = pneg %p259
      // Predicated region
      $region66: #{lqvit_forward.6} parent=5 // pred_check
        _
      $region67: #{lqvit_forward.6} parent=5 // pred_check_branch
        %262 = sbr.rel (%p259) target = $region69
      $region68: #{lqvit_forward.6} parent=5 // pred_region
        %s263 = ssub.s32 %s9, 1
        %s264 = sand.u32 %s71, 1
        %s265 = sand.u32 %s71, 1
        %s266 = smul.addr %s265, 32
        %s267 = scalar_lea.vmem [#allocation3], %s266
        // Predicated region
        $region70: #{lqvit_forward.6} parent=68 // pred_check
          %p268 = pneg %p84
        $region71: #{lqvit_forward.6} parent=68 // pred_check_branch
          %270 = sbr.rel (%p268) target = $region73
        $region72: #{lqvit_forward.6} parent=68 // pred_region
          _
        $region73: #{lqvit_forward.6} parent=68 // pred_fallthru
          _
        %s271 = smul.u32 4, %s19
        %p272 = scmp.lt.s32.totalorder %s271, 3
        %s273 = scalar_select %p272, %s271, 3
        %p274 = scmp.lt.s32.totalorder %s21, 0
        %s275 = scalar_select %p274, %s21, 0
        %s276 = sadd.s32 %s275, %s273
        %s277 = smul.addr %s276, 4
        %s278 = scalar_lea.vmem %s0, %s277
        %p279 = pneg %p56
        %p280 = pneg %p53
        %s281 = sand.u32 %s71, 1
        %s282 = sand.u32 %s71, 1
        %s283 = smul.addr %s282, 32
        %s284 = scalar_lea.vmem [#allocation3], %s283
        %p285 = pneg %p84
        %p286 = pneg %p81
        %s287 = smul.u32 4, %s19
        %p288 = scmp.lt.s32.totalorder %s287, 3
        %s289 = scalar_select %p288, %s287, 3
        %s290 = smul.addr %s289, 8
        %s291 = scalar_lea.vmem %s2, %s290
        %p292 = pneg %p110
        %p293 = pneg %p107
        %p294 = pneg %p138
        %p295 = pneg %p135
        %s296 = sand.u32 %s125, 1
        %s297 = sand.u32 %s125, 1
        %s298 = smul.addr %s297, 16
        %s299 = scalar_lea.vmem [#allocation4], %s298
        %s300 = smul.u32 4, %s19
        %p301 = scmp.lt.s32.totalorder %s300, 3
        %s302 = scalar_select %p301, %s300, 3
        %p303 = scmp.lt.s32.totalorder %s21, 0
        %s304 = scalar_select %p303, %s21, 0
        %s305 = sadd.s32 %s304, %s302
        %s306 = smul.addr %s305, 4
        %s307 = scalar_lea.vmem %s0, %s306
        %s308 = smul.u32 4, %s19
        %s309 = smul.u32 8, %s21
        %s310 = smul.u32 4, %s19
        %p311 = scmp.lt.s32.totalorder %s310, 3
        %s312 = scalar_select %p311, %s310, 3
        %s313 = smul.addr %s312, 8
        %s314 = scalar_lea.vmem %s2, %s313
        %s315 = smul.u32 4, %s19
        %s316 = smul.u32 4, %s19
        %p318 = scmp.eq.s32.totalorder %s21, 0
        // Predicated region
        $region74: #{lqvit_forward.6} parent=68 // pred_check
          %p319 = pneg %p318
        $region75: #{lqvit_forward.6} parent=68 // pred_check_branch
          %321 = sbr.rel (%p319) target = $region77
        $region76: #{lqvit_forward.6} parent=68 // pred_region
          %322 = vst [vmem:[#allocation2] sm:$0xff] 0.0
          %323 = vst [vmem:[#allocation2 + $0x8] sm:$0xff] 0.0
          %324 = vst [vmem:[#allocation2 + $0x10] sm:$0xff] 0.0
          %325 = vst [vmem:[#allocation2 + $0x18] sm:$0xff] 0.0
        $region77: #{lqvit_forward.6} parent=68 // pred_fallthru
          _
        %v326 = vld [vmem:[#allocation2] sm:$0xff]
        %v327 = vld [vmem:[#allocation2 + $0x8] sm:$0xff]
        %v328 = vld [vmem:[#allocation2 + $0x10] sm:$0xff]
        %v329 = vld [vmem:[#allocation2 + $0x18] sm:$0xff]
        %v330 = vld [vmem:[%s307] sm:$0xf]
        %v331 = vld [vmem:[%s307 + $0x4] sm:$0xf]
        %v332 = vld [vmem:[%s307 + $0x8] sm:$0xf]
        %v333 = vld [vmem:[%s307 + $0xc] sm:$0xf]
        %v334 = vld [vmem:[%s267] sm:$0xf]
        %v335 = vld [vmem:[%s267 + $0x4] sm:$0xf]
        %v336 = vld [vmem:[%s267 + $0x8] sm:$0xf]
        %v337 = vld [vmem:[%s267 + $0xc] sm:$0xf]
        %v338 = vld [vmem:[%s267 + $0x10] sm:$0xf]
        %v339 = vld [vmem:[%s267 + $0x14] sm:$0xf]
        %v340 = vld [vmem:[%s267 + $0x18] sm:$0xf]
        %v341 = vld [vmem:[%s267 + $0x1c] sm:$0xf]
        %v346 = vunpack.c.l.b16 %v330
        %v347 = vunpack.c.l.b16 %v331
        %v348 = vunpack.c.l.b16 %v332
        %v349 = vunpack.c.l.b16 %v333
        %v350 = vpack.c.b16 %v347, %v346
        %v351 = vpack.c.b16 %v349, %v348
        %v360 = vunpack.c.l.b16 %v334
        %v361 = vunpack.c.l.b16 %v335
        %v362 = vunpack.c.l.b16 %v336
        %v363 = vunpack.c.l.b16 %v337
        %v364 = vunpack.c.l.b16 %v338
        %v365 = vunpack.c.l.b16 %v339
        %v366 = vunpack.c.l.b16 %v340
        %v367 = vunpack.c.l.b16 %v341
        %v368 = vpack.c.b16 %v361, %v360
        %v369 = vpack.c.b16 %v363, %v362
        %v370 = vpack.c.b16 %v365, %v364
        %v371 = vpack.c.b16 %v367, %v366
        %vm376 = vcmask 523264
        %v378 = vsel %vm376, %v350, 0
        %v381 = vsel %vm376, %v351, 0
        %383 = vmatprep.subr.bf16.mxu0 0
        %384 = vmatpush1.bf16.msra.mxu0 %v368
        %385 = vmatprep.subr.bf16.mxu0 0
        %386 = vmatpush1.bf16.msra.mxu0 %v369
        %387 = vmatprep.subr.bf16.mxu0 0
        %388 = vmatpush1.bf16.msra.mxu0 %v370
        %389 = vmatprep.subr.bf16.mxu0 0
        %390 = vmatpush1.bf16.msra.mxu0 %v371
        %391 = vmatprep.subr.bf16.mxu0 0
        %392 = vmatpush1.bf16.msra.mxu0 0
        %393 = vmatprep.subr.bf16.mxu0 0
        %394 = vmatpush1.bf16.msra.mxu0 0
        %395 = vmatprep.subr.bf16.mxu0 0
        %396 = vmatpush1.bf16.msra.mxu0 0
        %397 = vmatprep.subr.bf16.mxu0 0
        %398 = vmatpush1.bf16.msra.mxu0 0
        %399 = vmatprep.subr.bf16.mxu0 0
        %400 = vmatpush1.bf16.msra.mxu0 0
        %401 = vmatprep.subr.bf16.mxu0 0
        %402 = vmatpush1.bf16.msra.mxu0 0
        %403 = vmatprep.subr.bf16.mxu0 0
        %404 = vmatpush1.bf16.msra.mxu0 0
        %405 = vmatprep.subr.bf16.mxu0 0
        %406 = vmatpush1.bf16.msra.mxu0 0
        %407 = vmatprep.subr.bf16.mxu0 0
        %408 = vmatpush1.bf16.msra.mxu0 0
        %409 = vmatprep.subr.bf16.mxu0 0
        %410 = vmatpush1.bf16.msra.mxu0 0
        %411 = vmatprep.subr.bf16.mxu0 0
        %412 = vmatpush1.bf16.msra.mxu0 0
        %413 = vmatprep.subr.bf16.mxu0 0
        %414 = vmatpush1.bf16.msra.mxu0 0
        %415 = vmatprep.mubr.bf16.mxu0 0
        %416 = vmatmul.mubr.bf16.gmra.mrb[0].mxu0 %v378
        %v417 = vpop.f32.mrb[0].mxu0
        %v418 = vadd.f32 0.0, %v417
        %v419 = vpop.f32.mrb[0].mxu0
        %v420 = vpop.f32.mrb[0].mxu0
        %v421 = vadd.f32 0.0, %v420
        %v422 = vpop.f32.mrb[0].mxu0
        %423 = vmatprep.mubr.bf16.mxu0 0
        %424 = vmatmul.mubr.bf16.gmra.mrb[0].mxu0 %v381
        %v425 = vpop.f32.mrb[0].mxu0
        %v426 = vadd.f32 0.0, %v425
        %v427 = vpop.f32.mrb[0].mxu0
        %v428 = vpop.f32.mrb[0].mxu0
        %v429 = vadd.f32 0.0, %v428
        %v430 = vpop.f32.mrb[0].mxu0
        %431 = vdwg.mxu0
        %v432 = vadd.f32 %v326, %v418
        %v433 = vadd.f32 %v327, %v421
        %v434 = vadd.f32 %v328, %v426
        %v435 = vadd.f32 %v329, %v429
        %436 = vst [vmem:[#allocation2] sm:$0xff] %v432
        %437 = vst [vmem:[#allocation2 + $0x8] sm:$0xff] %v433
        %438 = vst [vmem:[#allocation2 + $0x10] sm:$0xff] %v434
        %439 = vst [vmem:[#allocation2 + $0x18] sm:$0xff] %v435
        // Predicated region
        $region78: #{lqvit_forward.6} parent=68 // pred_check
          %p440 = pneg %p318
        $region79: #{lqvit_forward.6} parent=68 // pred_check_branch
          %442 = sbr.rel (%p440) target = $region81
        $region80: #{lqvit_forward.6} parent=68 // pred_region
          %v443 = vld [vmem:[#allocation2] sm:$0xff]
          %v444 = vld [vmem:[#allocation2 + $0x8] sm:$0xff]
          %v445 = vld [vmem:[#allocation2 + $0x10] sm:$0xff]
          %v446 = vld [vmem:[#allocation2 + $0x18] sm:$0xff]
          %v447 = vld [vmem:[%s314] sm:$0xff]
          %v448 = vld [vmem:[%s314 + $0x8] sm:$0xff]
          %v449 = vld [vmem:[%s314 + $0x10] sm:$0xff]
          %v450 = vld [vmem:[%s314 + $0x18] sm:$0xff]
          %452 = vset.pattern.permute.xlu0 0
          %453 = vperm.xlu0 %452, %v447
          %v454 = vpop.permute.xlu0 %453
          %457 = vset.pattern.permute.xlu0 0
          %458 = vperm.xlu0 %457, %v448
          %v459 = vpop.permute.xlu0 %458
          %462 = vset.pattern.permute.xlu0 0
          %463 = vperm.xlu0 %462, %v449
          %v464 = vpop.permute.xlu0 %463
          %467 = vset.pattern.permute.xlu0 0
          %468 = vperm.xlu0 %467, %v450
          %v469 = vpop.permute.xlu0 %468
          %v471 = vadd.f32 %v443, %v454
          %v472 = vadd.f32 %v444, %v459
          %v473 = vadd.f32 %v445, %v464
          %v474 = vadd.f32 %v446, %v469
          %v475 = vpack.c.bf16 %v472, %v471
          %v476 = vpack.c.bf16 %v474, %v473
          %v479 = vunpack.c.l.b16 %v475
          %v480 = vunpack.c.h.b16 %v475
          %v481 = vunpack.c.l.b16 %v476
          %v482 = vunpack.c.h.b16 %v476
          %v483 = vpack.c.b16 %v479, %v479
          %v484 = vpack.c.b16 %v480, %v480
          %v485 = vpack.c.b16 %v481, %v481
          %v486 = vpack.c.b16 %v482, %v482
          %491 = vst [vmem:[%s299] sm:$0xf] %v483
          %492 = vst [vmem:[%s299 + $0x4] sm:$0xf] %v484
          %493 = vst [vmem:[%s299 + $0x8] sm:$0xf] %v485
          %494 = vst [vmem:[%s299 + $0xc] sm:$0xf] %v486
        $region81: #{lqvit_forward.6} parent=68 // pred_fallthru
          _
        %s495 = sand.u32 %s125, 1
        %s496 = sand.u32 %s125, 1
        %s497 = smul.addr %s496, 16
        %s498 = scalar_lea.vmem [#allocation4], %s497
        // Predicated region
        $region82: #{lqvit_forward.6} parent=68 // pred_check
          %p499 = pneg %p135
        $region83: #{lqvit_forward.6} parent=68 // pred_check_branch
          %501 = sbr.rel (%p499) target = $region85
        $region84: #{lqvit_forward.6} parent=68 // pred_region
          %s502 = smul.u32 4, %s19
          %s503 = smul.addr %s502, 2
          %s504 = sadd.s32 %s20, %s503
          %s505 = smul.addr %s504, 4
          %s506 = scalar_lea.vmem %s3, %s505
          // Predicated region
          $region86: #{lqvit_forward.6} parent=84 // pred_check
            _
          $region87: #{lqvit_forward.6} parent=84 // pred_check_branch
            %508 = sbr.rel (0) target = $region89
          $region88: #{lqvit_forward.6} parent=84 // pred_region
            // Predicated region
            $region90: #{lqvit_forward.6} parent=88 // pred_check
              _
            $region91: #{lqvit_forward.6} parent=88 // pred_check_branch
              %510 = sbr.rel target = $region93
            $region92: #{lqvit_forward.6} parent=88 // pred_region
              // Predicated region
              $region105: #{lqvit_forward.6} parent=92 // pred_check
                _
              $region106: #{lqvit_forward.6} parent=92 // pred_check_branch
                %531 = sbr.rel (0) target = $region108
              $region107: #{lqvit_forward.6} parent=92 // pred_region
                loop: start=0, step=1, limit=1
                $region109: #{lqvit_forward.6} parent=107 // loop_pre_header
                  _
                $region110: #{lqvit_forward.6} parent=107 // loop_header
                  %s533 = sphi 0, %s537
                  %p534 = scmp.ge.s32.totalorder %s533, 1
                  %s538 = sphi %s498, %s498
                  %s539 = sphi %s506, %s506
                $region111: #{lqvit_forward.6} parent=107 // loop_header_branch
                  %536 = sbr.rel (%p534) target = $region115
                $region112: #{lqvit_forward.6} parent=107 // loop_body
                  _
                $region113: #{lqvit_forward.6} parent=107 // loop_footer
                  %s537 = sadd.s32 1, %s533
                $region114: #{lqvit_forward.6} parent=107 // loop_footer_branch
                  %532 = sbr.rel target = $region110
                $region115: #{lqvit_forward.6} parent=107 // loop_exit
                  _
                loop: start=0, step=1, limit=1
                $region116: #{lqvit_forward.6} parent=107 // loop_pre_header
                  _
                $region117: #{lqvit_forward.6} parent=107 // loop_header
                  %s542 = sphi 0, %s546
                  %p543 = scmp.ge.s32.totalorder %s542, 1
                  %s547 = sphi %s498, %s498
                  %s548 = sphi %s506, %s506
                $region118: #{lqvit_forward.6} parent=107 // loop_header_branch
                  %545 = sbr.rel (%p543) target = $region122
                $region119: #{lqvit_forward.6} parent=107 // loop_body
                  %v549 = vld [vmem:[%s547] sm:$0xf]
                  %550 = vst [vmem:[%s548] sm:$0xf] %v549
                  %v551 = vld [vmem:[%s547 + $0x4] sm:$0xf]
                  %552 = vst [vmem:[%s548 + $0x8] sm:$0xf] %v551
                  %v553 = vld [vmem:[%s547 + $0x8] sm:$0xf]
                  %554 = vst [vmem:[%s548 + $0x10] sm:$0xf] %v553
                  %v555 = vld [vmem:[%s547 + $0xc] sm:$0xf]
                  %556 = vst [vmem:[%s548 + $0x18] sm:$0xf] %v555
                $region120: #{lqvit_forward.6} parent=107 // loop_footer
                  %s546 = sadd.s32 1, %s542
                $region121: #{lqvit_forward.6} parent=107 // loop_footer_branch
                  %541 = sbr.rel target = $region117
                $region122: #{lqvit_forward.6} parent=107 // loop_exit
                  _
              $region108: #{lqvit_forward.6} parent=92 // pred_fallthru
                _
            $region93: #{lqvit_forward.6} parent=88 // pred_fallthru
              _
            // Predicated region
            $region94: #{lqvit_forward.6} parent=88 // pred_check
              _
            $region95: #{lqvit_forward.6} parent=88 // pred_check_branch
              %512 = sbr.rel (0) target = $region97
            $region96: #{lqvit_forward.6} parent=88 // pred_region
              loop: start=0, step=1, limit=1
              $region98: #{lqvit_forward.6} parent=96 // loop_pre_header
                _
              $region99: #{lqvit_forward.6} parent=96 // loop_header
                %s515 = sphi 0, %s519
                %p516 = scmp.ge.s32.totalorder %s515, 1
                %s520 = sphi %s498, %s498
                %s521 = sphi %s506, %s506
              $region100: #{lqvit_forward.6} parent=96 // loop_header_branch
                %518 = sbr.rel (%p516) target = $region104
              $region101: #{lqvit_forward.6} parent=96 // loop_body
                %v522 = vld [vmem:[%s520] sm:$0xf]
                %523 = vst [vmem:[%s521] sm:$0xf] %v522
                %v524 = vld [vmem:[%s520 + $0x4] sm:$0xf]
                %525 = vst [vmem:[%s521 + $0x8] sm:$0xf] %v524
                %v526 = vld [vmem:[%s520 + $0x8] sm:$0xf]
                %527 = vst [vmem:[%s521 + $0x10] sm:$0xf] %v526
                %v528 = vld [vmem:[%s520 + $0xc] sm:$0xf]
                %529 = vst [vmem:[%s521 + $0x18] sm:$0xf] %v528
              $region102: #{lqvit_forward.6} parent=96 // loop_footer
                %s519 = sadd.s32 1, %s515
              $region103: #{lqvit_forward.6} parent=96 // loop_footer_branch
                %514 = sbr.rel target = $region99
              $region104: #{lqvit_forward.6} parent=96 // loop_exit
                _
            $region97: #{lqvit_forward.6} parent=88 // pred_fallthru
              _
          $region89: #{lqvit_forward.6} parent=84 // pred_fallthru
            _
          %557 = vnop
        $region85: #{lqvit_forward.6} parent=68 // pred_fallthru
          _
      $region69: #{lqvit_forward.6} parent=5 // pred_fallthru
        _
      %p558 = scmp.le.s32.totalorder 2, %s9
      // Predicated region
      $region123: #{lqvit_forward.6} parent=5 // pred_check
        %p559 = pneg %p558
      $region124: #{lqvit_forward.6} parent=5 // pred_check_branch
        %561 = sbr.rel (%p559) target = $region126
      $region125: #{lqvit_forward.6} parent=5 // pred_region
        %s562 = ssub.s32 %s9, 2
        // Predicated region
        $region127: #{lqvit_forward.6} parent=125 // pred_check
          %p563 = pneg %p141
        $region128: #{lqvit_forward.6} parent=125 // pred_check_branch
          %565 = sbr.rel (%p563) target = $region130
        $region129: #{lqvit_forward.6} parent=125 // pred_region
          %s566 = sand.u32 %s126, 1
          %s567 = sand.u32 %s126, 1
          %s568 = smul.addr %s567, 16
          %s569 = scalar_lea.vmem [#allocation4], %s568
        $region130: #{lqvit_forward.6} parent=125 // pred_fallthru
          _
      $region126: #{lqvit_forward.6} parent=5 // pred_fallthru
        _
    $region6: #{lqvit_forward.6} parent=1 // loop_footer
      %s13 = sadd.s32 1, %s9
    $region7: #{lqvit_forward.6} parent=1 // loop_footer_branch
      %8 = sbr.rel target = $region3
    $region8: #{lqvit_forward.6} parent=1 // loop_exit
      _

// kernel: lqvit_forward.7
$region0: #{lqvit_forward.7}
  #allocation0 [shape = 'u32[]', space=smem, size = 0x4, offset = 0x4, fixed_abs, tag = 'smem constant byte address 0x4 - core index']
  #allocation1 [shape = 'u32[144,128]{1,0:T(1,128)}', space=vmem, size = 0x12000, scoped, tag = 'internal scratch']
  %s0 = inlined_call_operand.vmem [shape: bf16[64,128], index: 0, kind: input, shape index: {}]
  %s1 = inlined_call_operand.vmem [shape: bf16[128,128], index: 1, kind: input, shape index: {}]
  %s2 = inlined_call_operand.vmem [shape: f32[1,128], index: 2, kind: input, shape index: {}]
  %s3 = inlined_call_operand.vmem [shape: f32[8,128], index: 3, kind: input, shape index: {}]
  %s4 = inlined_call_operand.vmem [shape: bf16[128,128], index: 4, kind: input, shape index: {}]
  %s5 = inlined_call_operand.vmem [shape: f32[1,128], index: 5, kind: input, shape index: {}]
  %s6 = inlined_call_operand.vmem [shape: bf16[64,128], index: 6, kind: output, shape index: {0}]
  %s7 = inlined_call_operand.vmem [shape: s32[64,1], index: 7, kind: output, shape index: {1}]
  %8 = xla_tuple %s6, %s7
  %s9 = sld [smem:[#allocation0]]
  $region65: #{lqvit_forward.7} parent=0
    _
  %s11 = ssub.s32 1, %s9
  %s12 = scalar_select 0, %s11, %s9
  loop: start=0, step=1, limit=4
  $region2: #{lqvit_forward.7} parent=0 // loop_pre_header
    _
  $region3: #{lqvit_forward.7} parent=0 // loop_header
    %s14 = sphi 0, %s18
    %p15 = scmp.ge.s32.totalorder %s14, 4
    %s24 = sphi 0, %s26
    %s27 = sphi 0, %s24
    %s28 = sphi 0, %s27
    %s44 = sphi 0, %s28
    %s48 = sphi 0, %s48
    %s50 = sphi 0, %s48
    %s51 = sphi 0, %s50
    %s65 = sphi 0, %s51
    %s69 = sphi 0, %s69
    %s71 = sphi 0, %s69
    %s72 = sphi 0, %s71
    %s86 = sphi 0, %s72
    %s90 = sphi 0, %s90
    %s92 = sphi 0, %s90
    %s93 = sphi 0, %s92
    %s107 = sphi 0, %s93
    %s111 = sphi 0, %s111
    %s113 = sphi 0, %s111
    %s114 = sphi 0, %s113
    %s128 = sphi 0, %s114
    %s132 = sphi 0, %s132
    %s134 = sphi 0, %s132
    %s135 = sphi 0, %s134
    %s149 = sphi 0, %s135
    %s155 = sphi 0, %s157
    %s158 = sphi 0, %s155
    %s159 = sphi 0, %s158
    %s175 = sphi 0, %s159
    %s181 = sphi 0, %s183
    %s184 = sphi 0, %s181
    %s185 = sphi 0, %s184
    %s201 = sphi 0, %s185
  $region4: #{lqvit_forward.7} parent=0 // loop_header_branch
    %17 = sbr.rel (%p15) target = $region8
  $region5: #{lqvit_forward.7} parent=0 // loop_body
    %s19 = ssub.s32 %s14, 1
    %s20 = ssub.s32 %s14, 2
    %s21 = sadd.s32 %s14, 1
    %s22 = ssub.s32 %s14, %s21
    %p23 = scmp.eq.s32.totalorder %s22, 0
    %s25 = sadd.s32 %s24, 1
    %s26 = scalar_select %p23, %s24, %s25
    %p29 = pneg %p23
    %p30 = scmp.eq.s32.totalorder %s14, 1
    %p31 = por %p29, %p30
    %p32 = scmp.ne.s32.totalorder %s24, %s27
    %p33 = scmp.eq.s32.totalorder %s14, 0
    %p34 = por %p32, %p33
    %p35 = scmp.ne.s32.totalorder %s24, %s27
    %p36 = scmp.eq.s32.totalorder %s19, 1
    %p37 = por %p35, %p36
    %p38 = scmp.ne.s32.totalorder %s27, %s28
    %p39 = scmp.eq.s32.totalorder %s19, 0
    %p40 = por %p38, %p39
    %p41 = scmp.ne.s32.totalorder %s27, %s28
    %p42 = scmp.eq.s32.totalorder %s20, 1
    %p43 = por %p41, %p42
    %p45 = scmp.ne.s32.totalorder %s28, %s44
    %p46 = scmp.eq.s32.totalorder %s20, 0
    %p47 = por %p45, %p46
    %s49 = sadd.s32 %s48, 1
    %p52 = scmp.eq.s32.totalorder %s14, 1
    %p53 = scmp.ne.s32.totalorder %s48, %s50
    %p54 = scmp.eq.s32.totalorder %s14, 0
    %p55 = por %p53, %p54
    %p56 = scmp.ne.s32.totalorder %s48, %s50
    %p57 = scmp.eq.s32.totalorder %s19, 1
    %p58 = por %p56, %p57
    %p59 = scmp.ne.s32.totalorder %s50, %s51
    %p60 = scmp.eq.s32.totalorder %s19, 0
    %p61 = por %p59, %p60
    %p62 = scmp.ne.s32.totalorder %s50, %s51
    %p63 = scmp.eq.s32.totalorder %s20, 1
    %p64 = por %p62, %p63
    %p66 = scmp.ne.s32.totalorder %s51, %s65
    %p67 = scmp.eq.s32.totalorder %s20, 0
    %p68 = por %p66, %p67
    %s70 = sadd.s32 %s69, 1
    %p73 = scmp.eq.s32.totalorder %s14, 1
    %p74 = scmp.ne.s32.totalorder %s69, %s71
    %p75 = scmp.eq.s32.totalorder %s14, 0
    %p76 = por %p74, %p75
    %p77 = scmp.ne.s32.totalorder %s69, %s71
    %p78 = scmp.eq.s32.totalorder %s19, 1
    %p79 = por %p77, %p78
    %p80 = scmp.ne.s32.totalorder %s71, %s72
    %p81 = scmp.eq.s32.totalorder %s19, 0
    %p82 = por %p80, %p81
    %p83 = scmp.ne.s32.totalorder %s71, %s72
    %p84 = scmp.eq.s32.totalorder %s20, 1
    %p85 = por %p83, %p84
    %p87 = scmp.ne.s32.totalorder %s72, %s86
    %p88 = scmp.eq.s32.totalorder %s20, 0
    %p89 = por %p87, %p88
    %s91 = sadd.s32 %s90, 1
    %p94 = scmp.eq.s32.totalorder %s14, 1
    %p95 = scmp.ne.s32.totalorder %s90, %s92
    %p96 = scmp.eq.s32.totalorder %s14, 0
    %p97 = por %p95, %p96
    %p98 = scmp.ne.s32.totalorder %s90, %s92
    %p99 = scmp.eq.s32.totalorder %s19, 1
    %p100 = por %p98, %p99
    %p101 = scmp.ne.s32.totalorder %s92, %s93
    %p102 = scmp.eq.s32.totalorder %s19, 0
    %p103 = por %p101, %p102
    %p104 = scmp.ne.s32.totalorder %s92, %s93
    %p105 = scmp.eq.s32.totalorder %s20, 1
    %p106 = por %p104, %p105
    %p108 = scmp.ne.s32.totalorder %s93, %s107
    %p109 = scmp.eq.s32.totalorder %s20, 0
    %p110 = por %p108, %p109
    %s112 = sadd.s32 %s111, 1
    %p115 = scmp.eq.s32.totalorder %s14, 1
    %p116 = scmp.ne.s32.totalorder %s111, %s113
    %p117 = scmp.eq.s32.totalorder %s14, 0
    %p118 = por %p116, %p117
    %p119 = scmp.ne.s32.totalorder %s111, %s113
    %p120 = scmp.eq.s32.totalorder %s19, 1
    %p121 = por %p119, %p120
    %p122 = scmp.ne.s32.totalorder %s113, %s114
    %p123 = scmp.eq.s32.totalorder %s19, 0
    %p124 = por %p122, %p123
    %p125 = scmp.ne.s32.totalorder %s113, %s114
    %p126 = scmp.eq.s32.totalorder %s20, 1
    %p127 = por %p125, %p126
    %p129 = scmp.ne.s32.totalorder %s114, %s128
    %p130 = scmp.eq.s32.totalorder %s20, 0
    %p131 = por %p129, %p130
    %s133 = sadd.s32 %s132, 1
    %p136 = scmp.eq.s32.totalorder %s14, 1
    %p137 = scmp.ne.s32.totalorder %s132, %s134
    %p138 = scmp.eq.s32.totalorder %s14, 0
    %p139 = por %p137, %p138
    %p140 = scmp.ne.s32.totalorder %s132, %s134
    %p141 = scmp.eq.s32.totalorder %s19, 1
    %p142 = por %p140, %p141
    %p143 = scmp.ne.s32.totalorder %s134, %s135
    %p144 = scmp.eq.s32.totalorder %s19, 0
    %p145 = por %p143, %p144
    %p146 = scmp.ne.s32.totalorder %s134, %s135
    %p147 = scmp.eq.s32.totalorder %s20, 1
    %p148 = por %p146, %p147
    %p150 = scmp.ne.s32.totalorder %s135, %s149
    %p151 = scmp.eq.s32.totalorder %s20, 0
    %p152 = por %p150, %p151
    %s153 = ssub.s32 %s14, %s21
    %p154 = scmp.eq.s32.totalorder %s153, 0
    %s156 = sadd.s32 %s155, 1
    %s157 = scalar_select %p154, %s155, %s156
    %p160 = pneg %p154
    %p161 = scmp.eq.s32.totalorder %s14, 1
    %p162 = por %p160, %p161
    %p163 = scmp.ne.s32.totalorder %s155, %s158
    %p164 = scmp.eq.s32.totalorder %s14, 0
    %p165 = por %p163, %p164
    %p166 = scmp.ne.s32.totalorder %s155, %s158
    %p167 = scmp.eq.s32.totalorder %s19, 1
    %p168 = por %p166, %p167
    %p169 = scmp.ne.s32.totalorder %s158, %s159
    %p170 = scmp.eq.s32.totalorder %s19, 0
    %p171 = por %p169, %p170
    %p172 = scmp.ne.s32.totalorder %s158, %s159
    %p173 = scmp.eq.s32.totalorder %s20, 1
    %p174 = por %p172, %p173
    %p176 = scmp.ne.s32.totalorder %s159, %s175
    %p177 = scmp.eq.s32.totalorder %s20, 0
    %p178 = por %p176, %p177
    %s179 = ssub.s32 %s14, %s21
    %p180 = scmp.eq.s32.totalorder %s179, 0
    %s182 = sadd.s32 %s181, 1
    %s183 = scalar_select %p180, %s181, %s182
    %p186 = pneg %p180
    %p187 = scmp.eq.s32.totalorder %s14, 1
    %p188 = por %p186, %p187
    %p189 = scmp.ne.s32.totalorder %s181, %s184
    %p190 = scmp.eq.s32.totalorder %s14, 0
    %p191 = por %p189, %p190
    %p192 = scmp.ne.s32.totalorder %s181, %s184
    %p193 = scmp.eq.s32.totalorder %s19, 1
    %p194 = por %p192, %p193
    %p195 = scmp.ne.s32.totalorder %s184, %s185
    %p196 = scmp.eq.s32.totalorder %s19, 0
    %p197 = por %p195, %p196
    %p198 = scmp.ne.s32.totalorder %s184, %s185
    %p199 = scmp.eq.s32.totalorder %s20, 1
    %p200 = por %p198, %p199
    %p202 = scmp.ne.s32.totalorder %s185, %s201
    %p203 = scmp.eq.s32.totalorder %s20, 0
    %p204 = por %p202, %p203
    %p205 = scmp.le.s32.totalorder 1, %s14
    %p206 = scmp.lt.s32.totalorder %s14, 3
    %p207 = pnand %p205, %p206
    %p208 = pneg %p207
    // Predicated region
    $region9: #{lqvit_forward.7} parent=5 // pred_check
      _
    $region10: #{lqvit_forward.7} parent=5 // pred_check_branch
      %210 = sbr.rel (%p207) target = $region12
    $region11: #{lqvit_forward.7} parent=5 // pred_region
      %s211 = ssub.s32 %s14, 1
      // Predicated region
      $region13: #{lqvit_forward.7} parent=11 // pred_check
        %p212 = pneg %p61
      $region14: #{lqvit_forward.7} parent=11 // pred_check_branch
        %214 = sbr.rel (%p212) target = $region16
      $region15: #{lqvit_forward.7} parent=11 // pred_region
        _
      $region16: #{lqvit_forward.7} parent=11 // pred_fallthru
        _
      // Predicated region
      $region17: #{lqvit_forward.7} parent=11 // pred_check
        %p215 = pneg %p82
      $region18: #{lqvit_forward.7} parent=11 // pred_check_branch
        %217 = sbr.rel (%p215) target = $region20
      $region19: #{lqvit_forward.7} parent=11 // pred_region
        _
      $region20: #{lqvit_forward.7} parent=11 // pred_fallthru
        _
      // Predicated region
      $region21: #{lqvit_forward.7} parent=11 // pred_check
        %p218 = pneg %p103
      $region22: #{lqvit_forward.7} parent=11 // pred_check_branch
        %220 = sbr.rel (%p218) target = $region24
      $region23: #{lqvit_forward.7} parent=11 // pred_region
        _
      $region24: #{lqvit_forward.7} parent=11 // pred_fallthru
        _
      // Predicated region
      $region25: #{lqvit_forward.7} parent=11 // pred_check
        %p221 = pneg %p124
      $region26: #{lqvit_forward.7} parent=11 // pred_check_branch
        %223 = sbr.rel (%p221) target = $region28
      $region27: #{lqvit_forward.7} parent=11 // pred_region
        _
      $region28: #{lqvit_forward.7} parent=11 // pred_fallthru
        _
      // Predicated region
      $region29: #{lqvit_forward.7} parent=11 // pred_check
        %p224 = pneg %p145
      $region30: #{lqvit_forward.7} parent=11 // pred_check_branch
        %226 = sbr.rel (%p224) target = $region32
      $region31: #{lqvit_forward.7} parent=11 // pred_region
        _
      $region32: #{lqvit_forward.7} parent=11 // pred_fallthru
        _
    $region12: #{lqvit_forward.7} parent=5 // pred_fallthru
      _
    %p227 = scmp.lt.s32.totalorder %s14, 2
    // Predicated region
    $region33: #{lqvit_forward.7} parent=5 // pred_check
      %p228 = pneg %p227
    $region34: #{lqvit_forward.7} parent=5 // pred_check_branch
      %230 = sbr.rel (%p228) target = $region36
    $region35: #{lqvit_forward.7} parent=5 // pred_region
      // Predicated region
      $region37: #{lqvit_forward.7} parent=35 // pred_check
        %p231 = pneg %p34
      $region38: #{lqvit_forward.7} parent=35 // pred_check_branch
        %233 = sbr.rel (%p231) target = $region40
      $region39: #{lqvit_forward.7} parent=35 // pred_region
        %s234 = smul.u32 4, %s14
        %p235 = scmp.lt.s32.totalorder %s234, 7
        %s236 = scalar_select %p235, %s234, 7
        %s237 = smul.addr %s236, 4
        %s238 = scalar_lea.vmem %s0, %s237
        %s239 = smul.u32 4, %s14
      $region40: #{lqvit_forward.7} parent=35 // pred_fallthru
        _
    $region36: #{lqvit_forward.7} parent=5 // pred_fallthru
      _
    %p240 = scmp.le.s32.totalorder 1, %s14
    %p241 = scmp.lt.s32.totalorder %s14, 3
    %p242 = pnand %p240, %p241
    %p243 = pneg %p242
    // Predicated region
    $region41: #{lqvit_forward.7} parent=5 // pred_check
      _
    $region42: #{lqvit_forward.7} parent=5 // pred_check_branch
      %245 = sbr.rel (%p242) target = $region44
    $region43: #{lqvit_forward.7} parent=5 // pred_region
      %s246 = ssub.s32 %s14, 1
      %s247 = smul.u32 4, %s19
      %p248 = scmp.lt.s32.totalorder %s247, 7
      %s249 = scalar_select %p248, %s247, 7
      %s250 = smul.addr %s249, 4
      %s251 = scalar_lea.vmem %s0, %s250
      %p252 = pneg %p40
      %p253 = pneg %p37
      %p254 = pneg %p61
      %p255 = pneg %p58
      %p256 = pneg %p82
      %p257 = pneg %p79
      %p258 = pneg %p103
      %p259 = pneg %p100
      %p260 = pneg %p124
      %p261 = pneg %p121
      %p262 = pneg %p145
      %p263 = pneg %p142
      %p264 = pneg %p171
      %p265 = pneg %p168
      %s266 = smul.u32 4, %s19
      %p267 = scmp.lt.s32.totalorder %s266, 7
      %s268 = scalar_select %p267, %s266, 7
      %s269 = smul.addr %s268, 4
      %s270 = scalar_lea.vmem %s6, %s269
      %p271 = pneg %p197
      %p272 = pneg %p194
      %s273 = smul.u32 4, %s19
      %p274 = scmp.lt.s32.totalorder %s273, 7
      %s275 = scalar_select %p274, %s273, 7
      %s276 = smul.addr %s275, 8
      %s277 = scalar_lea.vmem %s7, %s276
      %s278 = smul.u32 4, %s19
      %p279 = scmp.lt.s32.totalorder %s278, 7
      %s280 = scalar_select %p279, %s278, 7
      %s281 = smul.addr %s280, 4
      %s282 = scalar_lea.vmem %s0, %s281
      %s283 = smul.u32 4, %s19
      %s284 = smul.u32 4, %s19
      %p285 = scmp.lt.s32.totalorder %s284, 7
      %s286 = scalar_select %p285, %s284, 7
      %s287 = smul.addr %s286, 4
      %s288 = scalar_lea.vmem %s6, %s287
      %s289 = smul.u32 4, %s19
      %s290 = smul.u32 4, %s19
      %p291 = scmp.lt.s32.totalorder %s290, 7
      %s292 = scalar_select %p291, %s290, 7
      %s293 = smul.addr %s292, 8
      %s294 = scalar_lea.vmem %s7, %s293
      %s295 = smul.u32 4, %s19
      %v297 = vld [vmem:[%s282] sm:$0xf]
      %v298 = vld [vmem:[%s282 + $0x4] sm:$0xf]
      %v299 = vld [vmem:[%s282 + $0x8] sm:$0xf]
      %v300 = vld [vmem:[%s282 + $0xc] sm:$0xf]
      %v301 = vld [vmem:[%s1] sm:$0xf]
      %v302 = vld [vmem:[%s1 + $0x4] sm:$0xf]
      %v303 = vld [vmem:[%s1 + $0x8] sm:$0xf]
      %v304 = vld [vmem:[%s1 + $0xc] sm:$0xf]
      %v305 = vld [vmem:[%s1 + $0x10] sm:$0xf]
      %v306 = vld [vmem:[%s1 + $0x14] sm:$0xf]
      %v307 = vld [vmem:[%s1 + $0x18] sm:$0xf]
      %v308 = vld [vmem:[%s1 + $0x1c] sm:$0xf]
      %v309 = vld [vmem:[%s1 + $0x20] sm:$0xf]
      %v310 = vld [vmem:[%s1 + $0x24] sm:$0xf]
      %v311 = vld [vmem:[%s1 + $0x28] sm:$0xf]
      %v312 = vld [vmem:[%s1 + $0x2c] sm:$0xf]
      %v313 = vld [vmem:[%s1 + $0x30] sm:$0xf]
      %v314 = vld [vmem:[%s1 + $0x34] sm:$0xf]
      %v315 = vld [vmem:[%s1 + $0x38] sm:$0xf]
      %v316 = vld [vmem:[%s1 + $0x3c] sm:$0xf]
      %v317 = vld [vmem:[%s2] sm:$0x1]
      %v319 = vlaneseq
      %v320 = vshrl.u32 %v319, 7
      %v321 = vsub.s32 0, %v320
      %v322 = vrot.slane %v317, %v321
      %v328 = vunpack.c.l.b16 %v297
      %v329 = vunpack.c.l.b16 %v298
      %v330 = vunpack.c.l.b16 %v299
      %v331 = vunpack.c.l.b16 %v300
      %v332 = vpack.c.b16 %v329, %v328
      %v333 = vpack.c.b16 %v331, %v330
      %v352 = vunpack.c.l.b16 %v301
      %v353 = vunpack.c.l.b16 %v302
      %v354 = vunpack.c.l.b16 %v303
      %v355 = vunpack.c.l.b16 %v304
      %v356 = vunpack.c.l.b16 %v305
      %v357 = vunpack.c.l.b16 %v306
      %v358 = vunpack.c.l.b16 %v307
      %v359 = vunpack.c.l.b16 %v308
      %v360 = vunpack.c.l.b16 %v309
      %v361 = vunpack.c.l.b16 %v310
      %v362 = vunpack.c.l.b16 %v311
      %v363 = vunpack.c.l.b16 %v312
      %v364 = vunpack.c.l.b16 %v313
      %v365 = vunpack.c.l.b16 %v314
      %v366 = vunpack.c.l.b16 %v315
      %v367 = vunpack.c.l.b16 %v316
      %v368 = vpack.c.b16 %v353, %v352
      %v369 = vpack.c.b16 %v355, %v354
      %v370 = vpack.c.b16 %v357, %v356
      %v371 = vpack.c.b16 %v359, %v358
      %v372 = vpack.c.b16 %v361, %v360
      %v373 = vpack.c.b16 %v363, %v362
      %v374 = vpack.c.b16 %v365, %v364
      %v375 = vpack.c.b16 %v367, %v366
      %384 = vmatprep.subr.bf16.mxu0 0
      %385 = vmatpush1.bf16.msra.mxu0 %v368
      %386 = vmatprep.subr.bf16.mxu0 0
      %387 = vmatpush1.bf16.msra.mxu0 %v369
      %388 = vmatprep.subr.bf16.mxu0 0
      %389 = vmatpush1.bf16.msra.mxu0 %v370
      %390 = vmatprep.subr.bf16.mxu0 0
      %391 = vmatpush1.bf16.msra.mxu0 %v371
      %392 = vmatprep.subr.bf16.mxu0 0
      %393 = vmatpush1.bf16.msra.mxu0 %v372
      %394 = vmatprep.subr.bf16.mxu0 0
      %395 = vmatpush1.bf16.msra.mxu0 %v373
      %396 = vmatprep.subr.bf16.mxu0 0
      %397 = vmatpush1.bf16.msra.mxu0 %v374
      %398 = vmatprep.subr.bf16.mxu0 0
      %399 = vmatpush1.bf16.msra.mxu0 %v375
      %400 = vmatprep.subr.bf16.mxu0 0
      %401 = vmatpush1.bf16.msra.mxu0 0
      %402 = vmatprep.subr.bf16.mxu0 0
      %403 = vmatpush1.bf16.msra.mxu0 0
      %404 = vmatprep.subr.bf16.mxu0 0
      %405 = vmatpush1.bf16.msra.mxu0 0
      %406 = vmatprep.subr.bf16.mxu0 0
      %407 = vmatpush1.bf16.msra.mxu0 0
      %408 = vmatprep.subr.bf16.mxu0 0
      %409 = vmatpush1.bf16.msra.mxu0 0
      %410 = vmatprep.subr.bf16.mxu0 0
      %411 = vmatpush1.bf16.msra.mxu0 0
      %412 = vmatprep.subr.bf16.mxu0 0
      %413 = vmatpush1.bf16.msra.mxu0 0
      %414 = vmatprep.subr.bf16.mxu0 0
      %415 = vmatpush1.bf16.msra.mxu0 0
      %416 = vmatprep.mubr.bf16.mxu0 0
      %417 = vmatmul.mubr.bf16.gmra.mrb[0].mxu0 %v332
      %v418 = vpop.f32.mrb[0].mxu0
      %v419 = vadd.f32 %v322, %v418
      %v420 = vpop.f32.mrb[0].mxu0
      %v421 = vpop.f32.mrb[0].mxu0
      %v422 = vadd.f32 %v322, %v421
      %v423 = vpop.f32.mrb[0].mxu0
      %424 = vmatprep.mubr.bf16.mxu0 0
      %425 = vmatmul.mubr.bf16.gmra.mrb[0].mxu0 %v333
      %v426 = vpop.f32.mrb[0].mxu0
      %v427 = vadd.f32 %v322, %v426
      %v428 = vpop.f32.mrb[0].mxu0
      %v429 = vpop.f32.mrb[0].mxu0
      %v430 = vadd.f32 %v322, %v429
      %v431 = vpop.f32.mrb[0].mxu0
      %432 = vdwg.mxu0
      %v433 = vld [vmem:[%s3] sm:$0xff]
      %v434 = vlaneseq
      %v435 = vshrl.u32 %v434, 7
      %v436 = vsub.s32 2, %v435
      %v437 = vrot.slane %v433, %v436
      %v438 = vadd.f32 %v419, %v437
      %v439 = vadd.f32 %v422, %v437
      %v440 = vadd.f32 %v427, %v437
      %v441 = vadd.f32 %v430, %v437
      %v442 = vtanh.pop %v438
      %v443 = vtanh.pop %v439
      %v444 = vtanh.pop %v440
      %v445 = vtanh.pop %v441
      %v446 = vlaneseq
      %v447 = vshrl.u32 %v446, 7
      %v448 = vsub.s32 0, %v447
      %v449 = vrot.slane %v433, %v448
      %v450 = vmul.f32 %v442, %v449
      %v451 = vmul.f32 %v443, %v449
      %v452 = vmul.f32 %v444, %v449
      %v453 = vmul.f32 %v445, %v449
      %v454 = vlaneseq
      %v455 = vshrl.u32 %v454, 7
      %v456 = vsub.s32 1, %v455
      %v457 = vrot.slane %v433, %v456
      %v458 = vsub.f32 %v450, %v457
      %v459 = vsub.f32 %v451, %v457
      %v460 = vsub.f32 %v452, %v457
      %v461 = vsub.f32 %v453, %v457
      %v462 = vadd.f32 %v458, 1.0
      %v463 = vadd.f32 %v459, 1.0
      %v464 = vadd.f32 %v460, 1.0
      %v465 = vadd.f32 %v461, 1.0
      %v466 = vlaneseq
      %v467 = vshrl.u32 %v466, 7
      %v468 = vsub.s32 4, %v467
      %v469 = vrot.slane %v433, %v468
      %v470 = vmul.f32 %v462, %v469
      %v471 = vmul.f32 %v463, %v469
      %v472 = vmul.f32 %v464, %v469
      %v473 = vmul.f32 %v465, %v469
      %v474 = vround.ne.pseudo %v470
      %v475 = vround.ne.pseudo %v471
      %v476 = vround.ne.pseudo %v472
      %v477 = vround.ne.pseudo %v473
      %v478 = vmax.f32 %v474, 0.0
      %v479 = vmax.f32 %v475, 0.0
      %v480 = vmax.f32 %v476, 0.0
      %v481 = vmax.f32 %v477, 0.0
      %v482 = vlaneseq
      %v483 = vshrl.u32 %v482, 7
      %v484 = vsub.s32 5, %v483
      %v485 = vrot.slane %v433, %v484
      %v486 = vmin.f32 %v485, %v478
      %v487 = vmin.f32 %v485, %v479
      %v488 = vmin.f32 %v485, %v480
      %v489 = vmin.f32 %v485, %v481
      %v490 = vlaneseq
      %v491 = vshrl.u32 %v490, 7
      %v492 = vsub.s32 3, %v491
      %v493 = vrot.slane %v433, %v492
      %v494 = vmul.f32 %v486, %v493
      %v495 = vmul.f32 %v487, %v493
      %v496 = vmul.f32 %v488, %v493
      %v497 = vmul.f32 %v489, %v493
      %v498 = vsub.f32 %v494, 1.0
      %v499 = vsub.f32 %v495, 1.0
      %v500 = vsub.f32 %v496, 1.0
      %v501 = vsub.f32 %v497, 1.0
      %v502 = vcvt.f32.s32.to.zero.pseudo %v486
      %v503 = vcvt.f32.s32.to.zero.pseudo %v487
      %v504 = vcvt.f32.s32.to.zero.pseudo %v488
      %v505 = vcvt.f32.s32.to.zero.pseudo %v489
      %v506 = vcvt.f32.s32.to.zero.pseudo %v433
      %v507 = vlaneseq
      %v508 = vshrl.u32 %v507, 7
      %v509 = vsub.s32 6, %v508
      %v510 = vrot.slane %v506, %v509
      %v511 = vmul.u32 %v502, %v510
      %v512 = vmul.u32 %v503, %v510
      %v513 = vmul.u32 %v504, %v510
      %v514 = vmul.u32 %v505, %v510
      %v515 = vand.u32 %v511, 65535
      %v516 = vshrl.u32 %v511, 16
      %v517 = vcvt.s32.f32 %v515
      %v518 = vcvt.s32.f32 %v516
      %519 = vadd.xlane.f32.xlu0 %v517
      %v520 = vpop.xlane.xlu0 %519
      %521 = vadd.xlane.f32.xlu0 %v518
      %v522 = vpop.xlane.xlu0 %521
      %v523 = vcvt.f32.s32 %v520
      %v524 = vcvt.f32.s32 %v522
      %v525 = vshll.u32 %v524, 16
      %v526 = vadd.s32 %v525, %v523
      %v527 = vand.u32 %v512, 65535
      %v528 = vshrl.u32 %v512, 16
      %v529 = vcvt.s32.f32 %v527
      %v530 = vcvt.s32.f32 %v528
      %531 = vadd.xlane.f32.xlu0 %v529
      %v532 = vpop.xlane.xlu0 %531
      %533 = vadd.xlane.f32.xlu0 %v530
      %v534 = vpop.xlane.xlu0 %533
      %v535 = vcvt.f32.s32 %v532
      %v536 = vcvt.f32.s32 %v534
      %v537 = vshll.u32 %v536, 16
      %v538 = vadd.s32 %v537, %v535
      %v539 = vand.u32 %v513, 65535
      %v540 = vshrl.u32 %v513, 16
      %v541 = vcvt.s32.f32 %v539
      %v542 = vcvt.s32.f32 %v540
      %543 = vadd.xlane.f32.xlu0 %v541
      %v544 = vpop.xlane.xlu0 %543
      %545 = vadd.xlane.f32.xlu0 %v542
      %v546 = vpop.xlane.xlu0 %545
      %v547 = vcvt.f32.s32 %v544
      %v548 = vcvt.f32.s32 %v546
      %v549 = vshll.u32 %v548, 16
      %v550 = vadd.s32 %v549, %v547
      %v551 = vand.u32 %v514, 65535
      %v552 = vshrl.u32 %v514, 16
      %v553 = vcvt.s32.f32 %v551
      %v554 = vcvt.s32.f32 %v552
      %555 = vadd.xlane.f32.xlu0 %v553
      %v556 = vpop.xlane.xlu0 %555
      %557 = vadd.xlane.f32.xlu0 %v554
      %v558 = vpop.xlane.xlu0 %557
      %v559 = vcvt.f32.s32 %v556
      %v560 = vcvt.f32.s32 %v558
      %v561 = vshll.u32 %v560, 16
      %v562 = vadd.s32 %v561, %v559
      %vm563 = vcmask 7168
      %564 = vst.msk [vmem:[%s294] sm:$0xff] %vm563, %v526
      %565 = vst.msk [vmem:[%s294 + $0x8] sm:$0xff] %vm563, %v538
      %566 = vst.msk [vmem:[%s294 + $0x10] sm:$0xff] %vm563, %v550
      %567 = vst.msk [vmem:[%s294 + $0x18] sm:$0xff] %vm563, %v562
      %v568 = vpack.c.bf16 %v499, %v498
      %v569 = vpack.c.bf16 %v501, %v500
      %v570 = vld [vmem:[%s4] sm:$0xf]
      %v571 = vld [vmem:[%s4 + $0x4] sm:$0xf]
      %v572 = vld [vmem:[%s4 + $0x8] sm:$0xf]
      %v573 = vld [vmem:[%s4 + $0xc] sm:$0xf]
      %v574 = vld [vmem:[%s4 + $0x10] sm:$0xf]
      %v575 = vld [vmem:[%s4 + $0x14] sm:$0xf]
      %v576 = vld [vmem:[%s4 + $0x18] sm:$0xf]
      %v577 = vld [vmem:[%s4 + $0x1c] sm:$0xf]
      %v578 = vld [vmem:[%s4 + $0x20] sm:$0xf]
      %v579 = vld [vmem:[%s4 + $0x24] sm:$0xf]
      %v580 = vld [vmem:[%s4 + $0x28] sm:$0xf]
      %v581 = vld [vmem:[%s4 + $0x2c] sm:$0xf]
      %v582 = vld [vmem:[%s4 + $0x30] sm:$0xf]
      %v583 = vld [vmem:[%s4 + $0x34] sm:$0xf]
      %v584 = vld [vmem:[%s4 + $0x38] sm:$0xf]
      %v585 = vld [vmem:[%s4 + $0x3c] sm:$0xf]
      %v586 = vld [vmem:[%s5] sm:$0x1]
      %v588 = vlaneseq
      %v589 = vshrl.u32 %v588, 7
      %v590 = vsub.s32 0, %v589
      %v591 = vrot.slane %v586, %v590
      %v609 = vunpack.c.l.b16 %v570
      %v610 = vunpack.c.l.b16 %v571
      %v611 = vunpack.c.l.b16 %v572
      %v612 = vunpack.c.l.b16 %v573
      %v613 = vunpack.c.l.b16 %v574
      %v614 = vunpack.c.l.b16 %v575
      %v615 = vunpack.c.l.b16 %v576
      %v616 = vunpack.c.l.b16 %v577
      %v617 = vunpack.c.l.b16 %v578
      %v618 = vunpack.c.l.b16 %v579
      %v619 = vunpack.c.l.b16 %v580
      %v620 = vunpack.c.l.b16 %v581
      %v621 = vunpack.c.l.b16 %v582
      %v622 = vunpack.c.l.b16 %v583
      %v623 = vunpack.c.l.b16 %v584
      %v624 = vunpack.c.l.b16 %v585
      %v625 = vpack.c.b16 %v610, %v609
      %v626 = vpack.c.b16 %v612, %v611
      %v627 = vpack.c.b16 %v614, %v613
      %v628 = vpack.c.b16 %v616, %v615
      %v629 = vpack.c.b16 %v618, %v617
      %v630 = vpack.c.b16 %v620, %v619
      %v631 = vpack.c.b16 %v622, %v621
      %v632 = vpack.c.b16 %v624, %v623
      %641 = vmatprep.subr.bf16.mxu0 0
      %642 = vmatpush1.bf16.msra.mxu0 %v625
      %643 = vmatprep.subr.bf16.mxu0 0
      %644 = vmatpush1.bf16.msra.mxu0 %v626
      %645 = vmatprep.subr.bf16.mxu0 0
      %646 = vmatpush1.bf16.msra.mxu0 %v627
      %647 = vmatprep.subr.bf16.mxu0 0
      %648 = vmatpush1.bf16.msra.mxu0 %v628
      %649 = vmatprep.subr.bf16.mxu0 0
      %650 = vmatpush1.bf16.msra.mxu0 %v629
      %651 = vmatprep.subr.bf16.mxu0 0
      %652 = vmatpush1.bf16.msra.mxu0 %v630
      %653 = vmatprep.subr.bf16.mxu0 0
      %654 = vmatpush1.bf16.msra.mxu0 %v631
      %655 = vmatprep.subr.bf16.mxu0 0
      %656 = vmatpush1.bf16.msra.mxu0 %v632
      %657 = vmatprep.subr.bf16.mxu0 0
      %658 = vmatpush1.bf16.msra.mxu0 0
      %659 = vmatprep.subr.bf16.mxu0 0
      %660 = vmatpush1.bf16.msra.mxu0 0
      %661 = vmatprep.subr.bf16.mxu0 0
      %662 = vmatpush1.bf16.msra.mxu0 0
      %663 = vmatprep.subr.bf16.mxu0 0
      %664 = vmatpush1.bf16.msra.mxu0 0
      %665 = vmatprep.subr.bf16.mxu0 0
      %666 = vmatpush1.bf16.msra.mxu0 0
      %667 = vmatprep.subr.bf16.mxu0 0
      %668 = vmatpush1.bf16.msra.mxu0 0
      %669 = vmatprep.subr.bf16.mxu0 0
      %670 = vmatpush1.bf16.msra.mxu0 0
      %671 = vmatprep.subr.bf16.mxu0 0
      %672 = vmatpush1.bf16.msra.mxu0 0
      %673 = vmatprep.mubr.bf16.mxu0 0
      %674 = vmatmul.mubr.bf16.gmra.mrb[0].mxu0 %v568
      %v675 = vpop.f32.mrb[0].mxu0
      %v676 = vadd.f32 %v591, %v675
      %v677 = vpop.f32.mrb[0].mxu0
      %v678 = vpop.f32.mrb[0].mxu0
      %v679 = vadd.f32 %v591, %v678
      %v680 = vpop.f32.mrb[0].mxu0
      %681 = vmatprep.mubr.bf16.mxu0 0
      %682 = vmatmul.mubr.bf16.gmra.mrb[0].mxu0 %v569
      %v683 = vpop.f32.mrb[0].mxu0
      %v684 = vadd.f32 %v591, %v683
      %v685 = vpop.f32.mrb[0].mxu0
      %v686 = vpop.f32.mrb[0].mxu0
      %v687 = vadd.f32 %v591, %v686
      %v688 = vpop.f32.mrb[0].mxu0
      %689 = vdwg.mxu0
      %v690 = vpack.c.bf16 %v679, %v676
      %v691 = vpack.c.bf16 %v687, %v684
      %v694 = vunpack.c.l.b16 %v690
      %v695 = vunpack.c.h.b16 %v690
      %v696 = vunpack.c.l.b16 %v691
      %v697 = vunpack.c.h.b16 %v691
      %v698 = vpack.c.b16 %v694, %v694
      %v699 = vpack.c.b16 %v695, %v695
      %v700 = vpack.c.b16 %v696, %v696
      %v701 = vpack.c.b16 %v697, %v697
      %706 = vst [vmem:[%s288] sm:$0xf] %v698
      %707 = vst [vmem:[%s288 + $0x4] sm:$0xf] %v699
      %708 = vst [vmem:[%s288 + $0x8] sm:$0xf] %v700
      %709 = vst [vmem:[%s288 + $0xc] sm:$0xf] %v701
      %s710 = smul.u32 4, %s19
      %p711 = scmp.lt.s32.totalorder %s710, 7
      %s712 = scalar_select %p711, %s710, 7
      %s713 = smul.addr %s712, 4
      %s714 = scalar_lea.vmem %s6, %s713
      %s715 = smul.u32 4, %s19
      %p716 = scmp.lt.s32.totalorder %s715, 7
      %s717 = scalar_select %p716, %s715, 7
      %s718 = smul.addr %s717, 8
      %s719 = scalar_lea.vmem %s7, %s718
      // Predicated region
      $region45: #{lqvit_forward.7} parent=43 // pred_check
        %p720 = pneg %p168
      $region46: #{lqvit_forward.7} parent=43 // pred_check_branch
        %722 = sbr.rel (%p720) target = $region48
      $region47: #{lqvit_forward.7} parent=43 // pred_region
        %s723 = smul.u32 4, %s19
      $region48: #{lqvit_forward.7} parent=43 // pred_fallthru
        _
      // Predicated region
      $region49: #{lqvit_forward.7} parent=43 // pred_check
        %p724 = pneg %p194
      $region50: #{lqvit_forward.7} parent=43 // pred_check_branch
        %726 = sbr.rel (%p724) target = $region52
      $region51: #{lqvit_forward.7} parent=43 // pred_region
        %s727 = smul.u32 4, %s19
      $region52: #{lqvit_forward.7} parent=43 // pred_fallthru
        _
    $region44: #{lqvit_forward.7} parent=5 // pred_fallthru
      _
    %p728 = scmp.le.s32.totalorder 2, %s14
    // Predicated region
    $region53: #{lqvit_forward.7} parent=5 // pred_check
      %p729 = pneg %p728
    $region54: #{lqvit_forward.7} parent=5 // pred_check_branch
      %731 = sbr.rel (%p729) target = $region56
    $region55: #{lqvit_forward.7} parent=5 // pred_region
      %s732 = ssub.s32 %s14, 2
      // Predicated region
      $region57: #{lqvit_forward.7} parent=55 // pred_check
        %p733 = pneg %p174
      $region58: #{lqvit_forward.7} parent=55 // pred_check_branch
        %735 = sbr.rel (%p733) target = $region60
      $region59: #{lqvit_forward.7} parent=55 // pred_region
        %s736 = smul.u32 4, %s20
        %p737 = scmp.lt.s32.totalorder %s736, 7
        %s738 = scalar_select %p737, %s736, 7
        %s739 = smul.addr %s738, 4
        %s740 = scalar_lea.vmem %s6, %s739
      $region60: #{lqvit_forward.7} parent=55 // pred_fallthru
        _
      // Predicated region
      $region61: #{lqvit_forward.7} parent=55 // pred_check
        %p741 = pneg %p200
      $region62: #{lqvit_forward.7} parent=55 // pred_check_branch
        %743 = sbr.rel (%p741) target = $region64
      $region63: #{lqvit_forward.7} parent=55 // pred_region
        %s744 = smul.u32 4, %s20
        %p745 = scmp.lt.s32.totalorder %s744, 7
        %s746 = scalar_select %p745, %s744, 7
        %s747 = smul.addr %s746, 8
        %s748 = scalar_lea.vmem %s7, %s747
      $region64: #{lqvit_forward.7} parent=55 // pred_fallthru
        _
    $region56: #{lqvit_forward.7} parent=5 // pred_fallthru
      _
  $region6: #{lqvit_forward.7} parent=0 // loop_footer
    %s18 = sadd.s32 1, %s14
  $region7: #{lqvit_forward.7} parent=0 // loop_footer_branch
    %13 = sbr.rel target = $region3
  $region8: #{lqvit_forward.7} parent=0 // loop_exit
    _

// kernel: lqvit_forward.8
$region0: #{lqvit_forward.8}
  #allocation0 [shape = 'u32[]', space=smem, size = 0x4, offset = 0x4, fixed_abs, tag = 'smem constant byte address 0x4 - core index']
  #allocation1 [shape = 'u32[144,128]{1,0:T(1,128)}', space=vmem, size = 0x12000, scoped, tag = 'internal scratch']
  #allocation2 [shape = 'f32[64,128]{1,0:T(8,128)}', space=vmem, size = 0x8000, scoped, tag = 'scratch operand']
  %s0 = inlined_call_operand.vmem [shape: bf16[64,32], index: 0, kind: input, shape index: {}]
  %s1 = inlined_call_operand.vmem [shape: bf16[32,256], index: 1, kind: input, shape index: {}]
  %s2 = inlined_call_operand.vmem [shape: f32[64,1], index: 2, kind: input, shape index: {}]
  %s3 = inlined_call_operand.vmem [shape: bf16[64,256], index: 3, kind: output, shape index: {}]
  %s4 = sld [smem:[#allocation0]]
  $region131: #{lqvit_forward.8} parent=0
    _
  %s6 = ssub.s32 1, %s4
  %s7 = scalar_select 0, %s6, %s4
  $region1: #{lqvit_forward.8} parent=0
    #allocation3 [shape = 'u8[16384]{0}', space=vmem, size = 0x4000, scoped, tag = 'input window, operand 1']
    #allocation4 [shape = 'u8[32768]{0}', space=vmem, size = 0x8000, scoped, tag = 'output window, operand 0']
    loop: start=0, step=1, limit=4
    $region2: #{lqvit_forward.8} parent=1 // loop_pre_header
      _
    $region3: #{lqvit_forward.8} parent=1 // loop_header
      %s9 = sphi 0, %s13
      %p10 = scmp.ge.s32.totalorder %s9, 4
      %s16 = sphi 0, %s35
      %s17 = sphi 0, %s31
      %s18 = sphi 0, %s27
      %s19 = sphi 0, %s16
      %s20 = sphi 0, %s17
      %s21 = sphi 0, %s18
      %s22 = sphi 0, %s19
      %s23 = sphi 0, %s20
      %s24 = sphi 0, %s21
      %s40 = sphi 0, %s42
      %s43 = sphi 0, %s40
      %s44 = sphi 0, %s43
      %s60 = sphi 0, %s44
      %s68 = sphi 0, %s70
      %s71 = sphi 0, %s68
      %s72 = sphi 0, %s71
      %s88 = sphi 0, %s72
      %s94 = sphi 0, %s96
      %s97 = sphi 0, %s94
      %s98 = sphi 0, %s97
      %s114 = sphi 0, %s98
      %s122 = sphi 0, %s124
      %s125 = sphi 0, %s122
      %s126 = sphi 0, %s125
      %s142 = sphi 0, %s126
    $region4: #{lqvit_forward.8} parent=1 // loop_header_branch
      %12 = sbr.rel (%p10) target = $region8
    $region5: #{lqvit_forward.8} parent=1 // loop_body
      %s14 = ssub.s32 %s9, 1
      %s15 = ssub.s32 %s9, 2
      %s25 = sadd.s32 1, %s18
      %p26 = scmp.ge.s32.totalorder %s25, 1
      %s27 = scalar_select %p26, 0, %s25
      %s28 = sadd.s32 1, %s17
      %s29 = scalar_select %p26, %s28, %s17
      %p30 = scmp.ge.s32.totalorder %s29, 2
      %s31 = scalar_select %p30, 0, %s29
      %s32 = sadd.s32 1, %s16
      %s33 = scalar_select %p30, %s32, %s16
      %p34 = scmp.ge.s32.totalorder %s33, 1
      %s35 = scalar_select %p34, 0, %s33
      %s36 = ssub.s32 %s16, %s35
      %s37 = ssub.s32 %s18, %s27
      %s38 = sor.u32 %s36, %s37
      %p39 = scmp.eq.s32.totalorder %s38, 0
      %s41 = sadd.s32 %s40, 1
      %s42 = scalar_select %p39, %s40, %s41
      %p45 = pneg %p39
      %p46 = scmp.eq.s32.totalorder %s9, 1
      %p47 = por %p45, %p46
      %p48 = scmp.ne.s32.totalorder %s40, %s43
      %p49 = scmp.eq.s32.totalorder %s9, 0
      %p50 = por %p48, %p49
      %p51 = scmp.ne.s32.totalorder %s40, %s43
      %p52 = scmp.eq.s32.totalorder %s14, 1
      %p53 = por %p51, %p52
      %p54 = scmp.ne.s32.totalorder %s43, %s44
      %p55 = scmp.eq.s32.totalorder %s14, 0
      %p56 = por %p54, %p55
      %p57 = scmp.ne.s32.totalorder %s43, %s44
      %p58 = scmp.eq.s32.totalorder %s15, 1
      %p59 = por %p57, %p58
      %p61 = scmp.ne.s32.totalorder %s44, %s60
      %p62 = scmp.eq.s32.totalorder %s15, 0
      %p63 = por %p61, %p62
      %s64 = ssub.s32 %s18, %s27
      %s65 = ssub.s32 %s17, %s31
      %s66 = sor.u32 %s64, %s65
      %p67 = scmp.eq.s32.totalorder %s66, 0
      %s69 = sadd.s32 %s68, 1
      %s70 = scalar_select %p67, %s68, %s69
      %p73 = pneg %p67
      %p74 = scmp.eq.s32.totalorder %s9, 1
      %p75 = por %p73, %p74
      %p76 = scmp.ne.s32.totalorder %s68, %s71
      %p77 = scmp.eq.s32.totalorder %s9, 0
      %p78 = por %p76, %p77
      %p79 = scmp.ne.s32.totalorder %s68, %s71
      %p80 = scmp.eq.s32.totalorder %s14, 1
      %p81 = por %p79, %p80
      %p82 = scmp.ne.s32.totalorder %s71, %s72
      %p83 = scmp.eq.s32.totalorder %s14, 0
      %p84 = por %p82, %p83
      %p85 = scmp.ne.s32.totalorder %s71, %s72
      %p86 = scmp.eq.s32.totalorder %s15, 1
      %p87 = por %p85, %p86
      %p89 = scmp.ne.s32.totalorder %s72, %s88
      %p90 = scmp.eq.s32.totalorder %s15, 0
      %p91 = por %p89, %p90
      %s92 = ssub.s32 %s16, %s35
      %p93 = scmp.eq.s32.totalorder %s92, 0
      %s95 = sadd.s32 %s94, 1
      %s96 = scalar_select %p93, %s94, %s95
      %p99 = pneg %p93
      %p100 = scmp.eq.s32.totalorder %s9, 1
      %p101 = por %p99, %p100
      %p102 = scmp.ne.s32.totalorder %s94, %s97
      %p103 = scmp.eq.s32.totalorder %s9, 0
      %p104 = por %p102, %p103
      %p105 = scmp.ne.s32.totalorder %s94, %s97
      %p106 = scmp.eq.s32.totalorder %s14, 1
      %p107 = por %p105, %p106
      %p108 = scmp.ne.s32.totalorder %s97, %s98
      %p109 = scmp.eq.s32.totalorder %s14, 0
      %p110 = por %p108, %p109
      %p111 = scmp.ne.s32.totalorder %s97, %s98
      %p112 = scmp.eq.s32.totalorder %s15, 1
      %p113 = por %p111, %p112
      %p115 = scmp.ne.s32.totalorder %s98, %s114
      %p116 = scmp.eq.s32.totalorder %s15, 0
      %p117 = por %p115, %p116
      %s118 = ssub.s32 %s16, %s35
      %s119 = ssub.s32 %s17, %s31
      %s120 = sor.u32 %s118, %s119
      %p121 = scmp.eq.s32.totalorder %s120, 0
      %s123 = sadd.s32 %s122, 1
      %s124 = scalar_select %p121, %s122, %s123
      %p127 = pneg %p121
      %p128 = scmp.eq.s32.totalorder %s9, 1
      %p129 = por %p127, %p128
      %p130 = scmp.ne.s32.totalorder %s122, %s125
      %p131 = scmp.eq.s32.totalorder %s9, 0
      %p132 = por %p130, %p131
      %p133 = scmp.ne.s32.totalorder %s122, %s125
      %p134 = scmp.eq.s32.totalorder %s14, 1
      %p135 = por %p133, %p134
      %p136 = scmp.ne.s32.totalorder %s125, %s126
      %p137 = scmp.eq.s32.totalorder %s14, 0
      %p138 = por %p136, %p137
      %p139 = scmp.ne.s32.totalorder %s125, %s126
      %p140 = scmp.eq.s32.totalorder %s15, 1
      %p141 = por %p139, %p140
      %p143 = scmp.ne.s32.totalorder %s126, %s142
      %p144 = scmp.eq.s32.totalorder %s15, 0
      %p145 = por %p143, %p144
      %p146 = scmp.le.s32.totalorder 1, %s9
      %p147 = scmp.lt.s32.totalorder %s9, 3
      %p148 = pnand %p146, %p147
      %p149 = pneg %p148
      // Predicated region
      $region9: #{lqvit_forward.8} parent=5 // pred_check
        _
      $region10: #{lqvit_forward.8} parent=5 // pred_check_branch
        %151 = sbr.rel (%p148) target = $region12
      $region11: #{lqvit_forward.8} parent=5 // pred_region
        %s152 = ssub.s32 %s9, 1
        // Predicated region
        $region13: #{lqvit_forward.8} parent=11 // pred_check
          %p153 = pneg %p56
        $region14: #{lqvit_forward.8} parent=11 // pred_check_branch
          %155 = sbr.rel (%p153) target = $region16
        $region15: #{lqvit_forward.8} parent=11 // pred_region
          %s156 = smul.u32 8, %s19
          %p157 = scmp.lt.s32.totalorder %s156, 7
          %s158 = scalar_select %p157, %s156, 7
          %p159 = scmp.lt.s32.totalorder %s21, 0
          %s160 = scalar_select %p159, %s21, 0
          %s161 = sadd.s32 %s160, %s158
          %s162 = smul.addr %s161, 4
          %s163 = scalar_lea.vmem %s0, %s162
          %s164 = smul.u32 8, %s19
        $region16: #{lqvit_forward.8} parent=11 // pred_fallthru
          _
        // Predicated region
        $region17: #{lqvit_forward.8} parent=11 // pred_check
          %p165 = pneg %p110
        $region18: #{lqvit_forward.8} parent=11 // pred_check_branch
          %167 = sbr.rel (%p165) target = $region20
        $region19: #{lqvit_forward.8} parent=11 // pred_region
          %s168 = smul.u32 8, %s19
          %p169 = scmp.lt.s32.totalorder %s168, 7
          %s170 = scalar_select %p169, %s168, 7
          %s171 = smul.addr %s170, 8
          %s172 = scalar_lea.vmem %s2, %s171
          %s173 = smul.u32 8, %s19
        $region20: #{lqvit_forward.8} parent=11 // pred_fallthru
          _
      $region12: #{lqvit_forward.8} parent=5 // pred_fallthru
        _
      %p174 = scmp.lt.s32.totalorder %s9, 2
      // Predicated region
      $region21: #{lqvit_forward.8} parent=5 // pred_check
        %p175 = pneg %p174
      $region22: #{lqvit_forward.8} parent=5 // pred_check_branch
        %177 = sbr.rel (%p175) target = $region24
      $region23: #{lqvit_forward.8} parent=5 // pred_region
        // Predicated region
        $region25: #{lqvit_forward.8} parent=23 // pred_check
          %p178 = pneg %p78
        $region26: #{lqvit_forward.8} parent=23 // pred_check_branch
          %180 = sbr.rel (%p178) target = $region28
        $region27: #{lqvit_forward.8} parent=23 // pred_region
          %s181 = sand.u32 %s68, 1
          %s182 = sand.u32 %s68, 1
          %s183 = smul.addr %s182, 16
          %s184 = scalar_lea.vmem [#allocation3], %s183
          %s185 = smul.u32 4, %s18
          %s186 = smul.addr %s185, 2
          %s187 = sadd.s32 %s17, %s186
          %s188 = smul.addr %s187, 4
          %s189 = scalar_lea.vmem %s1, %s188
          // Predicated region
          $region29: #{lqvit_forward.8} parent=27 // pred_check
            _
          $region30: #{lqvit_forward.8} parent=27 // pred_check_branch
            %191 = sbr.rel (0) target = $region32
          $region31: #{lqvit_forward.8} parent=27 // pred_region
            // Predicated region
            $region33: #{lqvit_forward.8} parent=31 // pred_check
              _
            $region34: #{lqvit_forward.8} parent=31 // pred_check_branch
              %193 = sbr.rel target = $region36
            $region35: #{lqvit_forward.8} parent=31 // pred_region
              // Predicated region
              $region48: #{lqvit_forward.8} parent=35 // pred_check
                _
              $region49: #{lqvit_forward.8} parent=35 // pred_check_branch
                %214 = sbr.rel (0) target = $region51
              $region50: #{lqvit_forward.8} parent=35 // pred_region
                loop: start=0, step=1, limit=1
                $region52: #{lqvit_forward.8} parent=50 // loop_pre_header
                  _
                $region53: #{lqvit_forward.8} parent=50 // loop_header
                  %s216 = sphi 0, %s220
                  %p217 = scmp.ge.s32.totalorder %s216, 1
                  %s221 = sphi %s189, %s189
                  %s222 = sphi %s184, %s184
                $region54: #{lqvit_forward.8} parent=50 // loop_header_branch
                  %219 = sbr.rel (%p217) target = $region58
                $region55: #{lqvit_forward.8} parent=50 // loop_body
                  _
                $region56: #{lqvit_forward.8} parent=50 // loop_footer
                  %s220 = sadd.s32 1, %s216
                $region57: #{lqvit_forward.8} parent=50 // loop_footer_branch
                  %215 = sbr.rel target = $region53
                $region58: #{lqvit_forward.8} parent=50 // loop_exit
                  _
                loop: start=0, step=1, limit=1
                $region59: #{lqvit_forward.8} parent=50 // loop_pre_header
                  _
                $region60: #{lqvit_forward.8} parent=50 // loop_header
                  %s225 = sphi 0, %s229
                  %p226 = scmp.ge.s32.totalorder %s225, 1
                  %s230 = sphi %s189, %s189
                  %s231 = sphi %s184, %s184
                $region61: #{lqvit_forward.8} parent=50 // loop_header_branch
                  %228 = sbr.rel (%p226) target = $region65
                $region62: #{lqvit_forward.8} parent=50 // loop_body
                  %v232 = vld [vmem:[%s230] sm:$0xf]
                  %233 = vst [vmem:[%s231] sm:$0xf] %v232
                  %v234 = vld [vmem:[%s230 + $0x8] sm:$0xf]
                  %235 = vst [vmem:[%s231 + $0x4] sm:$0xf] %v234
                  %v236 = vld [vmem:[%s230 + $0x10] sm:$0xf]
                  %237 = vst [vmem:[%s231 + $0x8] sm:$0xf] %v236
                  %v238 = vld [vmem:[%s230 + $0x18] sm:$0xf]
                  %239 = vst [vmem:[%s231 + $0xc] sm:$0xf] %v238
                $region63: #{lqvit_forward.8} parent=50 // loop_footer
                  %s229 = sadd.s32 1, %s225
                $region64: #{lqvit_forward.8} parent=50 // loop_footer_branch
                  %224 = sbr.rel target = $region60
                $region65: #{lqvit_forward.8} parent=50 // loop_exit
                  _
              $region51: #{lqvit_forward.8} parent=35 // pred_fallthru
                _
            $region36: #{lqvit_forward.8} parent=31 // pred_fallthru
              _
            // Predicated region
            $region37: #{lqvit_forward.8} parent=31 // pred_check
              _
            $region38: #{lqvit_forward.8} parent=31 // pred_check_branch
              %195 = sbr.rel (0) target = $region40
            $region39: #{lqvit_forward.8} parent=31 // pred_region
              loop: start=0, step=1, limit=1
              $region41: #{lqvit_forward.8} parent=39 // loop_pre_header
                _
              $region42: #{lqvit_forward.8} parent=39 // loop_header
                %s198 = sphi 0, %s202
                %p199 = scmp.ge.s32.totalorder %s198, 1
                %s203 = sphi %s189, %s189
                %s204 = sphi %s184, %s184
              $region43: #{lqvit_forward.8} parent=39 // loop_header_branch
                %201 = sbr.rel (%p199) target = $region47
              $region44: #{lqvit_forward.8} parent=39 // loop_body
                %v205 = vld [vmem:[%s203] sm:$0xf]
                %206 = vst [vmem:[%s204] sm:$0xf] %v205
                %v207 = vld [vmem:[%s203 + $0x8] sm:$0xf]
                %208 = vst [vmem:[%s204 + $0x4] sm:$0xf] %v207
                %v209 = vld [vmem:[%s203 + $0x10] sm:$0xf]
                %210 = vst [vmem:[%s204 + $0x8] sm:$0xf] %v209
                %v211 = vld [vmem:[%s203 + $0x18] sm:$0xf]
                %212 = vst [vmem:[%s204 + $0xc] sm:$0xf] %v211
              $region45: #{lqvit_forward.8} parent=39 // loop_footer
                %s202 = sadd.s32 1, %s198
              $region46: #{lqvit_forward.8} parent=39 // loop_footer_branch
                %197 = sbr.rel target = $region42
              $region47: #{lqvit_forward.8} parent=39 // loop_exit
                _
            $region40: #{lqvit_forward.8} parent=31 // pred_fallthru
              _
          $region32: #{lqvit_forward.8} parent=27 // pred_fallthru
            _
          %240 = vnop
        $region28: #{lqvit_forward.8} parent=23 // pred_fallthru
          _
      $region24: #{lqvit_forward.8} parent=5 // pred_fallthru
        _
      %p241 = scmp.le.s32.totalorder 1, %s9
      %p242 = scmp.lt.s32.totalorder %s9, 3
      %p243 = pnand %p241, %p242
      %p244 = pneg %p243
      // Predicated region
      $region66: #{lqvit_forward.8} parent=5 // pred_check
        _
      $region67: #{lqvit_forward.8} parent=5 // pred_check_branch
        %246 = sbr.rel (%p243) target = $region69
      $region68: #{lqvit_forward.8} parent=5 // pred_region
        %s247 = ssub.s32 %s9, 1
        %s248 = sand.u32 %s71, 1
        %s249 = sand.u32 %s71, 1
        %s250 = smul.addr %s249, 16
        %s251 = scalar_lea.vmem [#allocation3], %s250
        // Predicated region
        $region70: #{lqvit_forward.8} parent=68 // pred_check
          %p252 = pneg %p84
        $region71: #{lqvit_forward.8} parent=68 // pred_check_branch
          %254 = sbr.rel (%p252) target = $region73
        $region72: #{lqvit_forward.8} parent=68 // pred_region
          _
        $region73: #{lqvit_forward.8} parent=68 // pred_fallthru
          _
        %s255 = smul.u32 8, %s19
        %p256 = scmp.lt.s32.totalorder %s255, 7
        %s257 = scalar_select %p256, %s255, 7
        %p258 = scmp.lt.s32.totalorder %s21, 0
        %s259 = scalar_select %p258, %s21, 0
        %s260 = sadd.s32 %s259, %s257
        %s261 = smul.addr %s260, 4
        %s262 = scalar_lea.vmem %s0, %s261
        %p263 = pneg %p56
        %p264 = pneg %p53
        %s265 = sand.u32 %s71, 1
        %s266 = sand.u32 %s71, 1
        %s267 = smul.addr %s266, 16
        %s268 = scalar_lea.vmem [#allocation3], %s267
        %p269 = pneg %p84
        %p270 = pneg %p81
        %s271 = smul.u32 8, %s19
        %p272 = scmp.lt.s32.totalorder %s271, 7
        %s273 = scalar_select %p272, %s271, 7
        %s274 = smul.addr %s273, 8
        %s275 = scalar_lea.vmem %s2, %s274
        %p276 = pneg %p110
        %p277 = pneg %p107
        %p278 = pneg %p138
        %p279 = pneg %p135
        %s280 = sand.u32 %s125, 1
        %s281 = sand.u32 %s125, 1
        %s282 = smul.addr %s281, 32
        %s283 = scalar_lea.vmem [#allocation4], %s282
        %s284 = smul.u32 8, %s19
        %p285 = scmp.lt.s32.totalorder %s284, 7
        %s286 = scalar_select %p285, %s284, 7
        %p287 = scmp.lt.s32.totalorder %s21, 0
        %s288 = scalar_select %p287, %s21, 0
        %s289 = sadd.s32 %s288, %s286
        %s290 = smul.addr %s289, 4
        %s291 = scalar_lea.vmem %s0, %s290
        %s292 = smul.u32 8, %s19
        %s293 = smul.u32 4, %s21
        %s294 = smul.u32 8, %s19
        %p295 = scmp.lt.s32.totalorder %s294, 7
        %s296 = scalar_select %p295, %s294, 7
        %s297 = smul.addr %s296, 8
        %s298 = scalar_lea.vmem %s2, %s297
        %s299 = smul.u32 8, %s19
        %s300 = smul.u32 8, %s19
        %p302 = scmp.eq.s32.totalorder %s21, 0
        // Predicated region
        $region74: #{lqvit_forward.8} parent=68 // pred_check
          %p303 = pneg %p302
        $region75: #{lqvit_forward.8} parent=68 // pred_check_branch
          %305 = sbr.rel (%p303) target = $region77
        $region76: #{lqvit_forward.8} parent=68 // pred_region
          %306 = vst [vmem:[#allocation2] sm:$0xff] 0.0
          %307 = vst [vmem:[#allocation2 + $0x8] sm:$0xff] 0.0
          %308 = vst [vmem:[#allocation2 + $0x10] sm:$0xff] 0.0
          %309 = vst [vmem:[#allocation2 + $0x18] sm:$0xff] 0.0
          %310 = vst [vmem:[#allocation2 + $0x20] sm:$0xff] 0.0
          %311 = vst [vmem:[#allocation2 + $0x28] sm:$0xff] 0.0
          %312 = vst [vmem:[#allocation2 + $0x30] sm:$0xff] 0.0
          %313 = vst [vmem:[#allocation2 + $0x38] sm:$0xff] 0.0
        $region77: #{lqvit_forward.8} parent=68 // pred_fallthru
          _
        %v314 = vld [vmem:[#allocation2] sm:$0xff]
        %v315 = vld [vmem:[#allocation2 + $0x8] sm:$0xff]
        %v316 = vld [vmem:[#allocation2 + $0x10] sm:$0xff]
        %v317 = vld [vmem:[#allocation2 + $0x18] sm:$0xff]
        %v318 = vld [vmem:[#allocation2 + $0x20] sm:$0xff]
        %v319 = vld [vmem:[#allocation2 + $0x28] sm:$0xff]
        %v320 = vld [vmem:[#allocation2 + $0x30] sm:$0xff]
        %v321 = vld [vmem:[#allocation2 + $0x38] sm:$0xff]
        %v322 = vld [vmem:[%s291] sm:$0xf]
        %v323 = vld [vmem:[%s291 + $0x4] sm:$0xf]
        %v324 = vld [vmem:[%s291 + $0x8] sm:$0xf]
        %v325 = vld [vmem:[%s291 + $0xc] sm:$0xf]
        %v326 = vld [vmem:[%s291 + $0x10] sm:$0xf]
        %v327 = vld [vmem:[%s291 + $0x14] sm:$0xf]
        %v328 = vld [vmem:[%s291 + $0x18] sm:$0xf]
        %v329 = vld [vmem:[%s291 + $0x1c] sm:$0xf]
        %v330 = vld [vmem:[%s251] sm:$0xf]
        %v331 = vld [vmem:[%s251 + $0x4] sm:$0xf]
        %v332 = vld [vmem:[%s251 + $0x8] sm:$0xf]
        %v333 = vld [vmem:[%s251 + $0xc] sm:$0xf]
        %v342 = vunpack.c.l.b16 %v322
        %v343 = vunpack.c.l.b16 %v323
        %v344 = vunpack.c.l.b16 %v324
        %v345 = vunpack.c.l.b16 %v325
        %v346 = vunpack.c.l.b16 %v326
        %v347 = vunpack.c.l.b16 %v327
        %v348 = vunpack.c.l.b16 %v328
        %v349 = vunpack.c.l.b16 %v329
        %v350 = vpack.c.b16 %v343, %v342
        %v351 = vpack.c.b16 %v345, %v344
        %v352 = vpack.c.b16 %v347, %v346
        %v353 = vpack.c.b16 %v349, %v348
        %v358 = vunpack.c.l.b16 %v330
        %v359 = vunpack.c.l.b16 %v331
        %v360 = vunpack.c.l.b16 %v332
        %v361 = vunpack.c.l.b16 %v333
        %v362 = vpack.c.b16 %v359, %v358
        %v363 = vpack.c.b16 %v361, %v360
        %vm366 = vcmask 261120
        %v368 = vsel %vm366, %v350, 0
        %v371 = vsel %vm366, %v351, 0
        %v374 = vsel %vm366, %v352, 0
        %v377 = vsel %vm366, %v353, 0
        %379 = vmatprep.subr.bf16.mxu0 0
        %380 = vmatpush1.bf16.msra.mxu0 %v362
        %381 = vmatprep.subr.bf16.mxu0 0
        %382 = vmatpush1.bf16.msra.mxu0 %v363
        %383 = vmatprep.subr.bf16.mxu0 0
        %384 = vmatpush1.bf16.msra.mxu0 0
        %385 = vmatprep.subr.bf16.mxu0 0
        %386 = vmatpush1.bf16.msra.mxu0 0
        %387 = vmatprep.subr.bf16.mxu0 0
        %388 = vmatpush1.bf16.msra.mxu0 0
        %389 = vmatprep.subr.bf16.mxu0 0
        %390 = vmatpush1.bf16.msra.mxu0 0
        %391 = vmatprep.subr.bf16.mxu0 0
        %392 = vmatpush1.bf16.msra.mxu0 0
        %393 = vmatprep.subr.bf16.mxu0 0
        %394 = vmatpush1.bf16.msra.mxu0 0
        %395 = vmatprep.subr.bf16.mxu0 0
        %396 = vmatpush1.bf16.msra.mxu0 0
        %397 = vmatprep.subr.bf16.mxu0 0
        %398 = vmatpush1.bf16.msra.mxu0 0
        %399 = vmatprep.subr.bf16.mxu0 0
        %400 = vmatpush1.bf16.msra.mxu0 0
        %401 = vmatprep.subr.bf16.mxu0 0
        %402 = vmatpush1.bf16.msra.mxu0 0
        %403 = vmatprep.subr.bf16.mxu0 0
        %404 = vmatpush1.bf16.msra.mxu0 0
        %405 = vmatprep.subr.bf16.mxu0 0
        %406 = vmatpush1.bf16.msra.mxu0 0
        %407 = vmatprep.subr.bf16.mxu0 0
        %408 = vmatpush1.bf16.msra.mxu0 0
        %409 = vmatprep.subr.bf16.mxu0 0
        %410 = vmatpush1.bf16.msra.mxu0 0
        %411 = vmatprep.mubr.bf16.mxu0 0
        %412 = vmatmul.mubr.bf16.gmra.mrb[0].mxu0 %v368
        %v413 = vpop.f32.mrb[0].mxu0
        %v414 = vadd.f32 0.0, %v413
        %v415 = vpop.f32.mrb[0].mxu0
        %v416 = vpop.f32.mrb[0].mxu0
        %v417 = vadd.f32 0.0, %v416
        %v418 = vpop.f32.mrb[0].mxu0
        %419 = vmatprep.mubr.bf16.mxu0 0
        %420 = vmatmul.mubr.bf16.gmra.mrb[0].mxu0 %v371
        %v421 = vpop.f32.mrb[0].mxu0
        %v422 = vadd.f32 0.0, %v421
        %v423 = vpop.f32.mrb[0].mxu0
        %v424 = vpop.f32.mrb[0].mxu0
        %v425 = vadd.f32 0.0, %v424
        %v426 = vpop.f32.mrb[0].mxu0
        %427 = vmatprep.mubr.bf16.mxu0 0
        %428 = vmatmul.mubr.bf16.gmra.mrb[0].mxu0 %v374
        %v429 = vpop.f32.mrb[0].mxu0
        %v430 = vadd.f32 0.0, %v429
        %v431 = vpop.f32.mrb[0].mxu0
        %v432 = vpop.f32.mrb[0].mxu0
        %v433 = vadd.f32 0.0, %v432
        %v434 = vpop.f32.mrb[0].mxu0
        %435 = vmatprep.mubr.bf16.mxu0 0
        %436 = vmatmul.mubr.bf16.gmra.mrb[0].mxu0 %v377
        %v437 = vpop.f32.mrb[0].mxu0
        %v438 = vadd.f32 0.0, %v437
        %v439 = vpop.f32.mrb[0].mxu0
        %v440 = vpop.f32.mrb[0].mxu0
        %v441 = vadd.f32 0.0, %v440
        %v442 = vpop.f32.mrb[0].mxu0
        %443 = vdwg.mxu0
        %v444 = vadd.f32 %v314, %v414
        %v445 = vadd.f32 %v315, %v417
        %v446 = vadd.f32 %v316, %v422
        %v447 = vadd.f32 %v317, %v425
        %v448 = vadd.f32 %v318, %v430
        %v449 = vadd.f32 %v319, %v433
        %v450 = vadd.f32 %v320, %v438
        %v451 = vadd.f32 %v321, %v441
        %452 = vst [vmem:[#allocation2] sm:$0xff] %v444
        %453 = vst [vmem:[#allocation2 + $0x8] sm:$0xff] %v445
        %454 = vst [vmem:[#allocation2 + $0x10] sm:$0xff] %v446
        %455 = vst [vmem:[#allocation2 + $0x18] sm:$0xff] %v447
        %456 = vst [vmem:[#allocation2 + $0x20] sm:$0xff] %v448
        %457 = vst [vmem:[#allocation2 + $0x28] sm:$0xff] %v449
        %458 = vst [vmem:[#allocation2 + $0x30] sm:$0xff] %v450
        %459 = vst [vmem:[#allocation2 + $0x38] sm:$0xff] %v451
        // Predicated region
        $region78: #{lqvit_forward.8} parent=68 // pred_check
          %p460 = pneg %p302
        $region79: #{lqvit_forward.8} parent=68 // pred_check_branch
          %462 = sbr.rel (%p460) target = $region81
        $region80: #{lqvit_forward.8} parent=68 // pred_region
          %v463 = vld [vmem:[#allocation2] sm:$0xff]
          %v464 = vld [vmem:[#allocation2 + $0x8] sm:$0xff]
          %v465 = vld [vmem:[#allocation2 + $0x10] sm:$0xff]
          %v466 = vld [vmem:[#allocation2 + $0x18] sm:$0xff]
          %v467 = vld [vmem:[#allocation2 + $0x20] sm:$0xff]
          %v468 = vld [vmem:[#allocation2 + $0x28] sm:$0xff]
          %v469 = vld [vmem:[#allocation2 + $0x30] sm:$0xff]
          %v470 = vld [vmem:[#allocation2 + $0x38] sm:$0xff]
          %v471 = vld [vmem:[%s298] sm:$0xff]
          %v472 = vld [vmem:[%s298 + $0x8] sm:$0xff]
          %v473 = vld [vmem:[%s298 + $0x10] sm:$0xff]
          %v474 = vld [vmem:[%s298 + $0x18] sm:$0xff]
          %v475 = vld [vmem:[%s298 + $0x20] sm:$0xff]
          %v476 = vld [vmem:[%s298 + $0x28] sm:$0xff]
          %v477 = vld [vmem:[%s298 + $0x30] sm:$0xff]
          %v478 = vld [vmem:[%s298 + $0x38] sm:$0xff]
          %480 = vset.pattern.permute.xlu0 0
          %481 = vperm.xlu0 %480, %v471
          %v482 = vpop.permute.xlu0 %481
          %485 = vset.pattern.permute.xlu0 0
          %486 = vperm.xlu0 %485, %v472
          %v487 = vpop.permute.xlu0 %486
          %490 = vset.pattern.permute.xlu0 0
          %491 = vperm.xlu0 %490, %v473
          %v492 = vpop.permute.xlu0 %491
          %495 = vset.pattern.permute.xlu0 0
          %496 = vperm.xlu0 %495, %v474
          %v497 = vpop.permute.xlu0 %496
          %500 = vset.pattern.permute.xlu0 0
          %501 = vperm.xlu0 %500, %v475
          %v502 = vpop.permute.xlu0 %501
          %505 = vset.pattern.permute.xlu0 0
          %506 = vperm.xlu0 %505, %v476
          %v507 = vpop.permute.xlu0 %506
          %510 = vset.pattern.permute.xlu0 0
          %511 = vperm.xlu0 %510, %v477
          %v512 = vpop.permute.xlu0 %511
          %515 = vset.pattern.permute.xlu0 0
          %516 = vperm.xlu0 %515, %v478
          %v517 = vpop.permute.xlu0 %516
          %v519 = vadd.f32 %v463, %v482
          %v520 = vadd.f32 %v464, %v487
          %v521 = vadd.f32 %v465, %v492
          %v522 = vadd.f32 %v466, %v497
          %v523 = vadd.f32 %v467, %v502
          %v524 = vadd.f32 %v468, %v507
          %v525 = vadd.f32 %v469, %v512
          %v526 = vadd.f32 %v470, %v517
          %v527 = vpack.c.bf16 %v520, %v519
          %v528 = vpack.c.bf16 %v522, %v521
          %v529 = vpack.c.bf16 %v524, %v523
          %v530 = vpack.c.bf16 %v526, %v525
          %v535 = vunpack.c.l.b16 %v527
          %v536 = vunpack.c.h.b16 %v527
          %v537 = vunpack.c.l.b16 %v528
          %v538 = vunpack.c.h.b16 %v528
          %v539 = vunpack.c.l.b16 %v529
          %v540 = vunpack.c.h.b16 %v529
          %v541 = vunpack.c.l.b16 %v530
          %v542 = vunpack.c.h.b16 %v530
          %v543 = vpack.c.b16 %v535, %v535
          %v544 = vpack.c.b16 %v536, %v536
          %v545 = vpack.c.b16 %v537, %v537
          %v546 = vpack.c.b16 %v538, %v538
          %v547 = vpack.c.b16 %v539, %v539
          %v548 = vpack.c.b16 %v540, %v540
          %v549 = vpack.c.b16 %v541, %v541
          %v550 = vpack.c.b16 %v542, %v542
          %559 = vst [vmem:[%s283] sm:$0xf] %v543
          %560 = vst [vmem:[%s283 + $0x4] sm:$0xf] %v544
          %561 = vst [vmem:[%s283 + $0x8] sm:$0xf] %v545
          %562 = vst [vmem:[%s283 + $0xc] sm:$0xf] %v546
          %563 = vst [vmem:[%s283 + $0x10] sm:$0xf] %v547
          %564 = vst [vmem:[%s283 + $0x14] sm:$0xf] %v548
          %565 = vst [vmem:[%s283 + $0x18] sm:$0xf] %v549
          %566 = vst [vmem:[%s283 + $0x1c] sm:$0xf] %v550
        $region81: #{lqvit_forward.8} parent=68 // pred_fallthru
          _
        %s567 = sand.u32 %s125, 1
        %s568 = sand.u32 %s125, 1
        %s569 = smul.addr %s568, 32
        %s570 = scalar_lea.vmem [#allocation4], %s569
        // Predicated region
        $region82: #{lqvit_forward.8} parent=68 // pred_check
          %p571 = pneg %p135
        $region83: #{lqvit_forward.8} parent=68 // pred_check_branch
          %573 = sbr.rel (%p571) target = $region85
        $region84: #{lqvit_forward.8} parent=68 // pred_region
          %s574 = smul.u32 8, %s19
          %s575 = smul.addr %s574, 2
          %s576 = sadd.s32 %s20, %s575
          %s577 = smul.addr %s576, 4
          %s578 = scalar_lea.vmem %s3, %s577
          // Predicated region
          $region86: #{lqvit_forward.8} parent=84 // pred_check
            _
          $region87: #{lqvit_forward.8} parent=84 // pred_check_branch
            %580 = sbr.rel (0) target = $region89
          $region88: #{lqvit_forward.8} parent=84 // pred_region
            // Predicated region
            $region90: #{lqvit_forward.8} parent=88 // pred_check
              _
            $region91: #{lqvit_forward.8} parent=88 // pred_check_branch
              %582 = sbr.rel target = $region93
            $region92: #{lqvit_forward.8} parent=88 // pred_region
              // Predicated region
              $region105: #{lqvit_forward.8} parent=92 // pred_check
                _
              $region106: #{lqvit_forward.8} parent=92 // pred_check_branch
                %611 = sbr.rel (0) target = $region108
              $region107: #{lqvit_forward.8} parent=92 // pred_region
                loop: start=0, step=1, limit=1
                $region109: #{lqvit_forward.8} parent=107 // loop_pre_header
                  _
                $region110: #{lqvit_forward.8} parent=107 // loop_header
                  %s613 = sphi 0, %s617
                  %p614 = scmp.ge.s32.totalorder %s613, 1
                  %s618 = sphi %s570, %s570
                  %s619 = sphi %s578, %s578
                $region111: #{lqvit_forward.8} parent=107 // loop_header_branch
                  %616 = sbr.rel (%p614) target = $region115
                $region112: #{lqvit_forward.8} parent=107 // loop_body
                  _
                $region113: #{lqvit_forward.8} parent=107 // loop_footer
                  %s617 = sadd.s32 1, %s613
                $region114: #{lqvit_forward.8} parent=107 // loop_footer_branch
                  %612 = sbr.rel target = $region110
                $region115: #{lqvit_forward.8} parent=107 // loop_exit
                  _
                loop: start=0, step=1, limit=1
                $region116: #{lqvit_forward.8} parent=107 // loop_pre_header
                  _
                $region117: #{lqvit_forward.8} parent=107 // loop_header
                  %s622 = sphi 0, %s626
                  %p623 = scmp.ge.s32.totalorder %s622, 1
                  %s627 = sphi %s570, %s570
                  %s628 = sphi %s578, %s578
                $region118: #{lqvit_forward.8} parent=107 // loop_header_branch
                  %625 = sbr.rel (%p623) target = $region122
                $region119: #{lqvit_forward.8} parent=107 // loop_body
                  %v629 = vld [vmem:[%s627] sm:$0xf]
                  %630 = vst [vmem:[%s628] sm:$0xf] %v629
                  %v631 = vld [vmem:[%s627 + $0x4] sm:$0xf]
                  %632 = vst [vmem:[%s628 + $0x8] sm:$0xf] %v631
                  %v633 = vld [vmem:[%s627 + $0x8] sm:$0xf]
                  %634 = vst [vmem:[%s628 + $0x10] sm:$0xf] %v633
                  %v635 = vld [vmem:[%s627 + $0xc] sm:$0xf]
                  %636 = vst [vmem:[%s628 + $0x18] sm:$0xf] %v635
                  %v637 = vld [vmem:[%s627 + $0x10] sm:$0xf]
                  %638 = vst [vmem:[%s628 + $0x20] sm:$0xf] %v637
                  %v639 = vld [vmem:[%s627 + $0x14] sm:$0xf]
                  %640 = vst [vmem:[%s628 + $0x28] sm:$0xf] %v639
                  %v641 = vld [vmem:[%s627 + $0x18] sm:$0xf]
                  %642 = vst [vmem:[%s628 + $0x30] sm:$0xf] %v641
                  %v643 = vld [vmem:[%s627 + $0x1c] sm:$0xf]
                  %644 = vst [vmem:[%s628 + $0x38] sm:$0xf] %v643
                $region120: #{lqvit_forward.8} parent=107 // loop_footer
                  %s626 = sadd.s32 1, %s622
                $region121: #{lqvit_forward.8} parent=107 // loop_footer_branch
                  %621 = sbr.rel target = $region117
                $region122: #{lqvit_forward.8} parent=107 // loop_exit
                  _
              $region108: #{lqvit_forward.8} parent=92 // pred_fallthru
                _
            $region93: #{lqvit_forward.8} parent=88 // pred_fallthru
              _
            // Predicated region
            $region94: #{lqvit_forward.8} parent=88 // pred_check
              _
            $region95: #{lqvit_forward.8} parent=88 // pred_check_branch
              %584 = sbr.rel (0) target = $region97
            $region96: #{lqvit_forward.8} parent=88 // pred_region
              loop: start=0, step=1, limit=1
              $region98: #{lqvit_forward.8} parent=96 // loop_pre_header
                _
              $region99: #{lqvit_forward.8} parent=96 // loop_header
                %s587 = sphi 0, %s591
                %p588 = scmp.ge.s32.totalorder %s587, 1
                %s592 = sphi %s570, %s570
                %s593 = sphi %s578, %s578
              $region100: #{lqvit_forward.8} parent=96 // loop_header_branch
                %590 = sbr.rel (%p588) target = $region104
              $region101: #{lqvit_forward.8} parent=96 // loop_body
                %v594 = vld [vmem:[%s592] sm:$0xf]
                %595 = vst [vmem:[%s593] sm:$0xf] %v594
                %v596 = vld [vmem:[%s592 + $0x4] sm:$0xf]
                %597 = vst [vmem:[%s593 + $0x8] sm:$0xf] %v596
                %v598 = vld [vmem:[%s592 + $0x8] sm:$0xf]
                %599 = vst [vmem:[%s593 + $0x10] sm:$0xf] %v598
                %v600 = vld [vmem:[%s592 + $0xc] sm:$0xf]
                %601 = vst [vmem:[%s593 + $0x18] sm:$0xf] %v600
                %v602 = vld [vmem:[%s592 + $0x10] sm:$0xf]
                %603 = vst [vmem:[%s593 + $0x20] sm:$0xf] %v602
                %v604 = vld [vmem:[%s592 + $0x14] sm:$0xf]
                %605 = vst [vmem:[%s593 + $0x28] sm:$0xf] %v604
                %v606 = vld [vmem:[%s592 + $0x18] sm:$0xf]
                %607 = vst [vmem:[%s593 + $0x30] sm:$0xf] %v606
                %v608 = vld [vmem:[%s592 + $0x1c] sm:$0xf]
                %609 = vst [vmem:[%s593 + $0x38] sm:$0xf] %v608
              $region102: #{lqvit_forward.8} parent=96 // loop_footer
                %s591 = sadd.s32 1, %s587
              $region103: #{lqvit_forward.8} parent=96 // loop_footer_branch
                %586 = sbr.rel target = $region99
              $region104: #{lqvit_forward.8} parent=96 // loop_exit
                _
            $region97: #{lqvit_forward.8} parent=88 // pred_fallthru
              _
          $region89: #{lqvit_forward.8} parent=84 // pred_fallthru
            _
          %645 = vnop
        $region85: #{lqvit_forward.8} parent=68 // pred_fallthru
          _
      $region69: #{lqvit_forward.8} parent=5 // pred_fallthru
        _
      %p646 = scmp.le.s32.totalorder 2, %s9
      // Predicated region
      $region123: #{lqvit_forward.8} parent=5 // pred_check
        %p647 = pneg %p646
      $region124: #{lqvit_forward.8} parent=5 // pred_check_branch
        %649 = sbr.rel (%p647) target = $region126
      $region125: #{lqvit_forward.8} parent=5 // pred_region
        %s650 = ssub.s32 %s9, 2
        // Predicated region
        $region127: #{lqvit_forward.8} parent=125 // pred_check
          %p651 = pneg %p141
        $region128: #{lqvit_forward.8} parent=125 // pred_check_branch
          %653 = sbr.rel (%p651) target = $region130
        $region129: #{lqvit_forward.8} parent=125 // pred_region
          %s654 = sand.u32 %s126, 1
          %s655 = sand.u32 %s126, 1
          %s656 = smul.addr %s655, 32
          %s657 = scalar_lea.vmem [#allocation4], %s656
        $region130: #{lqvit_forward.8} parent=125 // pred_fallthru
          _
      $region126: #{lqvit_forward.8} parent=5 // pred_fallthru
        _
    $region6: #{lqvit_forward.8} parent=1 // loop_footer
      %s13 = sadd.s32 1, %s9
    $region7: #{lqvit_forward.8} parent=1 // loop_footer_branch
      %8 = sbr.rel target = $region3
    $region8: #{lqvit_forward.8} parent=1 // loop_exit
      _

// kernel: lqvit_forward.9
$region0: #{lqvit_forward.9}
  #allocation0 [shape = 'u32[]', space=smem, size = 0x4, offset = 0x4, fixed_abs, tag = 'smem constant byte address 0x4 - core index']
  #allocation1 [shape = 'u32[144,128]{1,0:T(1,128)}', space=vmem, size = 0x12000, scoped, tag = 'internal scratch']
  #allocation2 [shape = 'f32[64,48]{1,0:T(8,128)}', space=vmem, size = 0x8000, scoped, tag = 'scratch operand']
  %s0 = inlined_call_operand.vmem [shape: bf16[128,128], index: 0, kind: input, shape index: {}]
  %s1 = inlined_call_operand.vmem [shape: bf16[128,48], index: 1, kind: input, shape index: {}]
  %s2 = inlined_call_operand.vmem [shape: f32[1,48], index: 2, kind: input, shape index: {}]
  %s3 = inlined_call_operand.vmem [shape: f32[128,48], index: 3, kind: output, shape index: {}]
  %s4 = sld [smem:[#allocation0]]
  $region53: #{lqvit_forward.9} parent=0
    _
  %s6 = ssub.s32 1, %s4
  %s7 = scalar_select 0, %s6, %s4
  loop: start=0, step=1, limit=4
  $region2: #{lqvit_forward.9} parent=0 // loop_pre_header
    _
  $region3: #{lqvit_forward.9} parent=0 // loop_header
    %s9 = sphi 0, %s13
    %p10 = scmp.ge.s32.totalorder %s9, 4
    %s16 = sphi 0, %s35
    %s17 = sphi 0, %s31
    %s18 = sphi 0, %s27
    %s19 = sphi 0, %s16
    %s20 = sphi 0, %s17
    %s21 = sphi 0, %s18
    %s22 = sphi 0, %s19
    %s23 = sphi 0, %s20
    %s24 = sphi 0, %s21
    %s40 = sphi 0, %s42
    %s43 = sphi 0, %s40
    %s44 = sphi 0, %s43
    %s60 = sphi 0, %s44
    %s68 = sphi 0, %s70
    %s71 = sphi 0, %s68
    %s72 = sphi 0, %s71
    %s88 = sphi 0, %s72
    %s94 = sphi 0, %s96
    %s97 = sphi 0, %s94
    %s98 = sphi 0, %s97
    %s114 = sphi 0, %s98
    %s122 = sphi 0, %s124
    %s125 = sphi 0, %s122
    %s126 = sphi 0, %s125
    %s142 = sphi 0, %s126
  $region4: #{lqvit_forward.9} parent=0 // loop_header_branch
    %12 = sbr.rel (%p10) target = $region8
  $region5: #{lqvit_forward.9} parent=0 // loop_body
    %s14 = ssub.s32 %s9, 1
    %s15 = ssub.s32 %s9, 2
    %s25 = sadd.s32 1, %s18
    %p26 = scmp.ge.s32.totalorder %s25, 1
    %s27 = scalar_select %p26, 0, %s25
    %s28 = sadd.s32 1, %s17
    %s29 = scalar_select %p26, %s28, %s17
    %p30 = scmp.ge.s32.totalorder %s29, 1
    %s31 = scalar_select %p30, 0, %s29
    %s32 = sadd.s32 1, %s16
    %s33 = scalar_select %p30, %s32, %s16
    %p34 = scmp.ge.s32.totalorder %s33, 2
    %s35 = scalar_select %p34, 0, %s33
    %s36 = ssub.s32 %s16, %s35
    %s37 = ssub.s32 %s18, %s27
    %s38 = sor.u32 %s36, %s37
    %p39 = scmp.eq.s32.totalorder %s38, 0
    %s41 = sadd.s32 %s40, 1
    %s42 = scalar_select %p39, %s40, %s41
    %p45 = pneg %p39
    %p46 = scmp.eq.s32.totalorder %s9, 1
    %p47 = por %p45, %p46
    %p48 = scmp.ne.s32.totalorder %s40, %s43
    %p49 = scmp.eq.s32.totalorder %s9, 0
    %p50 = por %p48, %p49
    %p51 = scmp.ne.s32.totalorder %s40, %s43
    %p52 = scmp.eq.s32.totalorder %s14, 1
    %p53 = por %p51, %p52
    %p54 = scmp.ne.s32.totalorder %s43, %s44
    %p55 = scmp.eq.s32.totalorder %s14, 0
    %p56 = por %p54, %p55
    %p57 = scmp.ne.s32.totalorder %s43, %s44
    %p58 = scmp.eq.s32.totalorder %s15, 1
    %p59 = por %p57, %p58
    %p61 = scmp.ne.s32.totalorder %s44, %s60
    %p62 = scmp.eq.s32.totalorder %s15, 0
    %p63 = por %p61, %p62
    %s64 = ssub.s32 %s18, %s27
    %s65 = ssub.s32 %s17, %s31
    %s66 = sor.u32 %s64, %s65
    %p67 = scmp.eq.s32.totalorder %s66, 0
    %s69 = sadd.s32 %s68, 1
    %s70 = scalar_select %p67, %s68, %s69
    %p73 = pneg %p67
    %p74 = scmp.eq.s32.totalorder %s9, 1
    %p75 = por %p73, %p74
    %p76 = scmp.ne.s32.totalorder %s68, %s71
    %p77 = scmp.eq.s32.totalorder %s9, 0
    %p78 = por %p76, %p77
    %p79 = scmp.ne.s32.totalorder %s68, %s71
    %p80 = scmp.eq.s32.totalorder %s14, 1
    %p81 = por %p79, %p80
    %p82 = scmp.ne.s32.totalorder %s71, %s72
    %p83 = scmp.eq.s32.totalorder %s14, 0
    %p84 = por %p82, %p83
    %p85 = scmp.ne.s32.totalorder %s71, %s72
    %p86 = scmp.eq.s32.totalorder %s15, 1
    %p87 = por %p85, %p86
    %p89 = scmp.ne.s32.totalorder %s72, %s88
    %p90 = scmp.eq.s32.totalorder %s15, 0
    %p91 = por %p89, %p90
    %s92 = ssub.s32 %s17, %s31
    %p93 = scmp.eq.s32.totalorder %s92, 0
    %s95 = sadd.s32 %s94, 1
    %s96 = scalar_select %p93, %s94, %s95
    %p99 = pneg %p93
    %p100 = scmp.eq.s32.totalorder %s9, 1
    %p101 = por %p99, %p100
    %p102 = scmp.ne.s32.totalorder %s94, %s97
    %p103 = scmp.eq.s32.totalorder %s9, 0
    %p104 = por %p102, %p103
    %p105 = scmp.ne.s32.totalorder %s94, %s97
    %p106 = scmp.eq.s32.totalorder %s14, 1
    %p107 = por %p105, %p106
    %p108 = scmp.ne.s32.totalorder %s97, %s98
    %p109 = scmp.eq.s32.totalorder %s14, 0
    %p110 = por %p108, %p109
    %p111 = scmp.ne.s32.totalorder %s97, %s98
    %p112 = scmp.eq.s32.totalorder %s15, 1
    %p113 = por %p111, %p112
    %p115 = scmp.ne.s32.totalorder %s98, %s114
    %p116 = scmp.eq.s32.totalorder %s15, 0
    %p117 = por %p115, %p116
    %s118 = ssub.s32 %s16, %s35
    %s119 = ssub.s32 %s17, %s31
    %s120 = sor.u32 %s118, %s119
    %p121 = scmp.eq.s32.totalorder %s120, 0
    %s123 = sadd.s32 %s122, 1
    %s124 = scalar_select %p121, %s122, %s123
    %p127 = pneg %p121
    %p128 = scmp.eq.s32.totalorder %s9, 1
    %p129 = por %p127, %p128
    %p130 = scmp.ne.s32.totalorder %s122, %s125
    %p131 = scmp.eq.s32.totalorder %s9, 0
    %p132 = por %p130, %p131
    %p133 = scmp.ne.s32.totalorder %s122, %s125
    %p134 = scmp.eq.s32.totalorder %s14, 1
    %p135 = por %p133, %p134
    %p136 = scmp.ne.s32.totalorder %s125, %s126
    %p137 = scmp.eq.s32.totalorder %s14, 0
    %p138 = por %p136, %p137
    %p139 = scmp.ne.s32.totalorder %s125, %s126
    %p140 = scmp.eq.s32.totalorder %s15, 1
    %p141 = por %p139, %p140
    %p143 = scmp.ne.s32.totalorder %s126, %s142
    %p144 = scmp.eq.s32.totalorder %s15, 0
    %p145 = por %p143, %p144
    %p146 = scmp.le.s32.totalorder 1, %s9
    %p147 = scmp.lt.s32.totalorder %s9, 3
    %p148 = pnand %p146, %p147
    %p149 = pneg %p148
    // Predicated region
    $region9: #{lqvit_forward.9} parent=5 // pred_check
      _
    $region10: #{lqvit_forward.9} parent=5 // pred_check_branch
      %151 = sbr.rel (%p148) target = $region12
    $region11: #{lqvit_forward.9} parent=5 // pred_region
      %s152 = ssub.s32 %s9, 1
      // Predicated region
      $region13: #{lqvit_forward.9} parent=11 // pred_check
        %p153 = pneg %p84
      $region14: #{lqvit_forward.9} parent=11 // pred_check_branch
        %155 = sbr.rel (%p153) target = $region16
      $region15: #{lqvit_forward.9} parent=11 // pred_region
        %s156 = smul.u32 16, %s21
        %p157 = scmp.lt.s32.totalorder %s156, 15
        %s158 = scalar_select %p157, %s156, 15
        %p159 = scmp.lt.s32.totalorder %s20, 0
        %s160 = scalar_select %p159, %s20, 0
        %s161 = sadd.s32 %s160, %s158
        %s162 = smul.addr %s161, 4
        %s163 = scalar_lea.vmem %s1, %s162
        %s164 = smul.u32 16, %s21
      $region16: #{lqvit_forward.9} parent=11 // pred_fallthru
        _
      // Predicated region
      $region17: #{lqvit_forward.9} parent=11 // pred_check
        %p165 = pneg %p110
      $region18: #{lqvit_forward.9} parent=11 // pred_check_branch
        %167 = sbr.rel (%p165) target = $region20
      $region19: #{lqvit_forward.9} parent=11 // pred_region
        %p168 = scmp.lt.s32.totalorder %s20, 0
        %s169 = scalar_select %p168, %s20, 0
        %s170 = scalar_lea.vmem %s2, %s169
      $region20: #{lqvit_forward.9} parent=11 // pred_fallthru
        _
    $region12: #{lqvit_forward.9} parent=5 // pred_fallthru
      _
    %p171 = scmp.lt.s32.totalorder %s9, 2
    // Predicated region
    $region21: #{lqvit_forward.9} parent=5 // pred_check
      %p172 = pneg %p171
    $region22: #{lqvit_forward.9} parent=5 // pred_check_branch
      %174 = sbr.rel (%p172) target = $region24
    $region23: #{lqvit_forward.9} parent=5 // pred_region
      // Predicated region
      $region25: #{lqvit_forward.9} parent=23 // pred_check
        %p175 = pneg %p50
      $region26: #{lqvit_forward.9} parent=23 // pred_check_branch
        %177 = sbr.rel (%p175) target = $region28
      $region27: #{lqvit_forward.9} parent=23 // pred_region
        %s178 = smul.u32 8, %s16
        %p179 = scmp.lt.s32.totalorder %s178, 15
        %s180 = scalar_select %p179, %s178, 15
        %p181 = scmp.lt.s32.totalorder %s18, 0
        %s182 = scalar_select %p181, %s18, 0
        %s183 = sadd.s32 %s182, %s180
        %s184 = smul.addr %s183, 4
        %s185 = scalar_lea.vmem %s0, %s184
        %s186 = smul.u32 8, %s16
      $region28: #{lqvit_forward.9} parent=23 // pred_fallthru
        _
    $region24: #{lqvit_forward.9} parent=5 // pred_fallthru
      _
    %p187 = scmp.le.s32.totalorder 1, %s9
    %p188 = scmp.lt.s32.totalorder %s9, 3
    %p189 = pnand %p187, %p188
    %p190 = pneg %p189
    // Predicated region
    $region29: #{lqvit_forward.9} parent=5 // pred_check
      _
    $region30: #{lqvit_forward.9} parent=5 // pred_check_branch
      %192 = sbr.rel (%p189) target = $region32
    $region31: #{lqvit_forward.9} parent=5 // pred_region
      %s193 = ssub.s32 %s9, 1
      %s194 = smul.u32 8, %s19
      %p195 = scmp.lt.s32.totalorder %s194, 15
      %s196 = scalar_select %p195, %s194, 15
      %p197 = scmp.lt.s32.totalorder %s21, 0
      %s198 = scalar_select %p197, %s21, 0
      %s199 = sadd.s32 %s198, %s196
      %s200 = smul.addr %s199, 4
      %s201 = scalar_lea.vmem %s0, %s200
      %p202 = pneg %p56
      %p203 = pneg %p53
      %s204 = smul.u32 16, %s21
      %p205 = scmp.lt.s32.totalorder %s204, 15
      %s206 = scalar_select %p205, %s204, 15
      %p207 = scmp.lt.s32.totalorder %s20, 0
      %s208 = scalar_select %p207, %s20, 0
      %s209 = sadd.s32 %s208, %s206
      %s210 = smul.addr %s209, 4
      %s211 = scalar_lea.vmem %s1, %s210
      %p212 = pneg %p84
      %p213 = pneg %p81
      %p214 = scmp.lt.s32.totalorder %s20, 0
      %s215 = scalar_select %p214, %s20, 0
      %s216 = scalar_lea.vmem %s2, %s215
      %p217 = pneg %p110
      %p218 = pneg %p107
      %p219 = pneg %p138
      %p220 = pneg %p135
      %s221 = smul.u32 8, %s19
      %p222 = scmp.lt.s32.totalorder %s221, 15
      %s223 = scalar_select %p222, %s221, 15
      %p224 = scmp.lt.s32.totalorder %s20, 0
      %s225 = scalar_select %p224, %s20, 0
      %s226 = sadd.s32 %s225, %s223
      %s227 = smul.addr %s226, 8
      %s228 = scalar_lea.vmem %s3, %s227
      %s229 = smul.u32 8, %s19
      %p230 = scmp.lt.s32.totalorder %s229, 15
      %s231 = scalar_select %p230, %s229, 15
      %p232 = scmp.lt.s32.totalorder %s21, 0
      %s233 = scalar_select %p232, %s21, 0
      %s234 = sadd.s32 %s233, %s231
      %s235 = smul.addr %s234, 4
      %s236 = scalar_lea.vmem %s0, %s235
      %s237 = smul.u32 8, %s19
      %s238 = smul.u32 16, %s21
      %p239 = scmp.lt.s32.totalorder %s238, 15
      %s240 = scalar_select %p239, %s238, 15
      %p241 = scmp.lt.s32.totalorder %s20, 0
      %s242 = scalar_select %p241, %s20, 0
      %s243 = sadd.s32 %s242, %s240
      %s244 = smul.addr %s243, 4
      %s245 = scalar_lea.vmem %s1, %s244
      %s246 = smul.u32 16, %s21
      %p247 = scmp.lt.s32.totalorder %s20, 0
      %s248 = scalar_select %p247, %s20, 0
      %s249 = scalar_lea.vmem %s2, %s248
      %s250 = smul.u32 8, %s19
      %p251 = scmp.lt.s32.totalorder %s250, 15
      %s252 = scalar_select %p251, %s250, 15
      %p253 = scmp.lt.s32.totalorder %s20, 0
      %s254 = scalar_select %p253, %s20, 0
      %s255 = sadd.s32 %s254, %s252
      %s256 = smul.addr %s255, 8
      %s257 = scalar_lea.vmem %s3, %s256
      %s258 = smul.u32 8, %s19
      %p260 = scmp.eq.s32.totalorder %s21, 0
      // Predicated region
      $region33: #{lqvit_forward.9} parent=31 // pred_check
        %p261 = pneg %p260
      $region34: #{lqvit_forward.9} parent=31 // pred_check_branch
        %263 = sbr.rel (%p261) target = $region36
      $region35: #{lqvit_forward.9} parent=31 // pred_region
        %vm264 = vcmask 392192
        %265 = vst.msk [vmem:[#allocation2] sm:$0xff] %vm264, 0.0
        %266 = vst.msk [vmem:[#allocation2 + $0x8] sm:$0xff] %vm264, 0.0
        %267 = vst.msk [vmem:[#allocation2 + $0x10] sm:$0xff] %vm264, 0.0
        %268 = vst.msk [vmem:[#allocation2 + $0x18] sm:$0xff] %vm264, 0.0
        %269 = vst.msk [vmem:[#allocation2 + $0x20] sm:$0xff] %vm264, 0.0
        %270 = vst.msk [vmem:[#allocation2 + $0x28] sm:$0xff] %vm264, 0.0
        %271 = vst.msk [vmem:[#allocation2 + $0x30] sm:$0xff] %vm264, 0.0
        %272 = vst.msk [vmem:[#allocation2 + $0x38] sm:$0xff] %vm264, 0.0
      $region36: #{lqvit_forward.9} parent=31 // pred_fallthru
        _
      %v273 = vld [vmem:[#allocation2] sm:$0xff]
      %v274 = vld [vmem:[#allocation2 + $0x8] sm:$0xff]
      %v275 = vld [vmem:[#allocation2 + $0x10] sm:$0xff]
      %v276 = vld [vmem:[#allocation2 + $0x18] sm:$0xff]
      %v277 = vld [vmem:[#allocation2 + $0x20] sm:$0xff]
      %v278 = vld [vmem:[#allocation2 + $0x28] sm:$0xff]
      %v279 = vld [vmem:[#allocation2 + $0x30] sm:$0xff]
      %v280 = vld [vmem:[#allocation2 + $0x38] sm:$0xff]
      %v281 = vld [vmem:[%s236] sm:$0xf]
      %v282 = vld [vmem:[%s236 + $0x4] sm:$0xf]
      %v283 = vld [vmem:[%s236 + $0x8] sm:$0xf]
      %v284 = vld [vmem:[%s236 + $0xc] sm:$0xf]
      %v285 = vld [vmem:[%s236 + $0x10] sm:$0xf]
      %v286 = vld [vmem:[%s236 + $0x14] sm:$0xf]
      %v287 = vld [vmem:[%s236 + $0x18] sm:$0xf]
      %v288 = vld [vmem:[%s236 + $0x1c] sm:$0xf]
      %v289 = vld [vmem:[%s245] sm:$0xf]
      %v290 = vld [vmem:[%s245 + $0x4] sm:$0xf]
      %v291 = vld [vmem:[%s245 + $0x8] sm:$0xf]
      %v292 = vld [vmem:[%s245 + $0xc] sm:$0xf]
      %v293 = vld [vmem:[%s245 + $0x10] sm:$0xf]
      %v294 = vld [vmem:[%s245 + $0x14] sm:$0xf]
      %v295 = vld [vmem:[%s245 + $0x18] sm:$0xf]
      %v296 = vld [vmem:[%s245 + $0x1c] sm:$0xf]
      %v297 = vld [vmem:[%s245 + $0x20] sm:$0xf]
      %v298 = vld [vmem:[%s245 + $0x24] sm:$0xf]
      %v299 = vld [vmem:[%s245 + $0x28] sm:$0xf]
      %v300 = vld [vmem:[%s245 + $0x2c] sm:$0xf]
      %v301 = vld [vmem:[%s245 + $0x30] sm:$0xf]
      %v302 = vld [vmem:[%s245 + $0x34] sm:$0xf]
      %v303 = vld [vmem:[%s245 + $0x38] sm:$0xf]
      %v304 = vld [vmem:[%s245 + $0x3c] sm:$0xf]
      %v313 = vunpack.c.l.b16 %v281
      %v314 = vunpack.c.l.b16 %v282
      %v315 = vunpack.c.l.b16 %v283
      %v316 = vunpack.c.l.b16 %v284
      %v317 = vunpack.c.l.b16 %v285
      %v318 = vunpack.c.l.b16 %v286
      %v319 = vunpack.c.l.b16 %v287
      %v320 = vunpack.c.l.b16 %v288
      %v321 = vpack.c.b16 %v314, %v313
      %v322 = vpack.c.b16 %v316, %v315
      %v323 = vpack.c.b16 %v318, %v317
      %v324 = vpack.c.b16 %v320, %v319
      %v345 = vunpack.c.l.b16 %v289
      %v346 = vunpack.c.l.b16 %v290
      %v347 = vunpack.c.l.b16 %v291
      %v348 = vunpack.c.l.b16 %v292
      %v349 = vunpack.c.l.b16 %v293
      %v350 = vunpack.c.l.b16 %v294
      %v351 = vunpack.c.l.b16 %v295
      %v352 = vunpack.c.l.b16 %v296
      %v353 = vunpack.c.l.b16 %v297
      %v354 = vunpack.c.l.b16 %v298
      %v355 = vunpack.c.l.b16 %v299
      %v356 = vunpack.c.l.b16 %v300
      %v357 = vunpack.c.l.b16 %v301
      %v358 = vunpack.c.l.b16 %v302
      %v359 = vunpack.c.l.b16 %v303
      %v360 = vunpack.c.l.b16 %v304
      %v361 = vpack.c.b16 %v346, %v345
      %v362 = vpack.c.b16 %v348, %v347
      %v363 = vpack.c.b16 %v350, %v349
      %v364 = vpack.c.b16 %v352, %v351
      %v365 = vpack.c.b16 %v354, %v353
      %v366 = vpack.c.b16 %v356, %v355
      %v367 = vpack.c.b16 %v358, %v357
      %v368 = vpack.c.b16 %v360, %v359
      %377 = vmatprep.subr.bf16.mxu0 0
      %378 = vmatpush1.bf16.msra.mxu0 %v361
      %379 = vmatprep.subr.bf16.mxu0 0
      %380 = vmatpush1.bf16.msra.mxu0 %v362
      %381 = vmatprep.subr.bf16.mxu0 0
      %382 = vmatpush1.bf16.msra.mxu0 %v363
      %383 = vmatprep.subr.bf16.mxu0 0
      %384 = vmatpush1.bf16.msra.mxu0 %v364
      %385 = vmatprep.subr.bf16.mxu0 0
      %386 = vmatpush1.bf16.msra.mxu0 %v365
      %387 = vmatprep.subr.bf16.mxu0 0
      %388 = vmatpush1.bf16.msra.mxu0 %v366
      %389 = vmatprep.subr.bf16.mxu0 0
      %390 = vmatpush1.bf16.msra.mxu0 %v367
      %391 = vmatprep.subr.bf16.mxu0 0
      %392 = vmatpush1.bf16.msra.mxu0 %v368
      %393 = vmatprep.subr.bf16.mxu0 0
      %394 = vmatpush1.bf16.msra.mxu0 0
      %395 = vmatprep.subr.bf16.mxu0 0
      %396 = vmatpush1.bf16.msra.mxu0 0
      %397 = vmatprep.subr.bf16.mxu0 0
      %398 = vmatpush1.bf16.msra.mxu0 0
      %399 = vmatprep.subr.bf16.mxu0 0
      %400 = vmatpush1.bf16.msra.mxu0 0
      %401 = vmatprep.subr.bf16.mxu0 0
      %402 = vmatpush1.bf16.msra.mxu0 0
      %403 = vmatprep.subr.bf16.mxu0 0
      %404 = vmatpush1.bf16.msra.mxu0 0
      %405 = vmatprep.subr.bf16.mxu0 0
      %406 = vmatpush1.bf16.msra.mxu0 0
      %407 = vmatprep.subr.bf16.mxu0 0
      %408 = vmatpush1.bf16.msra.mxu0 0
      %409 = vmatprep.mubr.bf16.mxu0 0
      %410 = vmatmul.mubr.bf16.gmra.mrb[0].mxu0 %v321
      %v411 = vpop.f32.mrb[0].mxu0
      %v412 = vadd.f32 0.0, %v411
      %v413 = vpop.f32.mrb[0].mxu0
      %v414 = vpop.f32.mrb[0].mxu0
      %v415 = vadd.f32 0.0, %v414
      %v416 = vpop.f32.mrb[0].mxu0
      %417 = vmatprep.mubr.bf16.mxu0 0
      %418 = vmatmul.mubr.bf16.gmra.mrb[0].mxu0 %v322
      %v419 = vpop.f32.mrb[0].mxu0
      %v420 = vadd.f32 0.0, %v419
      %v421 = vpop.f32.mrb[0].mxu0
      %v422 = vpop.f32.mrb[0].mxu0
      %v423 = vadd.f32 0.0, %v422
      %v424 = vpop.f32.mrb[0].mxu0
      %425 = vmatprep.mubr.bf16.mxu0 0
      %426 = vmatmul.mubr.bf16.gmra.mrb[0].mxu0 %v323
      %v427 = vpop.f32.mrb[0].mxu0
      %v428 = vadd.f32 0.0, %v427
      %v429 = vpop.f32.mrb[0].mxu0
      %v430 = vpop.f32.mrb[0].mxu0
      %v431 = vadd.f32 0.0, %v430
      %v432 = vpop.f32.mrb[0].mxu0
      %433 = vmatprep.mubr.bf16.mxu0 0
      %434 = vmatmul.mubr.bf16.gmra.mrb[0].mxu0 %v324
      %v435 = vpop.f32.mrb[0].mxu0
      %v436 = vadd.f32 0.0, %v435
      %v437 = vpop.f32.mrb[0].mxu0
      %v438 = vpop.f32.mrb[0].mxu0
      %v439 = vadd.f32 0.0, %v438
      %v440 = vpop.f32.mrb[0].mxu0
      %441 = vdwg.mxu0
      %v442 = vadd.f32 %v273, %v412
      %v443 = vadd.f32 %v274, %v415
      %v444 = vadd.f32 %v275, %v420
      %v445 = vadd.f32 %v276, %v423
      %v446 = vadd.f32 %v277, %v428
      %v447 = vadd.f32 %v278, %v431
      %v448 = vadd.f32 %v279, %v436
      %v449 = vadd.f32 %v280, %v439
      %vm450 = vcmask 392192
      %451 = vst.msk [vmem:[#allocation2] sm:$0xff] %vm450, %v442
      %452 = vst.msk [vmem:[#allocation2 + $0x8] sm:$0xff] %vm450, %v443
      %453 = vst.msk [vmem:[#allocation2 + $0x10] sm:$0xff] %vm450, %v444
      %454 = vst.msk [vmem:[#allocation2 + $0x18] sm:$0xff] %vm450, %v445
      %455 = vst.msk [vmem:[#allocation2 + $0x20] sm:$0xff] %vm450, %v446
      %456 = vst.msk [vmem:[#allocation2 + $0x28] sm:$0xff] %vm450, %v447
      %457 = vst.msk [vmem:[#allocation2 + $0x30] sm:$0xff] %vm450, %v448
      %458 = vst.msk [vmem:[#allocation2 + $0x38] sm:$0xff] %vm450, %v449
      // Predicated region
      $region37: #{lqvit_forward.9} parent=31 // pred_check
        %p459 = pneg %p260
      $region38: #{lqvit_forward.9} parent=31 // pred_check_branch
        %461 = sbr.rel (%p459) target = $region40
      $region39: #{lqvit_forward.9} parent=31 // pred_region
        %v462 = vld [vmem:[#allocation2] sm:$0xff]
        %v463 = vld [vmem:[#allocation2 + $0x8] sm:$0xff]
        %v464 = vld [vmem:[#allocation2 + $0x10] sm:$0xff]
        %v465 = vld [vmem:[#allocation2 + $0x18] sm:$0xff]
        %v466 = vld [vmem:[#allocation2 + $0x20] sm:$0xff]
        %v467 = vld [vmem:[#allocation2 + $0x28] sm:$0xff]
        %v468 = vld [vmem:[#allocation2 + $0x30] sm:$0xff]
        %v469 = vld [vmem:[#allocation2 + $0x38] sm:$0xff]
        %v470 = vld [vmem:[%s249] sm:$0x1]
        %v472 = vlaneseq
        %v473 = vshrl.u32 %v472, 7
        %v474 = vsub.s32 0, %v473
        %v475 = vrot.slane %v470, %v474
        %v477 = vadd.f32 %v462, %v475
        %v478 = vadd.f32 %v463, %v475
        %v479 = vadd.f32 %v464, %v475
        %v480 = vadd.f32 %v465, %v475
        %v481 = vadd.f32 %v466, %v475
        %v482 = vadd.f32 %v467, %v475
        %v483 = vadd.f32 %v468, %v475
        %v484 = vadd.f32 %v469, %v475
        %485 = vst.msk [vmem:[%s257] sm:$0xff] %vm450, %v477
        %486 = vst.msk [vmem:[%s257 + $0x8] sm:$0xff] %vm450, %v478
        %487 = vst.msk [vmem:[%s257 + $0x10] sm:$0xff] %vm450, %v479
        %488 = vst.msk [vmem:[%s257 + $0x18] sm:$0xff] %vm450, %v480
        %489 = vst.msk [vmem:[%s257 + $0x20] sm:$0xff] %vm450, %v481
        %490 = vst.msk [vmem:[%s257 + $0x28] sm:$0xff] %vm450, %v482
        %491 = vst.msk [vmem:[%s257 + $0x30] sm:$0xff] %vm450, %v483
        %492 = vst.msk [vmem:[%s257 + $0x38] sm:$0xff] %vm450, %v484
      $region40: #{lqvit_forward.9} parent=31 // pred_fallthru
        _
      %s493 = smul.u32 8, %s19
      %p494 = scmp.lt.s32.totalorder %s493, 15
      %s495 = scalar_select %p494, %s493, 15
      %p496 = scmp.lt.s32.totalorder %s20, 0
      %s497 = scalar_select %p496, %s20, 0
      %s498 = sadd.s32 %s497, %s495
      %s499 = smul.addr %s498, 8
      %s500 = scalar_lea.vmem %s3, %s499
      // Predicated region
      $region41: #{lqvit_forward.9} parent=31 // pred_check
        %p501 = pneg %p135
      $region42: #{lqvit_forward.9} parent=31 // pred_check_branch
        %503 = sbr.rel (%p501) target = $region44
      $region43: #{lqvit_forward.9} parent=31 // pred_region
        %s504 = smul.u32 8, %s19
      $region44: #{lqvit_forward.9} parent=31 // pred_fallthru
        _
    $region32: #{lqvit_forward.9} parent=5 // pred_fallthru
      _
    %p505 = scmp.le.s32.totalorder 2, %s9
    // Predicated region
    $region45: #{lqvit_forward.9} parent=5 // pred_check
      %p506 = pneg %p505
    $region46: #{lqvit_forward.9} parent=5 // pred_check_branch
      %508 = sbr.rel (%p506) target = $region48
    $region47: #{lqvit_forward.9} parent=5 // pred_region
      %s509 = ssub.s32 %s9, 2
      // Predicated region
      $region49: #{lqvit_forward.9} parent=47 // pred_check
        %p510 = pneg %p141
      $region50: #{lqvit_forward.9} parent=47 // pred_check_branch
        %512 = sbr.rel (%p510) target = $region52
      $region51: #{lqvit_forward.9} parent=47 // pred_region
        %s513 = smul.u32 8, %s22
        %p514 = scmp.lt.s32.totalorder %s513, 15
        %s515 = scalar_select %p514, %s513, 15
        %p516 = scmp.lt.s32.totalorder %s23, 0
        %s517 = scalar_select %p516, %s23, 0
        %s518 = sadd.s32 %s517, %s515
        %s519 = smul.addr %s518, 8
        %s520 = scalar_lea.vmem %s3, %s519
      $region52: #{lqvit_forward.9} parent=47 // pred_fallthru
        _
    $region48: #{lqvit_forward.9} parent=5 // pred_fallthru
      _
  $region6: #{lqvit_forward.9} parent=0 // loop_footer
    %s13 = sadd.s32 1, %s9
  $region7: #{lqvit_forward.9} parent=0 // loop_footer_branch
    %8 = sbr.rel target = $region3
  $region8: #{lqvit_forward.9} parent=0 // loop_exit
    _

</llo_original>
